<compile_context>
chip_gen: v7x
topology: tpu7x:2x2x1
jax: 0.10.0
libtpu: 0.0.40
codegen_flags: <defaults>
</compile_context>

<pallas_src>
import functools
import math

import numpy as np
import jax
import jax.numpy as jnp
from jax.experimental import pallas as pl
from jax.experimental.pallas import tpu as pltpu


VMEM_LIMIT_BYTES = 32 * 1024 * 1024
# Set to jnp.bfloat16 on v6e/v7x to use the bf16 MXU path (f32 accumulate).
MXU_INPUT_DTYPE = jnp.float32


# ----------------------------- tiling helpers ------------------------------

def _pick_tile(dim, cap, align):
    """Largest multiple of `align` dividing `dim`, capped at `cap`; else `dim`."""
    best = None
    t = align
    while t <= min(dim, cap):
        if dim % t == 0:
            best = t
        t += align
    return best if best is not None else dim


def _group_head_perm(d_model, num_heads, groups):
    """Column permutation turning the torch [h0:(q,k,v), h1:(q,k,v), ...] packed
    projection layout into [Q(all heads) | K(all heads) | V(all heads)]."""
    hd = d_model // num_heads
    g = np.arange(groups)[:, None, None]
    h = np.arange(num_heads)[None, :, None]
    d = np.arange(hd)[None, None, :]
    old = h * (groups * hd) + g * hd + d          # source column for (g, h, d)
    return jnp.asarray(old.reshape(-1), dtype=jnp.int32)


# ----------------------------- Pallas kernels -----------------------------

def _linear_kernel(x_ref, w_ref, b_ref, o_ref, acc_ref, *, activation):
    k = pl.program_id(2)

    @pl.when(k == 0)
    def _():
        acc_ref[...] = jnp.zeros_like(acc_ref)

    acc_ref[...] += jnp.dot(
        x_ref[...], w_ref[...], preferred_element_type=jnp.float32
    )

    @pl.when(k == pl.num_programs(2) - 1)
    def _():
        y = acc_ref[...] + b_ref[...]
        if activation == "relu":
            y = jnp.maximum(y, 0.0)
        o_ref[...] = y.astype(o_ref.dtype)


def _attend_heads(q_all, k_all, v_all, o_ref, num_heads):
    # q_all: (Sq, D), k_all/v_all: (Skv, D); heads contiguous along the lane axis.
    d_model = q_all.shape[-1]
    hd = d_model // num_heads
    scale = 1.0 / math.sqrt(hd)
    outs = []
    for h in range(num_heads):
        lo, hi = h * hd, (h + 1) * hd
        q = q_all[:, lo:hi] * scale                     # scale folded into q
        k = k_all[:, lo:hi]
        v = v_all[:, lo:hi]
        # s = q @ k.T without materializing a transpose.
        s = jax.lax.dot_general(
            q, k, (((1,), (1,)), ((), ())), preferred_element_type=jnp.float32
        )
        m = jnp.max(s, axis=-1, keepdims=True)
        p = jnp.exp(s - m)
        l = jnp.sum(p, axis=-1, keepdims=True)
        o = jnp.dot(p, v, preferred_element_type=jnp.float32)
        # Normalize the (S, Dh) output, not the (S, S) probabilities; recip -> EUP.
        outs.append(o * pl.reciprocal(l, approx=True))
    # One lane-dense (S, H*Dh) store.
    o_ref[0] = jnp.concatenate(outs, axis=-1).astype(o_ref.dtype)


def _self_attention_kernel(qkv_ref, o_ref, *, num_heads):
    d_model = o_ref.shape[-1]
    qkv = qkv_ref[0]                                    # (S, 3D)  [Q|K|V]
    _attend_heads(qkv[:, :d_model], qkv[:, d_model:2 * d_model],
                  qkv[:, 2 * d_model:], o_ref, num_heads)


def _cross_attention_kernel(q_ref, kv_ref, o_ref, *, num_heads):
    d_model = o_ref.shape[-1]
    kv = kv_ref[0]                                      # (Skv, 2D) [K|V]
    _attend_heads(q_ref[0], kv[:, :d_model], kv[:, d_model:], o_ref, num_heads)


def _add_layernorm_kernel(x_ref, r_ref, g_ref, b_ref, o_ref):
    x = x_ref[...] + r_ref[...]                         # fused residual add
    mean = jnp.mean(x, axis=-1, keepdims=True)
    var = jnp.mean((x - mean) ** 2, axis=-1, keepdims=True)
    y = (x - mean) * jax.lax.rsqrt(var + 1e-5)
    o_ref[...] = g_ref[...] * y + b_ref[...]


# ----------------------------- Pallas wrappers -----------------------------

def _pallas_linear(x2d, w, b, activation=None):
    M, K = x2d.shape
    N = w.shape[1]
    tm = _pick_tile(M, 256, 8)
    tn = _pick_tile(N, 256, 128)
    tk = _pick_tile(K, 512, 128)
    x2d = x2d.astype(MXU_INPUT_DTYPE)
    w = w.astype(MXU_INPUT_DTYPE)

    kernel = functools.partial(_linear_kernel, activation=activation)
    return pl.pallas_call(
        kernel,
        out_shape=jax.ShapeDtypeStruct((M, N), jnp.float32),
        grid=(M // tm, N // tn, K // tk),
        in_specs=[
            pl.BlockSpec((tm, tk), lambda i, j, k: (i, k)),
            pl.BlockSpec((tk, tn), lambda i, j, k: (k, j)),
            pl.BlockSpec((1, tn), lambda i, j, k: (0, j)),
        ],
        out_specs=pl.BlockSpec((tm, tn), lambda i, j, k: (i, j)),
        scratch_shapes=[pltpu.VMEM((tm, tn), jnp.float32)],
        compiler_params=pltpu.CompilerParams(
            dimension_semantics=("parallel", "parallel", "arbitrary"),
            vmem_limit_bytes=VMEM_LIMIT_BYTES,
        ),
    )(x2d, w, b.astype(jnp.float32).reshape(1, N))


def _pallas_self_attention(qkv, num_heads):
    B, S, D3 = qkv.shape
    D = D3 // 3
    kernel = functools.partial(_self_attention_kernel, num_heads=num_heads)
    return pl.pallas_call(
        kernel,
        out_shape=jax.ShapeDtypeStruct((B, S, D), jnp.float32),
        grid=(B,),
        in_specs=[pl.BlockSpec((1, S, D3), lambda b: (b, 0, 0))],
        out_specs=pl.BlockSpec((1, S, D), lambda b: (b, 0, 0)),
        compiler_params=pltpu.CompilerParams(
            dimension_semantics=("parallel",),
            vmem_limit_bytes=VMEM_LIMIT_BYTES,
        ),
    )(qkv)


def _pallas_cross_attention(q, kv, num_heads):
    B, Sq, D = q.shape
    _, Skv, D2 = kv.shape
    kernel = functools.partial(_cross_attention_kernel, num_heads=num_heads)
    return pl.pallas_call(
        kernel,
        out_shape=jax.ShapeDtypeStruct((B, Sq, D), jnp.float32),
        grid=(B,),
        in_specs=[
            pl.BlockSpec((1, Sq, D), lambda b: (b, 0, 0)),
            pl.BlockSpec((1, Skv, D2), lambda b: (b, 0, 0)),
        ],
        out_specs=pl.BlockSpec((1, Sq, D), lambda b: (b, 0, 0)),
        compiler_params=pltpu.CompilerParams(
            dimension_semantics=("parallel",),
            vmem_limit_bytes=VMEM_LIMIT_BYTES,
        ),
    )(q, kv)


def _pallas_add_layernorm(x2d, res2d, gamma, beta):
    M, D = x2d.shape
    tm = _pick_tile(M, 512, 8)
    return pl.pallas_call(
        _add_layernorm_kernel,
        out_shape=jax.ShapeDtypeStruct((M, D), jnp.float32),
        grid=(M // tm,),
        in_specs=[
            pl.BlockSpec((tm, D), lambda i: (i, 0)),
            pl.BlockSpec((tm, D), lambda i: (i, 0)),
            pl.BlockSpec((1, D), lambda i: (0, 0)),
            pl.BlockSpec((1, D), lambda i: (0, 0)),
        ],
        out_specs=pl.BlockSpec((tm, D), lambda i: (i, 0)),
        compiler_params=pltpu.CompilerParams(
            dimension_semantics=("parallel",),
            vmem_limit_bytes=VMEM_LIMIT_BYTES,
        ),
    )(x2d, res2d, gamma.reshape(1, D), beta.reshape(1, D))


# ----------------------------- Model pieces (glue in JAX) -------------------

def linear3d(x, w, b, activation=None):
    B, S, D = x.shape
    out = _pallas_linear(x.reshape(B * S, D), w, b, activation)
    return out.reshape(B, S, w.shape[1])


def add_layer_norm(x, res, gamma, beta):
    B, S, D = x.shape
    return _pallas_add_layernorm(
        x.reshape(B * S, D), res.reshape(B * S, D), gamma, beta
    ).reshape(B, S, D)


def multi_head_attention(x, p, num_heads):
    B, S, D = x.shape
    # Permute projection weight columns (weights only, cheap) so the kernel
    # receives [Q|K|V] with heads contiguous -> no activation transposes.
    perm = _group_head_perm(D, num_heads, 3)
    qkv = linear3d(x, p["w_qkv"][:, perm], p["b_qkv"][perm])     # (B, S, 3D)
    ctx = _pallas_self_attention(qkv, num_heads)                  # (B, S, D)
    return linear3d(ctx, p["w_out"], p["b_out"])


def multi_head_cross_attention(x_enc, y, p, num_heads):
    # x_enc: encoder output (keys/values), y: decoder stream (queries).
    # TODO(synk): like the PyTorch module, this assumes src/tgt seq lengths match.
    B, S, D = x_enc.shape
    perm = _group_head_perm(D, num_heads, 2)
    kv = linear3d(x_enc, p["w_kv"][:, perm], p["b_kv"][perm])    # (B, S, 2D) [K|V]
    q = linear3d(y, p["w_q"], p["b_q"])                          # (B, S, D)
    ctx = _pallas_cross_attention(q, kv, num_heads)
    return linear3d(ctx, p["w_out"], p["b_out"])


def feed_forward(x, p):
    h = linear3d(x, p["w1"], p["b1"], activation="relu")
    # dropout(p=0.1): eval-mode identity
    return linear3d(h, p["w2"], p["b2"])


def encoder_layer(x, p, num_heads):
    attn_out = multi_head_attention(x, p["attn"], num_heads)
    x = add_layer_norm(attn_out, x, p["ln1_g"], p["ln1_b"])
    ffn_out = feed_forward(x, p["ffn"])
    x = add_layer_norm(ffn_out, x, p["ln2_g"], p["ln2_b"])
    return x


def decoder_layer(x_enc, y, p, num_heads):
    sa_out = multi_head_attention(y, p["self_attn"], num_heads)
    y = add_layer_norm(sa_out, y, p["ln1_g"], p["ln1_b"])
    ca_out = multi_head_cross_attention(x_enc, y, p["cross_attn"], num_heads)
    y = add_layer_norm(ca_out, y, p["ln2_g"], p["ln2_b"])
    ffn_out = feed_forward(y, p["ffn"])
    y = add_layer_norm(ffn_out, y, p["ln3_g"], p["ln3_b"])
    return y


def positional_encoding(max_sequence_length, d_model):
    even_i = jnp.arange(0, d_model, 2, dtype=jnp.float32)
    denominator = jnp.power(10000.0, even_i / d_model)
    position = jnp.arange(max_sequence_length, dtype=jnp.float32).reshape(-1, 1)
    even_pe = jnp.sin(position / denominator)
    odd_pe = jnp.cos(position / denominator)
    stacked = jnp.stack([even_pe, odd_pe], axis=2)
    return stacked.reshape(max_sequence_length, d_model)


def transformer_forward(params, x_tokens, y_tokens, *, num_heads):
    # TODO(synk): SentenceEmbedding.batch_tokenize (python string tokenization)
    # has no Pallas/JAX equivalent; inputs here are pre-tokenized int32 ids.
    S = x_tokens.shape[1]
    d_model = params["enc_embed"].shape[1]
    pe = positional_encoding(S, d_model)

    # Encoder
    x = params["enc_embed"][x_tokens] + pe[None, :, :]   # dropout = identity
    for lp in params["enc_layers"]:
        x = encoder_layer(x, lp, num_heads)

    # Decoder
    y = params["dec_embed"][y_tokens] + pe[None, :, :]   # dropout = identity
    for lp in params["dec_layers"]:
        y = decoder_layer(x, y, lp, num_heads)

    # Final projection to target vocab (tiled over N and K like the other linears)
    return linear3d(y, params["w_final"], params["b_final"])


# ----------------------------- Parameter init ------------------------------

def _init_linear(key, fan_in, fan_out):
    kw, kb = jax.random.split(key)
    bound = 1.0 / math.sqrt(fan_in)
    w = jax.random.uniform(kw, (fan_in, fan_out), jnp.float32, -bound, bound)
    b = jax.random.uniform(kb, (fan_out,), jnp.float32, -bound, bound)
    return w, b


def _init_mha(key, d_model):
    k1, k2 = jax.random.split(key)
    w_qkv, b_qkv = _init_linear(k1, d_model, 3 * d_model)
    w_out, b_out = _init_linear(k2, d_model, d_model)
    return {"w_qkv": w_qkv, "b_qkv": b_qkv, "w_out": w_out, "b_out": b_out}


def _init_cross_mha(key, d_model):
    k1, k2, k3 = jax.random.split(key, 3)
    w_kv, b_kv = _init_linear(k1, d_model, 2 * d_model)
    w_q, b_q = _init_linear(k2, d_model, d_model)
    w_out, b_out = _init_linear(k3, d_model, d_model)
    return {"w_kv": w_kv, "b_kv": b_kv, "w_q": w_q, "b_q": b_q,
            "w_out": w_out, "b_out": b_out}


def _init_ffn(key, d_model, hidden):
    k1, k2 = jax.random.split(key)
    w1, b1 = _init_linear(k1, d_model, hidden)
    w2, b2 = _init_linear(k2, hidden, d_model)
    return {"w1": w1, "b1": b1, "w2": w2, "b2": b2}


def _init_encoder_layer(key, d_model, ffn_hidden):
    k1, k2 = jax.random.split(key)
    return {
        "attn": _init_mha(k1, d_model),
        "ln1_g": jnp.ones((d_model,), jnp.float32),
        "ln1_b": jnp.zeros((d_model,), jnp.float32),
        "ffn": _init_ffn(k2, d_model, ffn_hidden),
        "ln2_g": jnp.ones((d_model,), jnp.float32),
        "ln2_b": jnp.zeros((d_model,), jnp.float32),
    }


def _init_decoder_layer(key, d_model, ffn_hidden):
    k1, k2, k3 = jax.random.split(key, 3)
    return {
        "self_attn": _init_mha(k1, d_model),
        "ln1_g": jnp.ones((d_model,), jnp.float32),
        "ln1_b": jnp.zeros((d_model,), jnp.float32),
        "cross_attn": _init_cross_mha(k2, d_model),
        "ln2_g": jnp.ones((d_model,), jnp.float32),
        "ln2_b": jnp.zeros((d_model,), jnp.float32),
        "ffn": _init_ffn(k3, d_model, ffn_hidden),
        "ln3_g": jnp.ones((d_model,), jnp.float32),
        "ln3_b": jnp.zeros((d_model,), jnp.float32),
    }


def init_transformer_params(key, d_model, ffn_hidden, num_layers,
                            src_vocab, tgt_vocab, kn_vocab_size):
    keys = jax.random.split(key, 3 + 2 * num_layers)
    params = {
        "enc_embed": jax.random.normal(keys[0], (src_vocab, d_model), jnp.float32),
        "dec_embed": jax.random.normal(keys[1], (tgt_vocab, d_model), jnp.float32),
        "enc_layers": [
            _init_encoder_layer(keys[3 + i], d_model, ffn_hidden)
            for i in range(num_layers)
        ],
        "dec_layers": [
            _init_decoder_layer(keys[3 + num_layers + i], d_model, ffn_hidden)
            for i in range(num_layers)
        ],
    }
    w_final, b_final = _init_linear(keys[2], d_model, kn_vocab_size)
    params["w_final"] = w_final
    params["b_final"] = b_final
    return params


# ----------------------------- main ------------------------------

if __name__ == "__main__":
    # Small shapes consistent with the module's forward:
    # batch=2, seq=8, d_model=128, num_heads=8 (as in spec), ffn_hidden=256,
    # src/tgt vocab = kn_vocab_size = 128, num_layers=1.
    B, S, D, H, FFN_H, VOCAB, N_LAYERS = 2, 8, 128, 8, 256, 128, 1

    key = jax.random.PRNGKey(0)
    pkey, xkey, ykey = jax.random.split(key, 3)

    params = init_transformer_params(pkey, D, FFN_H, N_LAYERS, VOCAB, VOCAB, VOCAB)
    x_tokens = jax.random.randint(xkey, (B, S), 0, VOCAB, dtype=jnp.int32)
    y_tokens = jax.random.randint(ykey, (B, S), 0, VOCAB, dtype=jnp.int32)

    fwd = jax.jit(functools.partial(transformer_forward, num_heads=H))
    out = fwd(params, x_tokens, y_tokens)                 # (B, S, VOCAB)
    jax.block_until_ready(out)
    assert out.shape == (B, S, VOCAB)
    assert bool(jnp.all(jnp.isfinite(out)))
    print("KERNEL_OK")
</pallas_src>

<mosaic_0001>
module attributes {stable_mosaic.version = 11 : i64} {
  func.func @_linear_kernel(%arg0: i32, %arg1: i32, %arg2: i32, %arg3: memref<16x128xf32, #tpu.memory_space<vmem>>, %arg4: memref<128x128xf32, #tpu.memory_space<vmem>>, %arg5: memref<1x128xf32, #tpu.memory_space<vmem>>, %arg6: memref<16x128xf32, #tpu.memory_space<vmem>>, %arg7: memref<16x128xf32, #tpu.memory_space<vmem>>) attributes {dimension_semantics = [#tpu.dimension_semantics<parallel>, #tpu.dimension_semantics<parallel>, #tpu.dimension_semantics<arbitrary>], iteration_bounds = array<i64: 1, 3, 1>, scalar_prefetch = 0 : i64, scratch_operands = 1 : i64, tpu.core_type = #tpu.core_type<tc>, window_params = [{transform_indices = @transform_0, window_bounds = array<i64: 16, 128>}, {transform_indices = @transform_1, window_bounds = array<i64: 128, 128>}, {transform_indices = @transform_2, window_bounds = array<i64: 1, 128>}, {transform_indices = @transform_3, window_bounds = array<i64: 16, 128>}]} {
    %c0_i32 = arith.constant 0 : i32
    %0 = arith.cmpi eq, %arg2, %c0_i32 : i32
    %1 = arith.extui %0 : i1 to i32
    %c0_i32_0 = arith.constant 0 : i32
    %2 = arith.cmpi ne, %1, %c0_i32_0 : i32
    scf.if %2 {
      %cst_10 = arith.constant 0.000000e+00 : f32
      %12 = vector.broadcast %cst_10 : f32 to vector<16x128xf32>
      %c0_11 = arith.constant 0 : index
      %c0_12 = arith.constant 0 : index
      %13 = vector.load %arg7[%c0_11, %c0_12] : memref<16x128xf32, #tpu.memory_space<vmem>>, vector<16x128xf32>
      tpu.vector_store %arg7[%c0_11, %c0_12], %12 {strides = array<i32>} : memref<16x128xf32, #tpu.memory_space<vmem>>, vector<16x128xf32>,
    } else {
    }
    %c0 = arith.constant 0 : index
    %c0_1 = arith.constant 0 : index
    %3 = vector.load %arg7[%c0, %c0_1] : memref<16x128xf32, #tpu.memory_space<vmem>>, vector<16x128xf32>
    %c0_2 = arith.constant 0 : index
    %c0_3 = arith.constant 0 : index
    %4 = vector.load %arg3[%c0_2, %c0_3] : memref<16x128xf32, #tpu.memory_space<vmem>>, vector<16x128xf32>
    %c0_4 = arith.constant 0 : index
    %c0_5 = arith.constant 0 : index
    %5 = vector.load %arg4[%c0_4, %c0_5] : memref<128x128xf32, #tpu.memory_space<vmem>>, vector<128x128xf32>
    %cst = arith.constant dense<0.000000e+00> : vector<16x128xf32>
    %6 = tpu.matmul %4, %5, %cst {dimension_numbers = #tpu.dot_dimension_numbers<[1], [0], [0], [1], [0, 0, 1, 1], [], []>} : vector<16x128xf32>, vector<128x128xf32>, vector<16x128xf32> -> vector<16x128xf32>
    %7 = arith.addf %3, %6 : vector<16x128xf32>
    %c0_6 = arith.constant 0 : index
    %c0_7 = arith.constant 0 : index
    %8 = vector.load %arg7[%c0_6, %c0_7] : memref<16x128xf32, #tpu.memory_space<vmem>>, vector<16x128xf32>
    tpu.vector_store %arg7[%c0_6, %c0_7], %7 {strides = array<i32>} : memref<16x128xf32, #tpu.memory_space<vmem>>, vector<16x128xf32>,
    %c0_i32_8 = arith.constant 0 : i32
    %9 = arith.cmpi eq, %arg2, %c0_i32_8 : i32
    %10 = arith.extui %9 : i1 to i32
    %c0_i32_9 = arith.constant 0 : i32
    %11 = arith.cmpi ne, %10, %c0_i32_9 : i32
    scf.if %11 {
      %c0_10 = arith.constant 0 : index
      %c0_11 = arith.constant 0 : index
      %12 = vector.load %arg7[%c0_10, %c0_11] : memref<16x128xf32, #tpu.memory_space<vmem>>, vector<16x128xf32>
      %c0_12 = arith.constant 0 : index
      %c0_13 = arith.constant 0 : index
      %13 = vector.load %arg5[%c0_12, %c0_13] : memref<1x128xf32, #tpu.memory_space<vmem>>, vector<1x128xf32>
      %14 = vector.broadcast %13 : vector<1x128xf32> to vector<16x128xf32>
      %15 = arith.addf %12, %14 : vector<16x128xf32>
      %c0_14 = arith.constant 0 : index
      %c0_15 = arith.constant 0 : index
      %16 = vector.load %arg6[%c0_14, %c0_15] : memref<16x128xf32, #tpu.memory_space<vmem>>, vector<16x128xf32>
      tpu.vector_store %arg6[%c0_14, %c0_15], %15 {strides = array<i32>} : memref<16x128xf32, #tpu.memory_space<vmem>>, vector<16x128xf32>,
    } else {
    }
    return
  }
  func.func @transform_0(%arg0: i32, %arg1: i32, %arg2: i32) -> (i32, i32) {
    %c0_i32 = arith.constant 0 : i32
    return %arg0, %arg2 : i32, i32
  }
  func.func @transform_1(%arg0: i32, %arg1: i32, %arg2: i32) -> (i32, i32) {
    %c0_i32 = arith.constant 0 : i32
    return %arg2, %arg1 : i32, i32
  }
  func.func @transform_2(%arg0: i32, %arg1: i32, %arg2: i32) -> (i32, i32) {
    %c0_i32 = arith.constant 0 : i32
    %c0_i32_0 = arith.constant 0 : i32
    return %c0_i32, %arg1 : i32, i32
  }
  func.func @transform_3(%arg0: i32, %arg1: i32, %arg2: i32) -> (i32, i32) {
    %c0_i32 = arith.constant 0 : i32
    return %arg0, %arg1 : i32, i32
  }
}

module attributes {stable_mosaic.version = 11 : i64} {
  func.func @_self_attention_kernel(%arg0: i32, %arg1: memref<1x8x384xf32, #tpu.memory_space<vmem>>, %arg2: memref<1x8x128xf32, #tpu.memory_space<vmem>>) attributes {dimension_semantics = [#tpu.dimension_semantics<parallel>], iteration_bounds = array<i64: 2>, scalar_prefetch = 0 : i64, scratch_operands = 0 : i64, tpu.core_type = #tpu.core_type<tc>, window_params = [{transform_indices = @transform_0, window_bounds = array<i64: 1, 8, 384>}, {transform_indices = @transform_1, window_bounds = array<i64: 1, 8, 128>}]} {
    %c0 = arith.constant 0 : index
    %c0_0 = arith.constant 0 : index
    %c0_1 = arith.constant 0 : index
    %0 = vector.load %arg1[%c0, %c0_0, %c0_1] : memref<1x8x384xf32, #tpu.memory_space<vmem>>, vector<1x8x384xf32>
    %1 = vector.shape_cast %0 : vector<1x8x384xf32> to vector<8x384xf32>
    %2 = vector.extract_strided_slice %1 {offsets = [0, 0], sizes = [8, 128], strides = [1, 1]} : vector<8x384xf32> to vector<8x128xf32>
    %3 = vector.extract_strided_slice %1 {offsets = [0, 128], sizes = [8, 128], strides = [1, 1]} : vector<8x384xf32> to vector<8x128xf32>
    %4 = vector.extract_strided_slice %1 {offsets = [0, 256], sizes = [8, 128], strides = [1, 1]} : vector<8x384xf32> to vector<8x128xf32>
    %5 = vector.extract_strided_slice %2 {offsets = [0, 0], sizes = [8, 16], strides = [1, 1]} : vector<8x128xf32> to vector<8x16xf32>
    %cst = arith.constant 2.500000e-01 : f32
    %6 = vector.broadcast %cst : f32 to vector<8x16xf32>
    %7 = arith.mulf %5, %6 : vector<8x16xf32>
    %8 = vector.extract_strided_slice %3 {offsets = [0, 0], sizes = [8, 16], strides = [1, 1]} : vector<8x128xf32> to vector<8x16xf32>
    %9 = vector.extract_strided_slice %4 {offsets = [0, 0], sizes = [8, 16], strides = [1, 1]} : vector<8x128xf32> to vector<8x16xf32>
    %cst_2 = arith.constant dense<0.000000e+00> : vector<8x8xf32>
    %10 = tpu.matmul %7, %8, %cst_2 {dimension_numbers = #tpu.dot_dimension_numbers<[1], [1], [0], [0], [0, 0, 1, 0], [], []>} : vector<8x16xf32>, vector<8x16xf32>, vector<8x8xf32> -> vector<8x8xf32>
    %cst_3 = arith.constant dense<0xFF800000> : vector<8xf32>
    %11 = vector.multi_reduction <maximumf>, %10, %cst_3 [1] : vector<8x8xf32> to vector<8xf32>
    %12 = vector.shape_cast %11 : vector<8xf32> to vector<8x1xf32>
    %13 = vector.broadcast %12 : vector<8x1xf32> to vector<8x8xf32>
    %14 = arith.subf %10, %13 : vector<8x8xf32>
    %15 = math.exp %14 : vector<8x8xf32>
    %cst_4 = arith.constant dense<0.000000e+00> : vector<8xf32>
    %16 = vector.multi_reduction <add>, %15, %cst_4 [1] : vector<8x8xf32> to vector<8xf32>
    %17 = vector.shape_cast %16 : vector<8xf32> to vector<8x1xf32>
    %cst_5 = arith.constant dense<0.000000e+00> : vector<8x16xf32>
    %18 = tpu.matmul %15, %9, %cst_5 {dimension_numbers = #tpu.dot_dimension_numbers<[1], [0], [0], [1], [0, 0, 1, 1], [], []>} : vector<8x8xf32>, vector<8x16xf32>, vector<8x16xf32> -> vector<8x16xf32>
    %19 = tpu.reciprocal %17 {approx = true} : vector<8x1xf32> -> vector<8x1xf32>
    %20 = vector.broadcast %19 : vector<8x1xf32> to vector<8x16xf32>
    %21 = arith.mulf %18, %20 : vector<8x16xf32>
    %22 = vector.extract_strided_slice %2 {offsets = [0, 16], sizes = [8, 16], strides = [1, 1]} : vector<8x128xf32> to vector<8x16xf32>
    %cst_6 = arith.constant 2.500000e-01 : f32
    %23 = vector.broadcast %cst_6 : f32 to vector<8x16xf32>
    %24 = arith.mulf %22, %23 : vector<8x16xf32>
    %25 = vector.extract_strided_slice %3 {offsets = [0, 16], sizes = [8, 16], strides = [1, 1]} : vector<8x128xf32> to vector<8x16xf32>
    %26 = vector.extract_strided_slice %4 {offsets = [0, 16], sizes = [8, 16], strides = [1, 1]} : vector<8x128xf32> to vector<8x16xf32>
    %cst_7 = arith.constant dense<0.000000e+00> : vector<8x8xf32>
    %27 = tpu.matmul %24, %25, %cst_7 {dimension_numbers = #tpu.dot_dimension_numbers<[1], [1], [0], [0], [0, 0, 1, 0], [], []>} : vector<8x16xf32>, vector<8x16xf32>, vector<8x8xf32> -> vector<8x8xf32>
    %cst_8 = arith.constant dense<0xFF800000> : vector<8xf32>
    %28 = vector.multi_reduction <maximumf>, %27, %cst_8 [1] : vector<8x8xf32> to vector<8xf32>
    %29 = vector.shape_cast %28 : vector<8xf32> to vector<8x1xf32>
    %30 = vector.broadcast %29 : vector<8x1xf32> to vector<8x8xf32>
    %31 = arith.subf %27, %30 : vector<8x8xf32>
    %32 = math.exp %31 : vector<8x8xf32>
    %cst_9 = arith.constant dense<0.000000e+00> : vector<8xf32>
    %33 = vector.multi_reduction <add>, %32, %cst_9 [1] : vector<8x8xf32> to vector<8xf32>
    %34 = vector.shape_cast %33 : vector<8xf32> to vector<8x1xf32>
    %cst_10 = arith.constant dense<0.000000e+00> : vector<8x16xf32>
    %35 = tpu.matmul %32, %26, %cst_10 {dimension_numbers = #tpu.dot_dimension_numbers<[1], [0], [0], [1], [0, 0, 1, 1], [], []>} : vector<8x8xf32>, vector<8x16xf32>, vector<8x16xf32> -> vector<8x16xf32>
    %36 = tpu.reciprocal %34 {approx = true} : vector<8x1xf32> -> vector<8x1xf32>
    %37 = vector.broadcast %36 : vector<8x1xf32> to vector<8x16xf32>
    %38 = arith.mulf %35, %37 : vector<8x16xf32>
    %39 = vector.extract_strided_slice %2 {offsets = [0, 32], sizes = [8, 16], strides = [1, 1]} : vector<8x128xf32> to vector<8x16xf32>
    %cst_11 = arith.constant 2.500000e-01 : f32
    %40 = vector.broadcast %cst_11 : f32 to vector<8x16xf32>
    %41 = arith.mulf %39, %40 : vector<8x16xf32>
    %42 = vector.extract_strided_slice %3 {offsets = [0, 32], sizes = [8, 16], strides = [1, 1]} : vector<8x128xf32> to vector<8x16xf32>
    %43 = vector.extract_strided_slice %4 {offsets = [0, 32], sizes = [8, 16], strides = [1, 1]} : vector<8x128xf32> to vector<8x16xf32>
    %cst_12 = arith.constant dense<0.000000e+00> : vector<8x8xf32>
    %44 = tpu.matmul %41, %42, %cst_12 {dimension_numbers = #tpu.dot_dimension_numbers<[1], [1], [0], [0], [0, 0, 1, 0], [], []>} : vector<8x16xf32>, vector<8x16xf32>, vector<8x8xf32> -> vector<8x8xf32>
    %cst_13 = arith.constant dense<0xFF800000> : vector<8xf32>
    %45 = vector.multi_reduction <maximumf>, %44, %cst_13 [1] : vector<8x8xf32> to vector<8xf32>
    %46 = vector.shape_cast %45 : vector<8xf32> to vector<8x1xf32>
    %47 = vector.broadcast %46 : vector<8x1xf32> to vector<8x8xf32>
    %48 = arith.subf %44, %47 : vector<8x8xf32>
    %49 = math.exp %48 : vector<8x8xf32>
    %cst_14 = arith.constant dense<0.000000e+00> : vector<8xf32>
    %50 = vector.multi_reduction <add>, %49, %cst_14 [1] : vector<8x8xf32> to vector<8xf32>
    %51 = vector.shape_cast %50 : vector<8xf32> to vector<8x1xf32>
    %cst_15 = arith.constant dense<0.000000e+00> : vector<8x16xf32>
    %52 = tpu.matmul %49, %43, %cst_15 {dimension_numbers = #tpu.dot_dimension_numbers<[1], [0], [0], [1], [0, 0, 1, 1], [], []>} : vector<8x8xf32>, vector<8x16xf32>, vector<8x16xf32> -> vector<8x16xf32>
    %53 = tpu.reciprocal %51 {approx = true} : vector<8x1xf32> -> vector<8x1xf32>
    %54 = vector.broadcast %53 : vector<8x1xf32> to vector<8x16xf32>
    %55 = arith.mulf %52, %54 : vector<8x16xf32>
    %56 = vector.extract_strided_slice %2 {offsets = [0, 48], sizes = [8, 16], strides = [1, 1]} : vector<8x128xf32> to vector<8x16xf32>
    %cst_16 = arith.constant 2.500000e-01 : f32
    %57 = vector.broadcast %cst_16 : f32 to vector<8x16xf32>
    %58 = arith.mulf %56, %57 : vector<8x16xf32>
    %59 = vector.extract_strided_slice %3 {offsets = [0, 48], sizes = [8, 16], strides = [1, 1]} : vector<8x128xf32> to vector<8x16xf32>
    %60 = vector.extract_strided_slice %4 {offsets = [0, 48], sizes = [8, 16], strides = [1, 1]} : vector<8x128xf32> to vector<8x16xf32>
    %cst_17 = arith.constant dense<0.000000e+00> : vector<8x8xf32>
    %61 = tpu.matmul %58, %59, %cst_17 {dimension_numbers = #tpu.dot_dimension_numbers<[1], [1], [0], [0], [0, 0, 1, 0], [], []>} : vector<8x16xf32>, vector<8x16xf32>, vector<8x8xf32> -> vector<8x8xf32>
    %cst_18 = arith.constant dense<0xFF800000> : vector<8xf32>
    %62 = vector.multi_reduction <maximumf>, %61, %cst_18 [1] : vector<8x8xf32> to vector<8xf32>
    %63 = vector.shape_cast %62 : vector<8xf32> to vector<8x1xf32>
    %64 = vector.broadcast %63 : vector<8x1xf32> to vector<8x8xf32>
    %65 = arith.subf %61, %64 : vector<8x8xf32>
    %66 = math.exp %65 : vector<8x8xf32>
    %cst_19 = arith.constant dense<0.000000e+00> : vector<8xf32>
    %67 = vector.multi_reduction <add>, %66, %cst_19 [1] : vector<8x8xf32> to vector<8xf32>
    %68 = vector.shape_cast %67 : vector<8xf32> to vector<8x1xf32>
    %cst_20 = arith.constant dense<0.000000e+00> : vector<8x16xf32>
    %69 = tpu.matmul %66, %60, %cst_20 {dimension_numbers = #tpu.dot_dimension_numbers<[1], [0], [0], [1], [0, 0, 1, 1], [], []>} : vector<8x8xf32>, vector<8x16xf32>, vector<8x16xf32> -> vector<8x16xf32>
    %70 = tpu.reciprocal %68 {approx = true} : vector<8x1xf32> -> vector<8x1xf32>
    %71 = vector.broadcast %70 : vector<8x1xf32> to vector<8x16xf32>
    %72 = arith.mulf %69, %71 : vector<8x16xf32>
    %73 = vector.extract_strided_slice %2 {offsets = [0, 64], sizes = [8, 16], strides = [1, 1]} : vector<8x128xf32> to vector<8x16xf32>
    %cst_21 = arith.constant 2.500000e-01 : f32
    %74 = vector.broadcast %cst_21 : f32 to vector<8x16xf32>
    %75 = arith.mulf %73, %74 : vector<8x16xf32>
    %76 = vector.extract_strided_slice %3 {offsets = [0, 64], sizes = [8, 16], strides = [1, 1]} : vector<8x128xf32> to vector<8x16xf32>
    %77 = vector.extract_strided_slice %4 {offsets = [0, 64], sizes = [8, 16], strides = [1, 1]} : vector<8x128xf32> to vector<8x16xf32>
    %cst_22 = arith.constant dense<0.000000e+00> : vector<8x8xf32>
    %78 = tpu.matmul %75, %76, %cst_22 {dimension_numbers = #tpu.dot_dimension_numbers<[1], [1], [0], [0], [0, 0, 1, 0], [], []>} : vector<8x16xf32>, vector<8x16xf32>, vector<8x8xf32> -> vector<8x8xf32>
    %cst_23 = arith.constant dense<0xFF800000> : vector<8xf32>
    %79 = vector.multi_reduction <maximumf>, %78, %cst_23 [1] : vector<8x8xf32> to vector<8xf32>
    %80 = vector.shape_cast %79 : vector<8xf32> to vector<8x1xf32>
    %81 = vector.broadcast %80 : vector<8x1xf32> to vector<8x8xf32>
    %82 = arith.subf %78, %81 : vector<8x8xf32>
    %83 = math.exp %82 : vector<8x8xf32>
    %cst_24 = arith.constant dense<0.000000e+00> : vector<8xf32>
    %84 = vector.multi_reduction <add>, %83, %cst_24 [1] : vector<8x8xf32> to vector<8xf32>
    %85 = vector.shape_cast %84 : vector<8xf32> to vector<8x1xf32>
    %cst_25 = arith.constant dense<0.000000e+00> : vector<8x16xf32>
    %86 = tpu.matmul %83, %77, %cst_25 {dimension_numbers = #tpu.dot_dimension_numbers<[1], [0], [0], [1], [0, 0, 1, 1], [], []>} : vector<8x8xf32>, vector<8x16xf32>, vector<8x16xf32> -> vector<8x16xf32>
    %87 = tpu.reciprocal %85 {approx = true} : vector<8x1xf32> -> vector<8x1xf32>
    %88 = vector.broadcast %87 : vector<8x1xf32> to vector<8x16xf32>
    %89 = arith.mulf %86, %88 : vector<8x16xf32>
    %90 = vector.extract_strided_slice %2 {offsets = [0, 80], sizes = [8, 16], strides = [1, 1]} : vector<8x128xf32> to vector<8x16xf32>
    %cst_26 = arith.constant 2.500000e-01 : f32
    %91 = vector.broadcast %cst_26 : f32 to vector<8x16xf32>
    %92 = arith.mulf %90, %91 : vector<8x16xf32>
    %93 = vector.extract_strided_slice %3 {offsets = [0, 80], sizes = [8, 16], strides = [1, 1]} : vector<8x128xf32> to vector<8x16xf32>
    %94 = vector.extract_strided_slice %4 {offsets = [0, 80], sizes = [8, 16], strides = [1, 1]} : vector<8x128xf32> to vector<8x16xf32>
    %cst_27 = arith.constant dense<0.000000e+00> : vector<8x8xf32>
    %95 = tpu.matmul %92, %93, %cst_27 {dimension_numbers = #tpu.dot_dimension_numbers<[1], [1], [0], [0], [0, 0, 1, 0], [], []>} : vector<8x16xf32>, vector<8x16xf32>, vector<8x8xf32> -> vector<8x8xf32>
    %cst_28 = arith.constant dense<0xFF800000> : vector<8xf32>
    %96 = vector.multi_reduction <maximumf>, %95, %cst_28 [1] : vector<8x8xf32> to vector<8xf32>
    %97 = vector.shape_cast %96 : vector<8xf32> to vector<8x1xf32>
    %98 = vector.broadcast %97 : vector<8x1xf32> to vector<8x8xf32>
    %99 = arith.subf %95, %98 : vector<8x8xf32>
    %100 = math.exp %99 : vector<8x8xf32>
    %cst_29 = arith.constant dense<0.000000e+00> : vector<8xf32>
    %101 = vector.multi_reduction <add>, %100, %cst_29 [1] : vector<8x8xf32> to vector<8xf32>
    %102 = vector.shape_cast %101 : vector<8xf32> to vector<8x1xf32>
    %cst_30 = arith.constant dense<0.000000e+00> : vector<8x16xf32>
    %103 = tpu.matmul %100, %94, %cst_30 {dimension_numbers = #tpu.dot_dimension_numbers<[1], [0], [0], [1], [0, 0, 1, 1], [], []>} : vector<8x8xf32>, vector<8x16xf32>, vector<8x16xf32> -> vector<8x16xf32>
    %104 = tpu.reciprocal %102 {approx = true} : vector<8x1xf32> -> vector<8x1xf32>
    %105 = vector.broadcast %104 : vector<8x1xf32> to vector<8x16xf32>
    %106 = arith.mulf %103, %105 : vector<8x16xf32>
    %107 = vector.extract_strided_slice %2 {offsets = [0, 96], sizes = [8, 16], strides = [1, 1]} : vector<8x128xf32> to vector<8x16xf32>
    %cst_31 = arith.constant 2.500000e-01 : f32
    %108 = vector.broadcast %cst_31 : f32 to vector<8x16xf32>
    %109 = arith.mulf %107, %108 : vector<8x16xf32>
    %110 = vector.extract_strided_slice %3 {offsets = [0, 96], sizes = [8, 16], strides = [1, 1]} : vector<8x128xf32> to vector<8x16xf32>
    %111 = vector.extract_strided_slice %4 {offsets = [0, 96], sizes = [8, 16], strides = [1, 1]} : vector<8x128xf32> to vector<8x16xf32>
    %cst_32 = arith.constant dense<0.000000e+00> : vector<8x8xf32>
    %112 = tpu.matmul %109, %110, %cst_32 {dimension_numbers = #tpu.dot_dimension_numbers<[1], [1], [0], [0], [0, 0, 1, 0], [], []>} : vector<8x16xf32>, vector<8x16xf32>, vector<8x8xf32> -> vector<8x8xf32>
    %cst_33 = arith.constant dense<0xFF800000> : vector<8xf32>
    %113 = vector.multi_reduction <maximumf>, %112, %cst_33 [1] : vector<8x8xf32> to vector<8xf32>
    %114 = vector.shape_cast %113 : vector<8xf32> to vector<8x1xf32>
    %115 = vector.broadcast %114 : vector<8x1xf32> to vector<8x8xf32>
    %116 = arith.subf %112, %115 : vector<8x8xf32>
    %117 = math.exp %116 : vector<8x8xf32>
    %cst_34 = arith.constant dense<0.000000e+00> : vector<8xf32>
    %118 = vector.multi_reduction <add>, %117, %cst_34 [1] : vector<8x8xf32> to vector<8xf32>
    %119 = vector.shape_cast %118 : vector<8xf32> to vector<8x1xf32>
    %cst_35 = arith.constant dense<0.000000e+00> : vector<8x16xf32>
    %120 = tpu.matmul %117, %111, %cst_35 {dimension_numbers = #tpu.dot_dimension_numbers<[1], [0], [0], [1], [0, 0, 1, 1], [], []>} : vector<8x8xf32>, vector<8x16xf32>, vector<8x16xf32> -> vector<8x16xf32>
    %121 = tpu.reciprocal %119 {approx = true} : vector<8x1xf32> -> vector<8x1xf32>
    %122 = vector.broadcast %121 : vector<8x1xf32> to vector<8x16xf32>
    %123 = arith.mulf %120, %122 : vector<8x16xf32>
    %124 = vector.extract_strided_slice %2 {offsets = [0, 112], sizes = [8, 16], strides = [1, 1]} : vector<8x128xf32> to vector<8x16xf32>
    %cst_36 = arith.constant 2.500000e-01 : f32
    %125 = vector.broadcast %cst_36 : f32 to vector<8x16xf32>
    %126 = arith.mulf %124, %125 : vector<8x16xf32>
    %127 = vector.extract_strided_slice %3 {offsets = [0, 112], sizes = [8, 16], strides = [1, 1]} : vector<8x128xf32> to vector<8x16xf32>
    %128 = vector.extract_strided_slice %4 {offsets = [0, 112], sizes = [8, 16], strides = [1, 1]} : vector<8x128xf32> to vector<8x16xf32>
    %cst_37 = arith.constant dense<0.000000e+00> : vector<8x8xf32>
    %129 = tpu.matmul %126, %127, %cst_37 {dimension_numbers = #tpu.dot_dimension_numbers<[1], [1], [0], [0], [0, 0, 1, 0], [], []>} : vector<8x16xf32>, vector<8x16xf32>, vector<8x8xf32> -> vector<8x8xf32>
    %cst_38 = arith.constant dense<0xFF800000> : vector<8xf32>
    %130 = vector.multi_reduction <maximumf>, %129, %cst_38 [1] : vector<8x8xf32> to vector<8xf32>
    %131 = vector.shape_cast %130 : vector<8xf32> to vector<8x1xf32>
    %132 = vector.broadcast %131 : vector<8x1xf32> to vector<8x8xf32>
    %133 = arith.subf %129, %132 : vector<8x8xf32>
    %134 = math.exp %133 : vector<8x8xf32>
    %cst_39 = arith.constant dense<0.000000e+00> : vector<8xf32>
    %135 = vector.multi_reduction <add>, %134, %cst_39 [1] : vector<8x8xf32> to vector<8xf32>
    %136 = vector.shape_cast %135 : vector<8xf32> to vector<8x1xf32>
    %cst_40 = arith.constant dense<0.000000e+00> : vector<8x16xf32>
    %137 = tpu.matmul %134, %128, %cst_40 {dimension_numbers = #tpu.dot_dimension_numbers<[1], [0], [0], [1], [0, 0, 1, 1], [], []>} : vector<8x8xf32>, vector<8x16xf32>, vector<8x16xf32> -> vector<8x16xf32>
    %138 = tpu.reciprocal %136 {approx = true} : vector<8x1xf32> -> vector<8x1xf32>
    %139 = vector.broadcast %138 : vector<8x1xf32> to vector<8x16xf32>
    %140 = arith.mulf %137, %139 : vector<8x16xf32>
    %141 = tpu.concatenate %21, %38, %55, %72, %89, %106, %123, %140 in 1 : vector<8x16xf32>, vector<8x16xf32>, vector<8x16xf32>, vector<8x16xf32>, vector<8x16xf32>, vector<8x16xf32>, vector<8x16xf32>, vector<8x16xf32> -> vector<8x128xf32>
    %c0_41 = arith.constant 0 : index
    %c0_42 = arith.constant 0 : index
    %c0_43 = arith.constant 0 : index
    %142 = vector.load %arg2[%c0_41, %c0_42, %c0_43] : memref<1x8x128xf32, #tpu.memory_space<vmem>>, vector<1x8x128xf32>
    %143 = vector.shape_cast %142 : vector<1x8x128xf32> to vector<8x128xf32>
    %144 = vector.shape_cast %141 : vector<8x128xf32> to vector<1x8x128xf32>
    tpu.vector_store %arg2[%c0_41, %c0_42, %c0_43], %144 {strides = array<i32>} : memref<1x8x128xf32, #tpu.memory_space<vmem>>, vector<1x8x128xf32>,
    return
  }
  func.func @transform_0(%arg0: i32) -> (i32, i32, i32) {
    %c0_i32 = arith.constant 0 : i32
    %c0_i32_0 = arith.constant 0 : i32
    %c0_i32_1 = arith.constant 0 : i32
    return %arg0, %c0_i32, %c0_i32_0 : i32, i32, i32
  }
  func.func @transform_1(%arg0: i32) -> (i32, i32, i32) {
    %c0_i32 = arith.constant 0 : i32
    %c0_i32_0 = arith.constant 0 : i32
    %c0_i32_1 = arith.constant 0 : i32
    return %arg0, %c0_i32, %c0_i32_0 : i32, i32, i32
  }
}

module attributes {stable_mosaic.version = 11 : i64} {
  func.func @_linear_kernel(%arg0: i32, %arg1: i32, %arg2: i32, %arg3: memref<16x128xf32, #tpu.memory_space<vmem>>, %arg4: memref<128x128xf32, #tpu.memory_space<vmem>>, %arg5: memref<1x128xf32, #tpu.memory_space<vmem>>, %arg6: memref<16x128xf32, #tpu.memory_space<vmem>>, %arg7: memref<16x128xf32, #tpu.memory_space<vmem>>) attributes {dimension_semantics = [#tpu.dimension_semantics<parallel>, #tpu.dimension_semantics<parallel>, #tpu.dimension_semantics<arbitrary>], iteration_bounds = array<i64: 1, 1, 1>, scalar_prefetch = 0 : i64, scratch_operands = 1 : i64, tpu.core_type = #tpu.core_type<tc>, window_params = [{transform_indices = @transform_0, window_bounds = array<i64: 16, 128>}, {transform_indices = @transform_1, window_bounds = array<i64: 128, 128>}, {transform_indices = @transform_2, window_bounds = array<i64: 1, 128>}, {transform_indices = @transform_3, window_bounds = array<i64: 16, 128>}]} {
    %c0_i32 = arith.constant 0 : i32
    %0 = arith.cmpi eq, %arg2, %c0_i32 : i32
    %1 = arith.extui %0 : i1 to i32
    %c0_i32_0 = arith.constant 0 : i32
    %2 = arith.cmpi ne, %1, %c0_i32_0 : i32
    scf.if %2 {
      %cst_10 = arith.constant 0.000000e+00 : f32
      %12 = vector.broadcast %cst_10 : f32 to vector<16x128xf32>
      %c0_11 = arith.constant 0 : index
      %c0_12 = arith.constant 0 : index
      %13 = vector.load %arg7[%c0_11, %c0_12] : memref<16x128xf32, #tpu.memory_space<vmem>>, vector<16x128xf32>
      tpu.vector_store %arg7[%c0_11, %c0_12], %12 {strides = array<i32>} : memref<16x128xf32, #tpu.memory_space<vmem>>, vector<16x128xf32>,
    } else {
    }
    %c0 = arith.constant 0 : index
    %c0_1 = arith.constant 0 : index
    %3 = vector.load %arg7[%c0, %c0_1] : memref<16x128xf32, #tpu.memory_space<vmem>>, vector<16x128xf32>
    %c0_2 = arith.constant 0 : index
    %c0_3 = arith.constant 0 : index
    %4 = vector.load %arg3[%c0_2, %c0_3] : memref<16x128xf32, #tpu.memory_space<vmem>>, vector<16x128xf32>
    %c0_4 = arith.constant 0 : index
    %c0_5 = arith.constant 0 : index
    %5 = vector.load %arg4[%c0_4, %c0_5] : memref<128x128xf32, #tpu.memory_space<vmem>>, vector<128x128xf32>
    %cst = arith.constant dense<0.000000e+00> : vector<16x128xf32>
    %6 = tpu.matmul %4, %5, %cst {dimension_numbers = #tpu.dot_dimension_numbers<[1], [0], [0], [1], [0, 0, 1, 1], [], []>} : vector<16x128xf32>, vector<128x128xf32>, vector<16x128xf32> -> vector<16x128xf32>
    %7 = arith.addf %3, %6 : vector<16x128xf32>
    %c0_6 = arith.constant 0 : index
    %c0_7 = arith.constant 0 : index
    %8 = vector.load %arg7[%c0_6, %c0_7] : memref<16x128xf32, #tpu.memory_space<vmem>>, vector<16x128xf32>
    tpu.vector_store %arg7[%c0_6, %c0_7], %7 {strides = array<i32>} : memref<16x128xf32, #tpu.memory_space<vmem>>, vector<16x128xf32>,
    %c0_i32_8 = arith.constant 0 : i32
    %9 = arith.cmpi eq, %arg2, %c0_i32_8 : i32
    %10 = arith.extui %9 : i1 to i32
    %c0_i32_9 = arith.constant 0 : i32
    %11 = arith.cmpi ne, %10, %c0_i32_9 : i32
    scf.if %11 {
      %c0_10 = arith.constant 0 : index
      %c0_11 = arith.constant 0 : index
      %12 = vector.load %arg7[%c0_10, %c0_11] : memref<16x128xf32, #tpu.memory_space<vmem>>, vector<16x128xf32>
      %c0_12 = arith.constant 0 : index
      %c0_13 = arith.constant 0 : index
      %13 = vector.load %arg5[%c0_12, %c0_13] : memref<1x128xf32, #tpu.memory_space<vmem>>, vector<1x128xf32>
      %14 = vector.broadcast %13 : vector<1x128xf32> to vector<16x128xf32>
      %15 = arith.addf %12, %14 : vector<16x128xf32>
      %c0_14 = arith.constant 0 : index
      %c0_15 = arith.constant 0 : index
      %16 = vector.load %arg6[%c0_14, %c0_15] : memref<16x128xf32, #tpu.memory_space<vmem>>, vector<16x128xf32>
      tpu.vector_store %arg6[%c0_14, %c0_15], %15 {strides = array<i32>} : memref<16x128xf32, #tpu.memory_space<vmem>>, vector<16x128xf32>,
    } else {
    }
    return
  }
  func.func @transform_0(%arg0: i32, %arg1: i32, %arg2: i32) -> (i32, i32) {
    %c0_i32 = arith.constant 0 : i32
    return %arg0, %arg2 : i32, i32
  }
  func.func @transform_1(%arg0: i32, %arg1: i32, %arg2: i32) -> (i32, i32) {
    %c0_i32 = arith.constant 0 : i32
    return %arg2, %arg1 : i32, i32
  }
  func.func @transform_2(%arg0: i32, %arg1: i32, %arg2: i32) -> (i32, i32) {
    %c0_i32 = arith.constant 0 : i32
    %c0_i32_0 = arith.constant 0 : i32
    return %c0_i32, %arg1 : i32, i32
  }
  func.func @transform_3(%arg0: i32, %arg1: i32, %arg2: i32) -> (i32, i32) {
    %c0_i32 = arith.constant 0 : i32
    return %arg0, %arg1 : i32, i32
  }
}

module attributes {stable_mosaic.version = 11 : i64} {
  func.func @_add_layernorm_kernel(%arg0: i32, %arg1: memref<16x128xf32, #tpu.memory_space<vmem>>, %arg2: memref<16x128xf32, #tpu.memory_space<vmem>>, %arg3: memref<1x128xf32, #tpu.memory_space<vmem>>, %arg4: memref<1x128xf32, #tpu.memory_space<vmem>>, %arg5: memref<16x128xf32, #tpu.memory_space<vmem>>) attributes {dimension_semantics = [#tpu.dimension_semantics<parallel>], iteration_bounds = array<i64: 1>, scalar_prefetch = 0 : i64, scratch_operands = 0 : i64, tpu.core_type = #tpu.core_type<tc>, window_params = [{transform_indices = @transform_0, window_bounds = array<i64: 16, 128>}, {transform_indices = @transform_1, window_bounds = array<i64: 16, 128>}, {pipeline_mode = #tpu.pipeline_mode<synchronous>, transform_indices = @transform_2, window_bounds = array<i64: 1, 128>}, {pipeline_mode = #tpu.pipeline_mode<synchronous>, transform_indices = @transform_3, window_bounds = array<i64: 1, 128>}, {transform_indices = @transform_4, window_bounds = array<i64: 16, 128>}]} {
    %c0 = arith.constant 0 : index
    %c0_0 = arith.constant 0 : index
    %0 = vector.load %arg1[%c0, %c0_0] : memref<16x128xf32, #tpu.memory_space<vmem>>, vector<16x128xf32>
    %c0_1 = arith.constant 0 : index
    %c0_2 = arith.constant 0 : index
    %1 = vector.load %arg2[%c0_1, %c0_2] : memref<16x128xf32, #tpu.memory_space<vmem>>, vector<16x128xf32>
    %2 = arith.addf %0, %1 : vector<16x128xf32>
    %cst = arith.constant dense<0.000000e+00> : vector<16xf32>
    %3 = vector.multi_reduction <add>, %2, %cst [1] : vector<16x128xf32> to vector<16xf32>
    %4 = vector.shape_cast %3 : vector<16xf32> to vector<16x1xf32>
    %cst_3 = arith.constant 1.280000e+02 : f32
    %5 = vector.broadcast %cst_3 : f32 to vector<16x1xf32>
    %6 = arith.divf %4, %5 : vector<16x1xf32>
    %7 = vector.broadcast %6 : vector<16x1xf32> to vector<16x128xf32>
    %8 = arith.subf %2, %7 : vector<16x128xf32>
    %9 = arith.mulf %8, %8 : vector<16x128xf32>
    %cst_4 = arith.constant dense<0.000000e+00> : vector<16xf32>
    %10 = vector.multi_reduction <add>, %9, %cst_4 [1] : vector<16x128xf32> to vector<16xf32>
    %11 = vector.shape_cast %10 : vector<16xf32> to vector<16x1xf32>
    %cst_5 = arith.constant 1.280000e+02 : f32
    %12 = vector.broadcast %cst_5 : f32 to vector<16x1xf32>
    %13 = arith.divf %11, %12 : vector<16x1xf32>
    %14 = vector.broadcast %6 : vector<16x1xf32> to vector<16x128xf32>
    %15 = arith.subf %2, %14 : vector<16x128xf32>
    %cst_6 = arith.constant 9.99999974E-6 : f32
    %16 = vector.broadcast %cst_6 : f32 to vector<16x1xf32>
    %17 = arith.addf %13, %16 : vector<16x1xf32>
    %18 = math.rsqrt %17 : vector<16x1xf32>
    %19 = vector.broadcast %18 : vector<16x1xf32> to vector<16x128xf32>
    %20 = arith.mulf %15, %19 : vector<16x128xf32>
    %c0_7 = arith.constant 0 : index
    %c0_8 = arith.constant 0 : index
    %21 = vector.load %arg3[%c0_7, %c0_8] : memref<1x128xf32, #tpu.memory_space<vmem>>, vector<1x128xf32>
    %22 = vector.broadcast %21 : vector<1x128xf32> to vector<16x128xf32>
    %23 = arith.mulf %22, %20 : vector<16x128xf32>
    %c0_9 = arith.constant 0 : index
    %c0_10 = arith.constant 0 : index
    %24 = vector.load %arg4[%c0_9, %c0_10] : memref<1x128xf32, #tpu.memory_space<vmem>>, vector<1x128xf32>
    %25 = vector.broadcast %24 : vector<1x128xf32> to vector<16x128xf32>
    %26 = arith.addf %23, %25 : vector<16x128xf32>
    %c0_11 = arith.constant 0 : index
    %c0_12 = arith.constant 0 : index
    %27 = vector.load %arg5[%c0_11, %c0_12] : memref<16x128xf32, #tpu.memory_space<vmem>>, vector<16x128xf32>
    tpu.vector_store %arg5[%c0_11, %c0_12], %26 {strides = array<i32>} : memref<16x128xf32, #tpu.memory_space<vmem>>, vector<16x128xf32>,
    return
  }
  func.func @transform_0(%arg0: i32) -> (i32, i32) {
    %c0_i32 = arith.constant 0 : i32
    %c0_i32_0 = arith.constant 0 : i32
    return %arg0, %c0_i32 : i32, i32
  }
  func.func @transform_1(%arg0: i32) -> (i32, i32) {
    %c0_i32 = arith.constant 0 : i32
    %c0_i32_0 = arith.constant 0 : i32
    return %arg0, %c0_i32 : i32, i32
  }
  func.func @transform_2(%arg0: i32) -> (i32, i32) {
    %c0_i32 = arith.constant 0 : i32
    %c0_i32_0 = arith.constant 0 : i32
    %c0_i32_1 = arith.constant 0 : i32
    return %c0_i32, %c0_i32_0 : i32, i32
  }
  func.func @transform_3(%arg0: i32) -> (i32, i32) {
    %c0_i32 = arith.constant 0 : i32
    %c0_i32_0 = arith.constant 0 : i32
    %c0_i32_1 = arith.constant 0 : i32
    return %c0_i32, %c0_i32_0 : i32, i32
  }
  func.func @transform_4(%arg0: i32) -> (i32, i32) {
    %c0_i32 = arith.constant 0 : i32
    %c0_i32_0 = arith.constant 0 : i32
    return %arg0, %c0_i32 : i32, i32
  }
}

module attributes {stable_mosaic.version = 11 : i64} {
  func.func @_linear_kernel(%arg0: i32, %arg1: i32, %arg2: i32, %arg3: memref<16x256xf32, #tpu.memory_space<vmem>>, %arg4: memref<256x128xf32, #tpu.memory_space<vmem>>, %arg5: memref<1x128xf32, #tpu.memory_space<vmem>>, %arg6: memref<16x128xf32, #tpu.memory_space<vmem>>, %arg7: memref<16x128xf32, #tpu.memory_space<vmem>>) attributes {dimension_semantics = [#tpu.dimension_semantics<parallel>, #tpu.dimension_semantics<parallel>, #tpu.dimension_semantics<arbitrary>], iteration_bounds = array<i64: 1, 1, 1>, scalar_prefetch = 0 : i64, scratch_operands = 1 : i64, tpu.core_type = #tpu.core_type<tc>, window_params = [{transform_indices = @transform_0, window_bounds = array<i64: 16, 256>}, {transform_indices = @transform_1, window_bounds = array<i64: 256, 128>}, {transform_indices = @transform_2, window_bounds = array<i64: 1, 128>}, {transform_indices = @transform_3, window_bounds = array<i64: 16, 128>}]} {
    %c0_i32 = arith.constant 0 : i32
    %0 = arith.cmpi eq, %arg2, %c0_i32 : i32
    %1 = arith.extui %0 : i1 to i32
    %c0_i32_0 = arith.constant 0 : i32
    %2 = arith.cmpi ne, %1, %c0_i32_0 : i32
    scf.if %2 {
      %cst_10 = arith.constant 0.000000e+00 : f32
      %12 = vector.broadcast %cst_10 : f32 to vector<16x128xf32>
      %c0_11 = arith.constant 0 : index
      %c0_12 = arith.constant 0 : index
      %13 = vector.load %arg7[%c0_11, %c0_12] : memref<16x128xf32, #tpu.memory_space<vmem>>, vector<16x128xf32>
      tpu.vector_store %arg7[%c0_11, %c0_12], %12 {strides = array<i32>} : memref<16x128xf32, #tpu.memory_space<vmem>>, vector<16x128xf32>,
    } else {
    }
    %c0 = arith.constant 0 : index
    %c0_1 = arith.constant 0 : index
    %3 = vector.load %arg7[%c0, %c0_1] : memref<16x128xf32, #tpu.memory_space<vmem>>, vector<16x128xf32>
    %c0_2 = arith.constant 0 : index
    %c0_3 = arith.constant 0 : index
    %4 = vector.load %arg3[%c0_2, %c0_3] : memref<16x256xf32, #tpu.memory_space<vmem>>, vector<16x256xf32>
    %c0_4 = arith.constant 0 : index
    %c0_5 = arith.constant 0 : index
    %5 = vector.load %arg4[%c0_4, %c0_5] : memref<256x128xf32, #tpu.memory_space<vmem>>, vector<256x128xf32>
    %cst = arith.constant dense<0.000000e+00> : vector<16x128xf32>
    %6 = tpu.matmul %4, %5, %cst {dimension_numbers = #tpu.dot_dimension_numbers<[1], [0], [0], [1], [0, 0, 1, 1], [], []>} : vector<16x256xf32>, vector<256x128xf32>, vector<16x128xf32> -> vector<16x128xf32>
    %7 = arith.addf %3, %6 : vector<16x128xf32>
    %c0_6 = arith.constant 0 : index
    %c0_7 = arith.constant 0 : index
    %8 = vector.load %arg7[%c0_6, %c0_7] : memref<16x128xf32, #tpu.memory_space<vmem>>, vector<16x128xf32>
    tpu.vector_store %arg7[%c0_6, %c0_7], %7 {strides = array<i32>} : memref<16x128xf32, #tpu.memory_space<vmem>>, vector<16x128xf32>,
    %c0_i32_8 = arith.constant 0 : i32
    %9 = arith.cmpi eq, %arg2, %c0_i32_8 : i32
    %10 = arith.extui %9 : i1 to i32
    %c0_i32_9 = arith.constant 0 : i32
    %11 = arith.cmpi ne, %10, %c0_i32_9 : i32
    scf.if %11 {
      %c0_10 = arith.constant 0 : index
      %c0_11 = arith.constant 0 : index
      %12 = vector.load %arg7[%c0_10, %c0_11] : memref<16x128xf32, #tpu.memory_space<vmem>>, vector<16x128xf32>
      %c0_12 = arith.constant 0 : index
      %c0_13 = arith.constant 0 : index
      %13 = vector.load %arg5[%c0_12, %c0_13] : memref<1x128xf32, #tpu.memory_space<vmem>>, vector<1x128xf32>
      %14 = vector.broadcast %13 : vector<1x128xf32> to vector<16x128xf32>
      %15 = arith.addf %12, %14 : vector<16x128xf32>
      %c0_14 = arith.constant 0 : index
      %c0_15 = arith.constant 0 : index
      %16 = vector.load %arg6[%c0_14, %c0_15] : memref<16x128xf32, #tpu.memory_space<vmem>>, vector<16x128xf32>
      tpu.vector_store %arg6[%c0_14, %c0_15], %15 {strides = array<i32>} : memref<16x128xf32, #tpu.memory_space<vmem>>, vector<16x128xf32>,
    } else {
    }
    return
  }
  func.func @transform_0(%arg0: i32, %arg1: i32, %arg2: i32) -> (i32, i32) {
    %c0_i32 = arith.constant 0 : i32
    return %arg0, %arg2 : i32, i32
  }
  func.func @transform_1(%arg0: i32, %arg1: i32, %arg2: i32) -> (i32, i32) {
    %c0_i32 = arith.constant 0 : i32
    return %arg2, %arg1 : i32, i32
  }
  func.func @transform_2(%arg0: i32, %arg1: i32, %arg2: i32) -> (i32, i32) {
    %c0_i32 = arith.constant 0 : i32
    %c0_i32_0 = arith.constant 0 : i32
    return %c0_i32, %arg1 : i32, i32
  }
  func.func @transform_3(%arg0: i32, %arg1: i32, %arg2: i32) -> (i32, i32) {
    %c0_i32 = arith.constant 0 : i32
    return %arg0, %arg1 : i32, i32
  }
}

module attributes {stable_mosaic.version = 11 : i64} {
  func.func @_linear_kernel(%arg0: i32, %arg1: i32, %arg2: i32, %arg3: memref<16x128xf32, #tpu.memory_space<vmem>>, %arg4: memref<128x256xf32, #tpu.memory_space<vmem>>, %arg5: memref<1x256xf32, #tpu.memory_space<vmem>>, %arg6: memref<16x256xf32, #tpu.memory_space<vmem>>, %arg7: memref<16x256xf32, #tpu.memory_space<vmem>>) attributes {dimension_semantics = [#tpu.dimension_semantics<parallel>, #tpu.dimension_semantics<parallel>, #tpu.dimension_semantics<arbitrary>], iteration_bounds = array<i64: 1, 1, 1>, scalar_prefetch = 0 : i64, scratch_operands = 1 : i64, tpu.core_type = #tpu.core_type<tc>, window_params = [{transform_indices = @transform_0, window_bounds = array<i64: 16, 128>}, {transform_indices = @transform_1, window_bounds = array<i64: 128, 256>}, {transform_indices = @transform_2, window_bounds = array<i64: 1, 256>}, {transform_indices = @transform_3, window_bounds = array<i64: 16, 256>}]} {
    %c0_i32 = arith.constant 0 : i32
    %0 = arith.cmpi eq, %arg2, %c0_i32 : i32
    %1 = arith.extui %0 : i1 to i32
    %c0_i32_0 = arith.constant 0 : i32
    %2 = arith.cmpi ne, %1, %c0_i32_0 : i32
    scf.if %2 {
      %cst_10 = arith.constant 0.000000e+00 : f32
      %12 = vector.broadcast %cst_10 : f32 to vector<16x256xf32>
      %c0_11 = arith.constant 0 : index
      %c0_12 = arith.constant 0 : index
      %13 = vector.load %arg7[%c0_11, %c0_12] : memref<16x256xf32, #tpu.memory_space<vmem>>, vector<16x256xf32>
      tpu.vector_store %arg7[%c0_11, %c0_12], %12 {strides = array<i32>} : memref<16x256xf32, #tpu.memory_space<vmem>>, vector<16x256xf32>,
    } else {
    }
    %c0 = arith.constant 0 : index
    %c0_1 = arith.constant 0 : index
    %3 = vector.load %arg7[%c0, %c0_1] : memref<16x256xf32, #tpu.memory_space<vmem>>, vector<16x256xf32>
    %c0_2 = arith.constant 0 : index
    %c0_3 = arith.constant 0 : index
    %4 = vector.load %arg3[%c0_2, %c0_3] : memref<16x128xf32, #tpu.memory_space<vmem>>, vector<16x128xf32>
    %c0_4 = arith.constant 0 : index
    %c0_5 = arith.constant 0 : index
    %5 = vector.load %arg4[%c0_4, %c0_5] : memref<128x256xf32, #tpu.memory_space<vmem>>, vector<128x256xf32>
    %cst = arith.constant dense<0.000000e+00> : vector<16x256xf32>
    %6 = tpu.matmul %4, %5, %cst {dimension_numbers = #tpu.dot_dimension_numbers<[1], [0], [0], [1], [0, 0, 1, 1], [], []>} : vector<16x128xf32>, vector<128x256xf32>, vector<16x256xf32> -> vector<16x256xf32>
    %7 = arith.addf %3, %6 : vector<16x256xf32>
    %c0_6 = arith.constant 0 : index
    %c0_7 = arith.constant 0 : index
    %8 = vector.load %arg7[%c0_6, %c0_7] : memref<16x256xf32, #tpu.memory_space<vmem>>, vector<16x256xf32>
    tpu.vector_store %arg7[%c0_6, %c0_7], %7 {strides = array<i32>} : memref<16x256xf32, #tpu.memory_space<vmem>>, vector<16x256xf32>,
    %c0_i32_8 = arith.constant 0 : i32
    %9 = arith.cmpi eq, %arg2, %c0_i32_8 : i32
    %10 = arith.extui %9 : i1 to i32
    %c0_i32_9 = arith.constant 0 : i32
    %11 = arith.cmpi ne, %10, %c0_i32_9 : i32
    scf.if %11 {
      %c0_10 = arith.constant 0 : index
      %c0_11 = arith.constant 0 : index
      %12 = vector.load %arg7[%c0_10, %c0_11] : memref<16x256xf32, #tpu.memory_space<vmem>>, vector<16x256xf32>
      %c0_12 = arith.constant 0 : index
      %c0_13 = arith.constant 0 : index
      %13 = vector.load %arg5[%c0_12, %c0_13] : memref<1x256xf32, #tpu.memory_space<vmem>>, vector<1x256xf32>
      %14 = vector.broadcast %13 : vector<1x256xf32> to vector<16x256xf32>
      %15 = arith.addf %12, %14 : vector<16x256xf32>
      %cst_14 = arith.constant 0.000000e+00 : f32
      %16 = vector.broadcast %cst_14 : f32 to vector<16x256xf32>
      %17 = arith.maximumf %15, %16 : vector<16x256xf32>
      %c0_15 = arith.constant 0 : index
      %c0_16 = arith.constant 0 : index
      %18 = vector.load %arg6[%c0_15, %c0_16] : memref<16x256xf32, #tpu.memory_space<vmem>>, vector<16x256xf32>
      tpu.vector_store %arg6[%c0_15, %c0_16], %17 {strides = array<i32>} : memref<16x256xf32, #tpu.memory_space<vmem>>, vector<16x256xf32>,
    } else {
    }
    return
  }
  func.func @transform_0(%arg0: i32, %arg1: i32, %arg2: i32) -> (i32, i32) {
    %c0_i32 = arith.constant 0 : i32
    return %arg0, %arg2 : i32, i32
  }
  func.func @transform_1(%arg0: i32, %arg1: i32, %arg2: i32) -> (i32, i32) {
    %c0_i32 = arith.constant 0 : i32
    return %arg2, %arg1 : i32, i32
  }
  func.func @transform_2(%arg0: i32, %arg1: i32, %arg2: i32) -> (i32, i32) {
    %c0_i32 = arith.constant 0 : i32
    %c0_i32_0 = arith.constant 0 : i32
    return %c0_i32, %arg1 : i32, i32
  }
  func.func @transform_3(%arg0: i32, %arg1: i32, %arg2: i32) -> (i32, i32) {
    %c0_i32 = arith.constant 0 : i32
    return %arg0, %arg1 : i32, i32
  }
}

module attributes {stable_mosaic.version = 11 : i64} {
  func.func @_linear_kernel(%arg0: i32, %arg1: i32, %arg2: i32, %arg3: memref<16x128xf32, #tpu.memory_space<vmem>>, %arg4: memref<128x128xf32, #tpu.memory_space<vmem>>, %arg5: memref<1x128xf32, #tpu.memory_space<vmem>>, %arg6: memref<16x128xf32, #tpu.memory_space<vmem>>, %arg7: memref<16x128xf32, #tpu.memory_space<vmem>>) attributes {dimension_semantics = [#tpu.dimension_semantics<parallel>, #tpu.dimension_semantics<parallel>, #tpu.dimension_semantics<arbitrary>], iteration_bounds = array<i64: 1, 1, 1>, scalar_prefetch = 0 : i64, scratch_operands = 1 : i64, tpu.core_type = #tpu.core_type<tc>, window_params = [{transform_indices = @transform_0, window_bounds = array<i64: 16, 128>}, {transform_indices = @transform_1, window_bounds = array<i64: 128, 128>}, {transform_indices = @transform_2, window_bounds = array<i64: 1, 128>}, {transform_indices = @transform_3, window_bounds = array<i64: 16, 128>}]} {
    %c0_i32 = arith.constant 0 : i32
    %0 = arith.cmpi eq, %arg2, %c0_i32 : i32
    %1 = arith.extui %0 : i1 to i32
    %c0_i32_0 = arith.constant 0 : i32
    %2 = arith.cmpi ne, %1, %c0_i32_0 : i32
    scf.if %2 {
      %cst_10 = arith.constant 0.000000e+00 : f32
      %12 = vector.broadcast %cst_10 : f32 to vector<16x128xf32>
      %c0_11 = arith.constant 0 : index
      %c0_12 = arith.constant 0 : index
      %13 = vector.load %arg7[%c0_11, %c0_12] : memref<16x128xf32, #tpu.memory_space<vmem>>, vector<16x128xf32>
      tpu.vector_store %arg7[%c0_11, %c0_12], %12 {strides = array<i32>} : memref<16x128xf32, #tpu.memory_space<vmem>>, vector<16x128xf32>,
    } else {
    }
    %c0 = arith.constant 0 : index
    %c0_1 = arith.constant 0 : index
    %3 = vector.load %arg7[%c0, %c0_1] : memref<16x128xf32, #tpu.memory_space<vmem>>, vector<16x128xf32>
    %c0_2 = arith.constant 0 : index
    %c0_3 = arith.constant 0 : index
    %4 = vector.load %arg3[%c0_2, %c0_3] : memref<16x128xf32, #tpu.memory_space<vmem>>, vector<16x128xf32>
    %c0_4 = arith.constant 0 : index
    %c0_5 = arith.constant 0 : index
    %5 = vector.load %arg4[%c0_4, %c0_5] : memref<128x128xf32, #tpu.memory_space<vmem>>, vector<128x128xf32>
    %cst = arith.constant dense<0.000000e+00> : vector<16x128xf32>
    %6 = tpu.matmul %4, %5, %cst {dimension_numbers = #tpu.dot_dimension_numbers<[1], [0], [0], [1], [0, 0, 1, 1], [], []>} : vector<16x128xf32>, vector<128x128xf32>, vector<16x128xf32> -> vector<16x128xf32>
    %7 = arith.addf %3, %6 : vector<16x128xf32>
    %c0_6 = arith.constant 0 : index
    %c0_7 = arith.constant 0 : index
    %8 = vector.load %arg7[%c0_6, %c0_7] : memref<16x128xf32, #tpu.memory_space<vmem>>, vector<16x128xf32>
    tpu.vector_store %arg7[%c0_6, %c0_7], %7 {strides = array<i32>} : memref<16x128xf32, #tpu.memory_space<vmem>>, vector<16x128xf32>,
    %c0_i32_8 = arith.constant 0 : i32
    %9 = arith.cmpi eq, %arg2, %c0_i32_8 : i32
    %10 = arith.extui %9 : i1 to i32
    %c0_i32_9 = arith.constant 0 : i32
    %11 = arith.cmpi ne, %10, %c0_i32_9 : i32
    scf.if %11 {
      %c0_10 = arith.constant 0 : index
      %c0_11 = arith.constant 0 : index
      %12 = vector.load %arg7[%c0_10, %c0_11] : memref<16x128xf32, #tpu.memory_space<vmem>>, vector<16x128xf32>
      %c0_12 = arith.constant 0 : index
      %c0_13 = arith.constant 0 : index
      %13 = vector.load %arg5[%c0_12, %c0_13] : memref<1x128xf32, #tpu.memory_space<vmem>>, vector<1x128xf32>
      %14 = vector.broadcast %13 : vector<1x128xf32> to vector<16x128xf32>
      %15 = arith.addf %12, %14 : vector<16x128xf32>
      %c0_14 = arith.constant 0 : index
      %c0_15 = arith.constant 0 : index
      %16 = vector.load %arg6[%c0_14, %c0_15] : memref<16x128xf32, #tpu.memory_space<vmem>>, vector<16x128xf32>
      tpu.vector_store %arg6[%c0_14, %c0_15], %15 {strides = array<i32>} : memref<16x128xf32, #tpu.memory_space<vmem>>, vector<16x128xf32>,
    } else {
    }
    return
  }
  func.func @transform_0(%arg0: i32, %arg1: i32, %arg2: i32) -> (i32, i32) {
    %c0_i32 = arith.constant 0 : i32
    return %arg0, %arg2 : i32, i32
  }
  func.func @transform_1(%arg0: i32, %arg1: i32, %arg2: i32) -> (i32, i32) {
    %c0_i32 = arith.constant 0 : i32
    return %arg2, %arg1 : i32, i32
  }
  func.func @transform_2(%arg0: i32, %arg1: i32, %arg2: i32) -> (i32, i32) {
    %c0_i32 = arith.constant 0 : i32
    %c0_i32_0 = arith.constant 0 : i32
    return %c0_i32, %arg1 : i32, i32
  }
  func.func @transform_3(%arg0: i32, %arg1: i32, %arg2: i32) -> (i32, i32) {
    %c0_i32 = arith.constant 0 : i32
    return %arg0, %arg1 : i32, i32
  }
}

module attributes {stable_mosaic.version = 11 : i64} {
  func.func @_cross_attention_kernel(%arg0: i32, %arg1: memref<1x8x128xf32, #tpu.memory_space<vmem>>, %arg2: memref<1x8x256xf32, #tpu.memory_space<vmem>>, %arg3: memref<1x8x128xf32, #tpu.memory_space<vmem>>) attributes {dimension_semantics = [#tpu.dimension_semantics<parallel>], iteration_bounds = array<i64: 2>, scalar_prefetch = 0 : i64, scratch_operands = 0 : i64, tpu.core_type = #tpu.core_type<tc>, window_params = [{transform_indices = @transform_0, window_bounds = array<i64: 1, 8, 128>}, {transform_indices = @transform_1, window_bounds = array<i64: 1, 8, 256>}, {transform_indices = @transform_2, window_bounds = array<i64: 1, 8, 128>}]} {
    %c0 = arith.constant 0 : index
    %c0_0 = arith.constant 0 : index
    %c0_1 = arith.constant 0 : index
    %0 = vector.load %arg2[%c0, %c0_0, %c0_1] : memref<1x8x256xf32, #tpu.memory_space<vmem>>, vector<1x8x256xf32>
    %1 = vector.shape_cast %0 : vector<1x8x256xf32> to vector<8x256xf32>
    %c0_2 = arith.constant 0 : index
    %c0_3 = arith.constant 0 : index
    %c0_4 = arith.constant 0 : index
    %2 = vector.load %arg1[%c0_2, %c0_3, %c0_4] : memref<1x8x128xf32, #tpu.memory_space<vmem>>, vector<1x8x128xf32>
    %3 = vector.shape_cast %2 : vector<1x8x128xf32> to vector<8x128xf32>
    %4 = vector.extract_strided_slice %1 {offsets = [0, 0], sizes = [8, 128], strides = [1, 1]} : vector<8x256xf32> to vector<8x128xf32>
    %5 = vector.extract_strided_slice %1 {offsets = [0, 128], sizes = [8, 128], strides = [1, 1]} : vector<8x256xf32> to vector<8x128xf32>
    %6 = vector.extract_strided_slice %3 {offsets = [0, 0], sizes = [8, 16], strides = [1, 1]} : vector<8x128xf32> to vector<8x16xf32>
    %cst = arith.constant 2.500000e-01 : f32
    %7 = vector.broadcast %cst : f32 to vector<8x16xf32>
    %8 = arith.mulf %6, %7 : vector<8x16xf32>
    %9 = vector.extract_strided_slice %4 {offsets = [0, 0], sizes = [8, 16], strides = [1, 1]} : vector<8x128xf32> to vector<8x16xf32>
    %10 = vector.extract_strided_slice %5 {offsets = [0, 0], sizes = [8, 16], strides = [1, 1]} : vector<8x128xf32> to vector<8x16xf32>
    %cst_5 = arith.constant dense<0.000000e+00> : vector<8x8xf32>
    %11 = tpu.matmul %8, %9, %cst_5 {dimension_numbers = #tpu.dot_dimension_numbers<[1], [1], [0], [0], [0, 0, 1, 0], [], []>} : vector<8x16xf32>, vector<8x16xf32>, vector<8x8xf32> -> vector<8x8xf32>
    %cst_6 = arith.constant dense<0xFF800000> : vector<8xf32>
    %12 = vector.multi_reduction <maximumf>, %11, %cst_6 [1] : vector<8x8xf32> to vector<8xf32>
    %13 = vector.shape_cast %12 : vector<8xf32> to vector<8x1xf32>
    %14 = vector.broadcast %13 : vector<8x1xf32> to vector<8x8xf32>
    %15 = arith.subf %11, %14 : vector<8x8xf32>
    %16 = math.exp %15 : vector<8x8xf32>
    %cst_7 = arith.constant dense<0.000000e+00> : vector<8xf32>
    %17 = vector.multi_reduction <add>, %16, %cst_7 [1] : vector<8x8xf32> to vector<8xf32>
    %18 = vector.shape_cast %17 : vector<8xf32> to vector<8x1xf32>
    %cst_8 = arith.constant dense<0.000000e+00> : vector<8x16xf32>
    %19 = tpu.matmul %16, %10, %cst_8 {dimension_numbers = #tpu.dot_dimension_numbers<[1], [0], [0], [1], [0, 0, 1, 1], [], []>} : vector<8x8xf32>, vector<8x16xf32>, vector<8x16xf32> -> vector<8x16xf32>
    %20 = tpu.reciprocal %18 {approx = true} : vector<8x1xf32> -> vector<8x1xf32>
    %21 = vector.broadcast %20 : vector<8x1xf32> to vector<8x16xf32>
    %22 = arith.mulf %19, %21 : vector<8x16xf32>
    %23 = vector.extract_strided_slice %3 {offsets = [0, 16], sizes = [8, 16], strides = [1, 1]} : vector<8x128xf32> to vector<8x16xf32>
    %cst_9 = arith.constant 2.500000e-01 : f32
    %24 = vector.broadcast %cst_9 : f32 to vector<8x16xf32>
    %25 = arith.mulf %23, %24 : vector<8x16xf32>
    %26 = vector.extract_strided_slice %4 {offsets = [0, 16], sizes = [8, 16], strides = [1, 1]} : vector<8x128xf32> to vector<8x16xf32>
    %27 = vector.extract_strided_slice %5 {offsets = [0, 16], sizes = [8, 16], strides = [1, 1]} : vector<8x128xf32> to vector<8x16xf32>
    %cst_10 = arith.constant dense<0.000000e+00> : vector<8x8xf32>
    %28 = tpu.matmul %25, %26, %cst_10 {dimension_numbers = #tpu.dot_dimension_numbers<[1], [1], [0], [0], [0, 0, 1, 0], [], []>} : vector<8x16xf32>, vector<8x16xf32>, vector<8x8xf32> -> vector<8x8xf32>
    %cst_11 = arith.constant dense<0xFF800000> : vector<8xf32>
    %29 = vector.multi_reduction <maximumf>, %28, %cst_11 [1] : vector<8x8xf32> to vector<8xf32>
    %30 = vector.shape_cast %29 : vector<8xf32> to vector<8x1xf32>
    %31 = vector.broadcast %30 : vector<8x1xf32> to vector<8x8xf32>
    %32 = arith.subf %28, %31 : vector<8x8xf32>
    %33 = math.exp %32 : vector<8x8xf32>
    %cst_12 = arith.constant dense<0.000000e+00> : vector<8xf32>
    %34 = vector.multi_reduction <add>, %33, %cst_12 [1] : vector<8x8xf32> to vector<8xf32>
    %35 = vector.shape_cast %34 : vector<8xf32> to vector<8x1xf32>
    %cst_13 = arith.constant dense<0.000000e+00> : vector<8x16xf32>
    %36 = tpu.matmul %33, %27, %cst_13 {dimension_numbers = #tpu.dot_dimension_numbers<[1], [0], [0], [1], [0, 0, 1, 1], [], []>} : vector<8x8xf32>, vector<8x16xf32>, vector<8x16xf32> -> vector<8x16xf32>
    %37 = tpu.reciprocal %35 {approx = true} : vector<8x1xf32> -> vector<8x1xf32>
    %38 = vector.broadcast %37 : vector<8x1xf32> to vector<8x16xf32>
    %39 = arith.mulf %36, %38 : vector<8x16xf32>
    %40 = vector.extract_strided_slice %3 {offsets = [0, 32], sizes = [8, 16], strides = [1, 1]} : vector<8x128xf32> to vector<8x16xf32>
    %cst_14 = arith.constant 2.500000e-01 : f32
    %41 = vector.broadcast %cst_14 : f32 to vector<8x16xf32>
    %42 = arith.mulf %40, %41 : vector<8x16xf32>
    %43 = vector.extract_strided_slice %4 {offsets = [0, 32], sizes = [8, 16], strides = [1, 1]} : vector<8x128xf32> to vector<8x16xf32>
    %44 = vector.extract_strided_slice %5 {offsets = [0, 32], sizes = [8, 16], strides = [1, 1]} : vector<8x128xf32> to vector<8x16xf32>
    %cst_15 = arith.constant dense<0.000000e+00> : vector<8x8xf32>
    %45 = tpu.matmul %42, %43, %cst_15 {dimension_numbers = #tpu.dot_dimension_numbers<[1], [1], [0], [0], [0, 0, 1, 0], [], []>} : vector<8x16xf32>, vector<8x16xf32>, vector<8x8xf32> -> vector<8x8xf32>
    %cst_16 = arith.constant dense<0xFF800000> : vector<8xf32>
    %46 = vector.multi_reduction <maximumf>, %45, %cst_16 [1] : vector<8x8xf32> to vector<8xf32>
    %47 = vector.shape_cast %46 : vector<8xf32> to vector<8x1xf32>
    %48 = vector.broadcast %47 : vector<8x1xf32> to vector<8x8xf32>
    %49 = arith.subf %45, %48 : vector<8x8xf32>
    %50 = math.exp %49 : vector<8x8xf32>
    %cst_17 = arith.constant dense<0.000000e+00> : vector<8xf32>
    %51 = vector.multi_reduction <add>, %50, %cst_17 [1] : vector<8x8xf32> to vector<8xf32>
    %52 = vector.shape_cast %51 : vector<8xf32> to vector<8x1xf32>
    %cst_18 = arith.constant dense<0.000000e+00> : vector<8x16xf32>
    %53 = tpu.matmul %50, %44, %cst_18 {dimension_numbers = #tpu.dot_dimension_numbers<[1], [0], [0], [1], [0, 0, 1, 1], [], []>} : vector<8x8xf32>, vector<8x16xf32>, vector<8x16xf32> -> vector<8x16xf32>
    %54 = tpu.reciprocal %52 {approx = true} : vector<8x1xf32> -> vector<8x1xf32>
    %55 = vector.broadcast %54 : vector<8x1xf32> to vector<8x16xf32>
    %56 = arith.mulf %53, %55 : vector<8x16xf32>
    %57 = vector.extract_strided_slice %3 {offsets = [0, 48], sizes = [8, 16], strides = [1, 1]} : vector<8x128xf32> to vector<8x16xf32>
    %cst_19 = arith.constant 2.500000e-01 : f32
    %58 = vector.broadcast %cst_19 : f32 to vector<8x16xf32>
    %59 = arith.mulf %57, %58 : vector<8x16xf32>
    %60 = vector.extract_strided_slice %4 {offsets = [0, 48], sizes = [8, 16], strides = [1, 1]} : vector<8x128xf32> to vector<8x16xf32>
    %61 = vector.extract_strided_slice %5 {offsets = [0, 48], sizes = [8, 16], strides = [1, 1]} : vector<8x128xf32> to vector<8x16xf32>
    %cst_20 = arith.constant dense<0.000000e+00> : vector<8x8xf32>
    %62 = tpu.matmul %59, %60, %cst_20 {dimension_numbers = #tpu.dot_dimension_numbers<[1], [1], [0], [0], [0, 0, 1, 0], [], []>} : vector<8x16xf32>, vector<8x16xf32>, vector<8x8xf32> -> vector<8x8xf32>
    %cst_21 = arith.constant dense<0xFF800000> : vector<8xf32>
    %63 = vector.multi_reduction <maximumf>, %62, %cst_21 [1] : vector<8x8xf32> to vector<8xf32>
    %64 = vector.shape_cast %63 : vector<8xf32> to vector<8x1xf32>
    %65 = vector.broadcast %64 : vector<8x1xf32> to vector<8x8xf32>
    %66 = arith.subf %62, %65 : vector<8x8xf32>
    %67 = math.exp %66 : vector<8x8xf32>
    %cst_22 = arith.constant dense<0.000000e+00> : vector<8xf32>
    %68 = vector.multi_reduction <add>, %67, %cst_22 [1] : vector<8x8xf32> to vector<8xf32>
    %69 = vector.shape_cast %68 : vector<8xf32> to vector<8x1xf32>
    %cst_23 = arith.constant dense<0.000000e+00> : vector<8x16xf32>
    %70 = tpu.matmul %67, %61, %cst_23 {dimension_numbers = #tpu.dot_dimension_numbers<[1], [0], [0], [1], [0, 0, 1, 1], [], []>} : vector<8x8xf32>, vector<8x16xf32>, vector<8x16xf32> -> vector<8x16xf32>
    %71 = tpu.reciprocal %69 {approx = true} : vector<8x1xf32> -> vector<8x1xf32>
    %72 = vector.broadcast %71 : vector<8x1xf32> to vector<8x16xf32>
    %73 = arith.mulf %70, %72 : vector<8x16xf32>
    %74 = vector.extract_strided_slice %3 {offsets = [0, 64], sizes = [8, 16], strides = [1, 1]} : vector<8x128xf32> to vector<8x16xf32>
    %cst_24 = arith.constant 2.500000e-01 : f32
    %75 = vector.broadcast %cst_24 : f32 to vector<8x16xf32>
    %76 = arith.mulf %74, %75 : vector<8x16xf32>
    %77 = vector.extract_strided_slice %4 {offsets = [0, 64], sizes = [8, 16], strides = [1, 1]} : vector<8x128xf32> to vector<8x16xf32>
    %78 = vector.extract_strided_slice %5 {offsets = [0, 64], sizes = [8, 16], strides = [1, 1]} : vector<8x128xf32> to vector<8x16xf32>
    %cst_25 = arith.constant dense<0.000000e+00> : vector<8x8xf32>
    %79 = tpu.matmul %76, %77, %cst_25 {dimension_numbers = #tpu.dot_dimension_numbers<[1], [1], [0], [0], [0, 0, 1, 0], [], []>} : vector<8x16xf32>, vector<8x16xf32>, vector<8x8xf32> -> vector<8x8xf32>
    %cst_26 = arith.constant dense<0xFF800000> : vector<8xf32>
    %80 = vector.multi_reduction <maximumf>, %79, %cst_26 [1] : vector<8x8xf32> to vector<8xf32>
    %81 = vector.shape_cast %80 : vector<8xf32> to vector<8x1xf32>
    %82 = vector.broadcast %81 : vector<8x1xf32> to vector<8x8xf32>
    %83 = arith.subf %79, %82 : vector<8x8xf32>
    %84 = math.exp %83 : vector<8x8xf32>
    %cst_27 = arith.constant dense<0.000000e+00> : vector<8xf32>
    %85 = vector.multi_reduction <add>, %84, %cst_27 [1] : vector<8x8xf32> to vector<8xf32>
    %86 = vector.shape_cast %85 : vector<8xf32> to vector<8x1xf32>
    %cst_28 = arith.constant dense<0.000000e+00> : vector<8x16xf32>
    %87 = tpu.matmul %84, %78, %cst_28 {dimension_numbers = #tpu.dot_dimension_numbers<[1], [0], [0], [1], [0, 0, 1, 1], [], []>} : vector<8x8xf32>, vector<8x16xf32>, vector<8x16xf32> -> vector<8x16xf32>
    %88 = tpu.reciprocal %86 {approx = true} : vector<8x1xf32> -> vector<8x1xf32>
    %89 = vector.broadcast %88 : vector<8x1xf32> to vector<8x16xf32>
    %90 = arith.mulf %87, %89 : vector<8x16xf32>
    %91 = vector.extract_strided_slice %3 {offsets = [0, 80], sizes = [8, 16], strides = [1, 1]} : vector<8x128xf32> to vector<8x16xf32>
    %cst_29 = arith.constant 2.500000e-01 : f32
    %92 = vector.broadcast %cst_29 : f32 to vector<8x16xf32>
    %93 = arith.mulf %91, %92 : vector<8x16xf32>
    %94 = vector.extract_strided_slice %4 {offsets = [0, 80], sizes = [8, 16], strides = [1, 1]} : vector<8x128xf32> to vector<8x16xf32>
    %95 = vector.extract_strided_slice %5 {offsets = [0, 80], sizes = [8, 16], strides = [1, 1]} : vector<8x128xf32> to vector<8x16xf32>
    %cst_30 = arith.constant dense<0.000000e+00> : vector<8x8xf32>
    %96 = tpu.matmul %93, %94, %cst_30 {dimension_numbers = #tpu.dot_dimension_numbers<[1], [1], [0], [0], [0, 0, 1, 0], [], []>} : vector<8x16xf32>, vector<8x16xf32>, vector<8x8xf32> -> vector<8x8xf32>
    %cst_31 = arith.constant dense<0xFF800000> : vector<8xf32>
    %97 = vector.multi_reduction <maximumf>, %96, %cst_31 [1] : vector<8x8xf32> to vector<8xf32>
    %98 = vector.shape_cast %97 : vector<8xf32> to vector<8x1xf32>
    %99 = vector.broadcast %98 : vector<8x1xf32> to vector<8x8xf32>
    %100 = arith.subf %96, %99 : vector<8x8xf32>
    %101 = math.exp %100 : vector<8x8xf32>
    %cst_32 = arith.constant dense<0.000000e+00> : vector<8xf32>
    %102 = vector.multi_reduction <add>, %101, %cst_32 [1] : vector<8x8xf32> to vector<8xf32>
    %103 = vector.shape_cast %102 : vector<8xf32> to vector<8x1xf32>
    %cst_33 = arith.constant dense<0.000000e+00> : vector<8x16xf32>
    %104 = tpu.matmul %101, %95, %cst_33 {dimension_numbers = #tpu.dot_dimension_numbers<[1], [0], [0], [1], [0, 0, 1, 1], [], []>} : vector<8x8xf32>, vector<8x16xf32>, vector<8x16xf32> -> vector<8x16xf32>
    %105 = tpu.reciprocal %103 {approx = true} : vector<8x1xf32> -> vector<8x1xf32>
    %106 = vector.broadcast %105 : vector<8x1xf32> to vector<8x16xf32>
    %107 = arith.mulf %104, %106 : vector<8x16xf32>
    %108 = vector.extract_strided_slice %3 {offsets = [0, 96], sizes = [8, 16], strides = [1, 1]} : vector<8x128xf32> to vector<8x16xf32>
    %cst_34 = arith.constant 2.500000e-01 : f32
    %109 = vector.broadcast %cst_34 : f32 to vector<8x16xf32>
    %110 = arith.mulf %108, %109 : vector<8x16xf32>
    %111 = vector.extract_strided_slice %4 {offsets = [0, 96], sizes = [8, 16], strides = [1, 1]} : vector<8x128xf32> to vector<8x16xf32>
    %112 = vector.extract_strided_slice %5 {offsets = [0, 96], sizes = [8, 16], strides = [1, 1]} : vector<8x128xf32> to vector<8x16xf32>
    %cst_35 = arith.constant dense<0.000000e+00> : vector<8x8xf32>
    %113 = tpu.matmul %110, %111, %cst_35 {dimension_numbers = #tpu.dot_dimension_numbers<[1], [1], [0], [0], [0, 0, 1, 0], [], []>} : vector<8x16xf32>, vector<8x16xf32>, vector<8x8xf32> -> vector<8x8xf32>
    %cst_36 = arith.constant dense<0xFF800000> : vector<8xf32>
    %114 = vector.multi_reduction <maximumf>, %113, %cst_36 [1] : vector<8x8xf32> to vector<8xf32>
    %115 = vector.shape_cast %114 : vector<8xf32> to vector<8x1xf32>
    %116 = vector.broadcast %115 : vector<8x1xf32> to vector<8x8xf32>
    %117 = arith.subf %113, %116 : vector<8x8xf32>
    %118 = math.exp %117 : vector<8x8xf32>
    %cst_37 = arith.constant dense<0.000000e+00> : vector<8xf32>
    %119 = vector.multi_reduction <add>, %118, %cst_37 [1] : vector<8x8xf32> to vector<8xf32>
    %120 = vector.shape_cast %119 : vector<8xf32> to vector<8x1xf32>
    %cst_38 = arith.constant dense<0.000000e+00> : vector<8x16xf32>
    %121 = tpu.matmul %118, %112, %cst_38 {dimension_numbers = #tpu.dot_dimension_numbers<[1], [0], [0], [1], [0, 0, 1, 1], [], []>} : vector<8x8xf32>, vector<8x16xf32>, vector<8x16xf32> -> vector<8x16xf32>
    %122 = tpu.reciprocal %120 {approx = true} : vector<8x1xf32> -> vector<8x1xf32>
    %123 = vector.broadcast %122 : vector<8x1xf32> to vector<8x16xf32>
    %124 = arith.mulf %121, %123 : vector<8x16xf32>
    %125 = vector.extract_strided_slice %3 {offsets = [0, 112], sizes = [8, 16], strides = [1, 1]} : vector<8x128xf32> to vector<8x16xf32>
    %cst_39 = arith.constant 2.500000e-01 : f32
    %126 = vector.broadcast %cst_39 : f32 to vector<8x16xf32>
    %127 = arith.mulf %125, %126 : vector<8x16xf32>
    %128 = vector.extract_strided_slice %4 {offsets = [0, 112], sizes = [8, 16], strides = [1, 1]} : vector<8x128xf32> to vector<8x16xf32>
    %129 = vector.extract_strided_slice %5 {offsets = [0, 112], sizes = [8, 16], strides = [1, 1]} : vector<8x128xf32> to vector<8x16xf32>
    %cst_40 = arith.constant dense<0.000000e+00> : vector<8x8xf32>
    %130 = tpu.matmul %127, %128, %cst_40 {dimension_numbers = #tpu.dot_dimension_numbers<[1], [1], [0], [0], [0, 0, 1, 0], [], []>} : vector<8x16xf32>, vector<8x16xf32>, vector<8x8xf32> -> vector<8x8xf32>
    %cst_41 = arith.constant dense<0xFF800000> : vector<8xf32>
    %131 = vector.multi_reduction <maximumf>, %130, %cst_41 [1] : vector<8x8xf32> to vector<8xf32>
    %132 = vector.shape_cast %131 : vector<8xf32> to vector<8x1xf32>
    %133 = vector.broadcast %132 : vector<8x1xf32> to vector<8x8xf32>
    %134 = arith.subf %130, %133 : vector<8x8xf32>
    %135 = math.exp %134 : vector<8x8xf32>
    %cst_42 = arith.constant dense<0.000000e+00> : vector<8xf32>
    %136 = vector.multi_reduction <add>, %135, %cst_42 [1] : vector<8x8xf32> to vector<8xf32>
    %137 = vector.shape_cast %136 : vector<8xf32> to vector<8x1xf32>
    %cst_43 = arith.constant dense<0.000000e+00> : vector<8x16xf32>
    %138 = tpu.matmul %135, %129, %cst_43 {dimension_numbers = #tpu.dot_dimension_numbers<[1], [0], [0], [1], [0, 0, 1, 1], [], []>} : vector<8x8xf32>, vector<8x16xf32>, vector<8x16xf32> -> vector<8x16xf32>
    %139 = tpu.reciprocal %137 {approx = true} : vector<8x1xf32> -> vector<8x1xf32>
    %140 = vector.broadcast %139 : vector<8x1xf32> to vector<8x16xf32>
    %141 = arith.mulf %138, %140 : vector<8x16xf32>
    %142 = tpu.concatenate %22, %39, %56, %73, %90, %107, %124, %141 in 1 : vector<8x16xf32>, vector<8x16xf32>, vector<8x16xf32>, vector<8x16xf32>, vector<8x16xf32>, vector<8x16xf32>, vector<8x16xf32>, vector<8x16xf32> -> vector<8x128xf32>
    %c0_44 = arith.constant 0 : index
    %c0_45 = arith.constant 0 : index
    %c0_46 = arith.constant 0 : index
    %143 = vector.load %arg3[%c0_44, %c0_45, %c0_46] : memref<1x8x128xf32, #tpu.memory_space<vmem>>, vector<1x8x128xf32>
    %144 = vector.shape_cast %143 : vector<1x8x128xf32> to vector<8x128xf32>
    %145 = vector.shape_cast %142 : vector<8x128xf32> to vector<1x8x128xf32>
    tpu.vector_store %arg3[%c0_44, %c0_45, %c0_46], %145 {strides = array<i32>} : memref<1x8x128xf32, #tpu.memory_space<vmem>>, vector<1x8x128xf32>,
    return
  }
  func.func @transform_0(%arg0: i32) -> (i32, i32, i32) {
    %c0_i32 = arith.constant 0 : i32
    %c0_i32_0 = arith.constant 0 : i32
    %c0_i32_1 = arith.constant 0 : i32
    return %arg0, %c0_i32, %c0_i32_0 : i32, i32, i32
  }
  func.func @transform_1(%arg0: i32) -> (i32, i32, i32) {
    %c0_i32 = arith.constant 0 : i32
    %c0_i32_0 = arith.constant 0 : i32
    %c0_i32_1 = arith.constant 0 : i32
    return %arg0, %c0_i32, %c0_i32_0 : i32, i32, i32
  }
  func.func @transform_2(%arg0: i32) -> (i32, i32, i32) {
    %c0_i32 = arith.constant 0 : i32
    %c0_i32_0 = arith.constant 0 : i32
    %c0_i32_1 = arith.constant 0 : i32
    return %arg0, %c0_i32, %c0_i32_0 : i32, i32, i32
  }
}

module attributes {stable_mosaic.version = 11 : i64} {
  func.func @_linear_kernel(%arg0: i32, %arg1: i32, %arg2: i32, %arg3: memref<16x128xf32, #tpu.memory_space<vmem>>, %arg4: memref<128x256xf32, #tpu.memory_space<vmem>>, %arg5: memref<1x256xf32, #tpu.memory_space<vmem>>, %arg6: memref<16x256xf32, #tpu.memory_space<vmem>>, %arg7: memref<16x256xf32, #tpu.memory_space<vmem>>) attributes {dimension_semantics = [#tpu.dimension_semantics<parallel>, #tpu.dimension_semantics<parallel>, #tpu.dimension_semantics<arbitrary>], iteration_bounds = array<i64: 1, 1, 1>, scalar_prefetch = 0 : i64, scratch_operands = 1 : i64, tpu.core_type = #tpu.core_type<tc>, window_params = [{transform_indices = @transform_0, window_bounds = array<i64: 16, 128>}, {transform_indices = @transform_1, window_bounds = array<i64: 128, 256>}, {transform_indices = @transform_2, window_bounds = array<i64: 1, 256>}, {transform_indices = @transform_3, window_bounds = array<i64: 16, 256>}]} {
    %c0_i32 = arith.constant 0 : i32
    %0 = arith.cmpi eq, %arg2, %c0_i32 : i32
    %1 = arith.extui %0 : i1 to i32
    %c0_i32_0 = arith.constant 0 : i32
    %2 = arith.cmpi ne, %1, %c0_i32_0 : i32
    scf.if %2 {
      %cst_10 = arith.constant 0.000000e+00 : f32
      %12 = vector.broadcast %cst_10 : f32 to vector<16x256xf32>
      %c0_11 = arith.constant 0 : index
      %c0_12 = arith.constant 0 : index
      %13 = vector.load %arg7[%c0_11, %c0_12] : memref<16x256xf32, #tpu.memory_space<vmem>>, vector<16x256xf32>
      tpu.vector_store %arg7[%c0_11, %c0_12], %12 {strides = array<i32>} : memref<16x256xf32, #tpu.memory_space<vmem>>, vector<16x256xf32>,
    } else {
    }
    %c0 = arith.constant 0 : index
    %c0_1 = arith.constant 0 : index
    %3 = vector.load %arg7[%c0, %c0_1] : memref<16x256xf32, #tpu.memory_space<vmem>>, vector<16x256xf32>
    %c0_2 = arith.constant 0 : index
    %c0_3 = arith.constant 0 : index
    %4 = vector.load %arg3[%c0_2, %c0_3] : memref<16x128xf32, #tpu.memory_space<vmem>>, vector<16x128xf32>
    %c0_4 = arith.constant 0 : index
    %c0_5 = arith.constant 0 : index
    %5 = vector.load %arg4[%c0_4, %c0_5] : memref<128x256xf32, #tpu.memory_space<vmem>>, vector<128x256xf32>
    %cst = arith.constant dense<0.000000e+00> : vector<16x256xf32>
    %6 = tpu.matmul %4, %5, %cst {dimension_numbers = #tpu.dot_dimension_numbers<[1], [0], [0], [1], [0, 0, 1, 1], [], []>} : vector<16x128xf32>, vector<128x256xf32>, vector<16x256xf32> -> vector<16x256xf32>
    %7 = arith.addf %3, %6 : vector<16x256xf32>
    %c0_6 = arith.constant 0 : index
    %c0_7 = arith.constant 0 : index
    %8 = vector.load %arg7[%c0_6, %c0_7] : memref<16x256xf32, #tpu.memory_space<vmem>>, vector<16x256xf32>
    tpu.vector_store %arg7[%c0_6, %c0_7], %7 {strides = array<i32>} : memref<16x256xf32, #tpu.memory_space<vmem>>, vector<16x256xf32>,
    %c0_i32_8 = arith.constant 0 : i32
    %9 = arith.cmpi eq, %arg2, %c0_i32_8 : i32
    %10 = arith.extui %9 : i1 to i32
    %c0_i32_9 = arith.constant 0 : i32
    %11 = arith.cmpi ne, %10, %c0_i32_9 : i32
    scf.if %11 {
      %c0_10 = arith.constant 0 : index
      %c0_11 = arith.constant 0 : index
      %12 = vector.load %arg7[%c0_10, %c0_11] : memref<16x256xf32, #tpu.memory_space<vmem>>, vector<16x256xf32>
      %c0_12 = arith.constant 0 : index
      %c0_13 = arith.constant 0 : index
      %13 = vector.load %arg5[%c0_12, %c0_13] : memref<1x256xf32, #tpu.memory_space<vmem>>, vector<1x256xf32>
      %14 = vector.broadcast %13 : vector<1x256xf32> to vector<16x256xf32>
      %15 = arith.addf %12, %14 : vector<16x256xf32>
      %c0_14 = arith.constant 0 : index
      %c0_15 = arith.constant 0 : index
      %16 = vector.load %arg6[%c0_14, %c0_15] : memref<16x256xf32, #tpu.memory_space<vmem>>, vector<16x256xf32>
      tpu.vector_store %arg6[%c0_14, %c0_15], %15 {strides = array<i32>} : memref<16x256xf32, #tpu.memory_space<vmem>>, vector<16x256xf32>,
    } else {
    }
    return
  }
  func.func @transform_0(%arg0: i32, %arg1: i32, %arg2: i32) -> (i32, i32) {
    %c0_i32 = arith.constant 0 : i32
    return %arg0, %arg2 : i32, i32
  }
  func.func @transform_1(%arg0: i32, %arg1: i32, %arg2: i32) -> (i32, i32) {
    %c0_i32 = arith.constant 0 : i32
    return %arg2, %arg1 : i32, i32
  }
  func.func @transform_2(%arg0: i32, %arg1: i32, %arg2: i32) -> (i32, i32) {
    %c0_i32 = arith.constant 0 : i32
    %c0_i32_0 = arith.constant 0 : i32
    return %c0_i32, %arg1 : i32, i32
  }
  func.func @transform_3(%arg0: i32, %arg1: i32, %arg2: i32) -> (i32, i32) {
    %c0_i32 = arith.constant 0 : i32
    return %arg0, %arg1 : i32, i32
  }
}

</mosaic_0001>

<llo_original>
// kernel: transformer_forward.20
$region0: #{transformer_forward.20}
  #allocation0 [shape = 'u32[]', space=smem, size = 0x4, offset = 0x4, fixed_abs, tag = 'smem constant byte address 0x4 - core index']
  #allocation1 [shape = 'u32[144,128]{1,0:T(1,128)}', space=vmem, size = 0x12000, scoped, tag = 'internal scratch']
  #allocation2 [shape = 'f32[16,128]{1,0:T(8,128)}', space=vmem, size = 0x2000, scoped, tag = 'scratch operand']
  %s0 = inlined_call_operand.vmem [shape: f32[16,128], index: 0, kind: input, shape index: {}]
  %s1 = inlined_call_operand.vmem [shape: f32[128,384], index: 1, kind: input, shape index: {}]
  %s2 = inlined_call_operand.vmem [shape: f32[1,384], index: 2, kind: input, shape index: {}]
  %s3 = inlined_call_operand.vmem [shape: f32[16,384], index: 3, kind: output, shape index: {}]
  %s4 = sld [smem:[#allocation0]]
  $region125: #{transformer_forward.20} parent=0
    _
  %s6 = ssub.s32 1, %s4
  %s7 = scalar_select 0, %s6, %s4
  $region1: #{transformer_forward.20} parent=0
    #allocation3 [shape = 'u8[131072]{0}', space=vmem, size = 0x20000, scoped, tag = 'input window, operand 1']
    #allocation4 [shape = 'u8[16384]{0}', space=vmem, size = 0x4000, scoped, tag = 'output window, operand 0']
    loop: start=0, step=1, limit=5
    $region2: #{transformer_forward.20} parent=1 // loop_pre_header
      _
    $region3: #{transformer_forward.20} parent=1 // loop_header
      %s9 = sphi 0, %s13
      %p10 = scmp.ge.s32.totalorder %s9, 5
      %s16 = sphi 0, %s35
      %s17 = sphi 0, %s31
      %s18 = sphi 0, %s27
      %s19 = sphi 0, %s16
      %s20 = sphi 0, %s17
      %s21 = sphi 0, %s18
      %s22 = sphi 0, %s19
      %s23 = sphi 0, %s20
      %s24 = sphi 0, %s21
      %s40 = sphi 0, %s42
      %s43 = sphi 0, %s40
      %s44 = sphi 0, %s43
      %s60 = sphi 0, %s44
      %s68 = sphi 0, %s70
      %s71 = sphi 0, %s68
      %s72 = sphi 0, %s71
      %s88 = sphi 0, %s72
      %s94 = sphi 0, %s96
      %s97 = sphi 0, %s94
      %s98 = sphi 0, %s97
      %s114 = sphi 0, %s98
      %s122 = sphi 0, %s124
      %s125 = sphi 0, %s122
      %s126 = sphi 0, %s125
      %s142 = sphi 0, %s126
    $region4: #{transformer_forward.20} parent=1 // loop_header_branch
      %12 = sbr.rel (%p10) target = $region8
    $region5: #{transformer_forward.20} parent=1 // loop_body
      %s14 = ssub.s32 %s9, 1
      %s15 = ssub.s32 %s9, 2
      %s25 = sadd.s32 1, %s18
      %p26 = scmp.ge.s32.totalorder %s25, 1
      %s27 = scalar_select %p26, 0, %s25
      %s28 = sadd.s32 1, %s17
      %s29 = scalar_select %p26, %s28, %s17
      %p30 = scmp.ge.s32.totalorder %s29, 3
      %s31 = scalar_select %p30, 0, %s29
      %s32 = sadd.s32 1, %s16
      %s33 = scalar_select %p30, %s32, %s16
      %p34 = scmp.ge.s32.totalorder %s33, 1
      %s35 = scalar_select %p34, 0, %s33
      %s36 = ssub.s32 %s16, %s35
      %s37 = ssub.s32 %s18, %s27
      %s38 = sor.u32 %s36, %s37
      %p39 = scmp.eq.s32.totalorder %s38, 0
      %s41 = sadd.s32 %s40, 1
      %s42 = scalar_select %p39, %s40, %s41
      %p45 = pneg %p39
      %p46 = scmp.eq.s32.totalorder %s9, 2
      %p47 = por %p45, %p46
      %p48 = scmp.ne.s32.totalorder %s40, %s43
      %p49 = scmp.eq.s32.totalorder %s9, 0
      %p50 = por %p48, %p49
      %p51 = scmp.ne.s32.totalorder %s40, %s43
      %p52 = scmp.eq.s32.totalorder %s14, 2
      %p53 = por %p51, %p52
      %p54 = scmp.ne.s32.totalorder %s43, %s44
      %p55 = scmp.eq.s32.totalorder %s14, 0
      %p56 = por %p54, %p55
      %p57 = scmp.ne.s32.totalorder %s43, %s44
      %p58 = scmp.eq.s32.totalorder %s15, 2
      %p59 = por %p57, %p58
      %p61 = scmp.ne.s32.totalorder %s44, %s60
      %p62 = scmp.eq.s32.totalorder %s15, 0
      %p63 = por %p61, %p62
      %s64 = ssub.s32 %s18, %s27
      %s65 = ssub.s32 %s17, %s31
      %s66 = sor.u32 %s64, %s65
      %p67 = scmp.eq.s32.totalorder %s66, 0
      %s69 = sadd.s32 %s68, 1
      %s70 = scalar_select %p67, %s68, %s69
      %p73 = pneg %p67
      %p74 = scmp.eq.s32.totalorder %s9, 2
      %p75 = por %p73, %p74
      %p76 = scmp.ne.s32.totalorder %s68, %s71
      %p77 = scmp.eq.s32.totalorder %s9, 0
      %p78 = por %p76, %p77
      %p79 = scmp.ne.s32.totalorder %s68, %s71
      %p80 = scmp.eq.s32.totalorder %s14, 2
      %p81 = por %p79, %p80
      %p82 = scmp.ne.s32.totalorder %s71, %s72
      %p83 = scmp.eq.s32.totalorder %s14, 0
      %p84 = por %p82, %p83
      %p85 = scmp.ne.s32.totalorder %s71, %s72
      %p86 = scmp.eq.s32.totalorder %s15, 2
      %p87 = por %p85, %p86
      %p89 = scmp.ne.s32.totalorder %s72, %s88
      %p90 = scmp.eq.s32.totalorder %s15, 0
      %p91 = por %p89, %p90
      %s92 = ssub.s32 %s17, %s31
      %p93 = scmp.eq.s32.totalorder %s92, 0
      %s95 = sadd.s32 %s94, 1
      %s96 = scalar_select %p93, %s94, %s95
      %p99 = pneg %p93
      %p100 = scmp.eq.s32.totalorder %s9, 2
      %p101 = por %p99, %p100
      %p102 = scmp.ne.s32.totalorder %s94, %s97
      %p103 = scmp.eq.s32.totalorder %s9, 0
      %p104 = por %p102, %p103
      %p105 = scmp.ne.s32.totalorder %s94, %s97
      %p106 = scmp.eq.s32.totalorder %s14, 2
      %p107 = por %p105, %p106
      %p108 = scmp.ne.s32.totalorder %s97, %s98
      %p109 = scmp.eq.s32.totalorder %s14, 0
      %p110 = por %p108, %p109
      %p111 = scmp.ne.s32.totalorder %s97, %s98
      %p112 = scmp.eq.s32.totalorder %s15, 2
      %p113 = por %p111, %p112
      %p115 = scmp.ne.s32.totalorder %s98, %s114
      %p116 = scmp.eq.s32.totalorder %s15, 0
      %p117 = por %p115, %p116
      %s118 = ssub.s32 %s16, %s35
      %s119 = ssub.s32 %s17, %s31
      %s120 = sor.u32 %s118, %s119
      %p121 = scmp.eq.s32.totalorder %s120, 0
      %s123 = sadd.s32 %s122, 1
      %s124 = scalar_select %p121, %s122, %s123
      %p127 = pneg %p121
      %p128 = scmp.eq.s32.totalorder %s9, 2
      %p129 = por %p127, %p128
      %p130 = scmp.ne.s32.totalorder %s122, %s125
      %p131 = scmp.eq.s32.totalorder %s9, 0
      %p132 = por %p130, %p131
      %p133 = scmp.ne.s32.totalorder %s122, %s125
      %p134 = scmp.eq.s32.totalorder %s14, 2
      %p135 = por %p133, %p134
      %p136 = scmp.ne.s32.totalorder %s125, %s126
      %p137 = scmp.eq.s32.totalorder %s14, 0
      %p138 = por %p136, %p137
      %p139 = scmp.ne.s32.totalorder %s125, %s126
      %p140 = scmp.eq.s32.totalorder %s15, 2
      %p141 = por %p139, %p140
      %p143 = scmp.ne.s32.totalorder %s126, %s142
      %p144 = scmp.eq.s32.totalorder %s15, 0
      %p145 = por %p143, %p144
      %p146 = scmp.le.s32.totalorder 1, %s9
      %p147 = scmp.lt.s32.totalorder %s9, 4
      %p148 = pnand %p146, %p147
      %p149 = pneg %p148
      // Predicated region
      $region9: #{transformer_forward.20} parent=5 // pred_check
        _
      $region10: #{transformer_forward.20} parent=5 // pred_check_branch
        %151 = sbr.rel (%p148) target = $region12
      $region11: #{transformer_forward.20} parent=5 // pred_region
        %s152 = ssub.s32 %s9, 1
        // Predicated region
        $region13: #{transformer_forward.20} parent=11 // pred_check
          %p153 = pneg %p56
        $region14: #{transformer_forward.20} parent=11 // pred_check_branch
          %155 = sbr.rel (%p153) target = $region16
        $region15: #{transformer_forward.20} parent=11 // pred_region
          %s156 = smul.u32 2, %s19
          %p157 = scmp.lt.s32.totalorder %s156, 1
          %s158 = scalar_select %p157, %s156, 1
          %p159 = scmp.lt.s32.totalorder %s21, 0
          %s160 = scalar_select %p159, %s21, 0
          %s161 = sadd.s32 %s160, %s158
          %s162 = smul.addr %s161, 8
          %s163 = scalar_lea.vmem %s0, %s162
          %s164 = smul.u32 2, %s19
        $region16: #{transformer_forward.20} parent=11 // pred_fallthru
          _
      $region12: #{transformer_forward.20} parent=5 // pred_fallthru
        _
      %p165 = scmp.lt.s32.totalorder %s9, 3
      // Predicated region
      $region17: #{transformer_forward.20} parent=5 // pred_check
        %p166 = pneg %p165
      $region18: #{transformer_forward.20} parent=5 // pred_check_branch
        %168 = sbr.rel (%p166) target = $region20
      $region19: #{transformer_forward.20} parent=5 // pred_region
        // Predicated region
        $region21: #{transformer_forward.20} parent=19 // pred_check
          %p169 = pneg %p78
        $region22: #{transformer_forward.20} parent=19 // pred_check_branch
          %171 = sbr.rel (%p169) target = $region24
        $region23: #{transformer_forward.20} parent=19 // pred_region
          %s172 = sand.u32 %s68, 1
          %s173 = sand.u32 %s68, 1
          %s174 = smul.addr %s173, 128
          %s175 = scalar_lea.vmem [#allocation3], %s174
          %s176 = smul.u32 16, %s18
          %s177 = smul.addr %s176, 3
          %s178 = sadd.s32 %s17, %s177
          %s179 = smul.addr %s178, 8
          %s180 = scalar_lea.vmem %s1, %s179
          // Predicated region
          $region25: #{transformer_forward.20} parent=23 // pred_check
            _
          $region26: #{transformer_forward.20} parent=23 // pred_check_branch
            %182 = sbr.rel (0) target = $region28
          $region27: #{transformer_forward.20} parent=23 // pred_region
            // Predicated region
            $region29: #{transformer_forward.20} parent=27 // pred_check
              _
            $region30: #{transformer_forward.20} parent=27 // pred_check_branch
              %184 = sbr.rel (0) target = $region32
            $region31: #{transformer_forward.20} parent=27 // pred_region
              // Predicated region
              $region44: #{transformer_forward.20} parent=31 // pred_check
                _
              $region45: #{transformer_forward.20} parent=31 // pred_check_branch
                %229 = sbr.rel (0) target = $region47
              $region46: #{transformer_forward.20} parent=31 // pred_region
                loop: start=0, step=1, limit=1
                $region48: #{transformer_forward.20} parent=46 // loop_pre_header
                  _
                $region49: #{transformer_forward.20} parent=46 // loop_header
                  %s231 = sphi 0, %s235
                  %p232 = scmp.ge.s32.totalorder %s231, 1
                  %s236 = sphi %s180, %s180
                  %s237 = sphi %s175, %s175
                $region50: #{transformer_forward.20} parent=46 // loop_header_branch
                  %234 = sbr.rel (%p232) target = $region54
                $region51: #{transformer_forward.20} parent=46 // loop_body
                  %v238 = vld [vmem:[%s236] sm:$0xff]
                  %239 = vst [vmem:[%s237] sm:$0xff] %v238
                  %v240 = vld [vmem:[%s236 + $0x18] sm:$0xff]
                  %241 = vst [vmem:[%s237 + $0x8] sm:$0xff] %v240
                  %v242 = vld [vmem:[%s236 + $0x30] sm:$0xff]
                  %243 = vst [vmem:[%s237 + $0x10] sm:$0xff] %v242
                  %v244 = vld [vmem:[%s236 + $0x48] sm:$0xff]
                  %245 = vst [vmem:[%s237 + $0x18] sm:$0xff] %v244
                  %v246 = vld [vmem:[%s236 + $0x60] sm:$0xff]
                  %247 = vst [vmem:[%s237 + $0x20] sm:$0xff] %v246
                  %v248 = vld [vmem:[%s236 + $0x78] sm:$0xff]
                  %249 = vst [vmem:[%s237 + $0x28] sm:$0xff] %v248
                  %v250 = vld [vmem:[%s236 + $0x90] sm:$0xff]
                  %251 = vst [vmem:[%s237 + $0x30] sm:$0xff] %v250
                  %v252 = vld [vmem:[%s236 + $0xa8] sm:$0xff]
                  %253 = vst [vmem:[%s237 + $0x38] sm:$0xff] %v252
                  %v254 = vld [vmem:[%s236 + $0xc0] sm:$0xff]
                  %255 = vst [vmem:[%s237 + $0x40] sm:$0xff] %v254
                  %v256 = vld [vmem:[%s236 + $0xd8] sm:$0xff]
                  %257 = vst [vmem:[%s237 + $0x48] sm:$0xff] %v256
                  %v258 = vld [vmem:[%s236 + $0xf0] sm:$0xff]
                  %259 = vst [vmem:[%s237 + $0x50] sm:$0xff] %v258
                  %v260 = vld [vmem:[%s236 + $0x108] sm:$0xff]
                  %261 = vst [vmem:[%s237 + $0x58] sm:$0xff] %v260
                  %v262 = vld [vmem:[%s236 + $0x120] sm:$0xff]
                  %263 = vst [vmem:[%s237 + $0x60] sm:$0xff] %v262
                  %v264 = vld [vmem:[%s236 + $0x138] sm:$0xff]
                  %265 = vst [vmem:[%s237 + $0x68] sm:$0xff] %v264
                  %v266 = vld [vmem:[%s236 + $0x150] sm:$0xff]
                  %267 = vst [vmem:[%s237 + $0x70] sm:$0xff] %v266
                  %v268 = vld [vmem:[%s236 + $0x168] sm:$0xff]
                  %269 = vst [vmem:[%s237 + $0x78] sm:$0xff] %v268
                $region52: #{transformer_forward.20} parent=46 // loop_footer
                  %s235 = sadd.s32 1, %s231
                $region53: #{transformer_forward.20} parent=46 // loop_footer_branch
                  %230 = sbr.rel target = $region49
                $region54: #{transformer_forward.20} parent=46 // loop_exit
                  _
              $region47: #{transformer_forward.20} parent=31 // pred_fallthru
                _
              // Predicated region
              $region55: #{transformer_forward.20} parent=31 // pred_check
                _
              $region56: #{transformer_forward.20} parent=31 // pred_check_branch
                %271 = sbr.rel target = $region58
              $region57: #{transformer_forward.20} parent=31 // pred_region
                _
              $region58: #{transformer_forward.20} parent=31 // pred_fallthru
                _
            $region32: #{transformer_forward.20} parent=27 // pred_fallthru
              _
            // Predicated region
            $region33: #{transformer_forward.20} parent=27 // pred_check
              _
            $region34: #{transformer_forward.20} parent=27 // pred_check_branch
              %186 = sbr.rel target = $region36
            $region35: #{transformer_forward.20} parent=27 // pred_region
              loop: start=0, step=1, limit=1
              $region37: #{transformer_forward.20} parent=35 // loop_pre_header
                _
              $region38: #{transformer_forward.20} parent=35 // loop_header
                %s189 = sphi 0, %s193
                %p190 = scmp.ge.s32.totalorder %s189, 1
                %s194 = sphi %s180, %s180
                %s195 = sphi %s175, %s175
              $region39: #{transformer_forward.20} parent=35 // loop_header_branch
                %192 = sbr.rel (%p190) target = $region43
              $region40: #{transformer_forward.20} parent=35 // loop_body
                %v196 = vld [vmem:[%s194] sm:$0xff]
                %197 = vst [vmem:[%s195] sm:$0xff] %v196
                %v198 = vld [vmem:[%s194 + $0x18] sm:$0xff]
                %199 = vst [vmem:[%s195 + $0x8] sm:$0xff] %v198
                %v200 = vld [vmem:[%s194 + $0x30] sm:$0xff]
                %201 = vst [vmem:[%s195 + $0x10] sm:$0xff] %v200
                %v202 = vld [vmem:[%s194 + $0x48] sm:$0xff]
                %203 = vst [vmem:[%s195 + $0x18] sm:$0xff] %v202
                %v204 = vld [vmem:[%s194 + $0x60] sm:$0xff]
                %205 = vst [vmem:[%s195 + $0x20] sm:$0xff] %v204
                %v206 = vld [vmem:[%s194 + $0x78] sm:$0xff]
                %207 = vst [vmem:[%s195 + $0x28] sm:$0xff] %v206
                %v208 = vld [vmem:[%s194 + $0x90] sm:$0xff]
                %209 = vst [vmem:[%s195 + $0x30] sm:$0xff] %v208
                %v210 = vld [vmem:[%s194 + $0xa8] sm:$0xff]
                %211 = vst [vmem:[%s195 + $0x38] sm:$0xff] %v210
                %v212 = vld [vmem:[%s194 + $0xc0] sm:$0xff]
                %213 = vst [vmem:[%s195 + $0x40] sm:$0xff] %v212
                %v214 = vld [vmem:[%s194 + $0xd8] sm:$0xff]
                %215 = vst [vmem:[%s195 + $0x48] sm:$0xff] %v214
                %v216 = vld [vmem:[%s194 + $0xf0] sm:$0xff]
                %217 = vst [vmem:[%s195 + $0x50] sm:$0xff] %v216
                %v218 = vld [vmem:[%s194 + $0x108] sm:$0xff]
                %219 = vst [vmem:[%s195 + $0x58] sm:$0xff] %v218
                %v220 = vld [vmem:[%s194 + $0x120] sm:$0xff]
                %221 = vst [vmem:[%s195 + $0x60] sm:$0xff] %v220
                %v222 = vld [vmem:[%s194 + $0x138] sm:$0xff]
                %223 = vst [vmem:[%s195 + $0x68] sm:$0xff] %v222
                %v224 = vld [vmem:[%s194 + $0x150] sm:$0xff]
                %225 = vst [vmem:[%s195 + $0x70] sm:$0xff] %v224
                %v226 = vld [vmem:[%s194 + $0x168] sm:$0xff]
                %227 = vst [vmem:[%s195 + $0x78] sm:$0xff] %v226
              $region41: #{transformer_forward.20} parent=35 // loop_footer
                %s193 = sadd.s32 1, %s189
              $region42: #{transformer_forward.20} parent=35 // loop_footer_branch
                %188 = sbr.rel target = $region38
              $region43: #{transformer_forward.20} parent=35 // loop_exit
                _
            $region36: #{transformer_forward.20} parent=27 // pred_fallthru
              _
          $region28: #{transformer_forward.20} parent=23 // pred_fallthru
            _
          %272 = vnop
        $region24: #{transformer_forward.20} parent=19 // pred_fallthru
          _
        // Predicated region
        $region59: #{transformer_forward.20} parent=19 // pred_check
          %p273 = pneg %p104
        $region60: #{transformer_forward.20} parent=19 // pred_check_branch
          %275 = sbr.rel (%p273) target = $region62
        $region61: #{transformer_forward.20} parent=19 // pred_region
          %p276 = scmp.lt.s32.totalorder %s17, 2
          %s277 = scalar_select %p276, %s17, 2
          %s278 = scalar_lea.vmem %s2, %s277
        $region62: #{transformer_forward.20} parent=19 // pred_fallthru
          _
      $region20: #{transformer_forward.20} parent=5 // pred_fallthru
        _
      %p279 = scmp.le.s32.totalorder 1, %s9
      %p280 = scmp.lt.s32.totalorder %s9, 4
      %p281 = pnand %p279, %p280
      %p282 = pneg %p281
      // Predicated region
      $region63: #{transformer_forward.20} parent=5 // pred_check
        _
      $region64: #{transformer_forward.20} parent=5 // pred_check_branch
        %284 = sbr.rel (%p281) target = $region66
      $region65: #{transformer_forward.20} parent=5 // pred_region
        %s285 = ssub.s32 %s9, 1
        %s286 = sand.u32 %s71, 1
        %s287 = sand.u32 %s71, 1
        %s288 = smul.addr %s287, 128
        %s289 = scalar_lea.vmem [#allocation3], %s288
        // Predicated region
        $region67: #{transformer_forward.20} parent=65 // pred_check
          %p290 = pneg %p84
        $region68: #{transformer_forward.20} parent=65 // pred_check_branch
          %292 = sbr.rel (%p290) target = $region70
        $region69: #{transformer_forward.20} parent=65 // pred_region
          _
        $region70: #{transformer_forward.20} parent=65 // pred_fallthru
          _
        %s293 = smul.u32 2, %s19
        %p294 = scmp.lt.s32.totalorder %s293, 1
        %s295 = scalar_select %p294, %s293, 1
        %p296 = scmp.lt.s32.totalorder %s21, 0
        %s297 = scalar_select %p296, %s21, 0
        %s298 = sadd.s32 %s297, %s295
        %s299 = smul.addr %s298, 8
        %s300 = scalar_lea.vmem %s0, %s299
        %p301 = pneg %p56
        %p302 = pneg %p53
        %s303 = sand.u32 %s71, 1
        %s304 = sand.u32 %s71, 1
        %s305 = smul.addr %s304, 128
        %s306 = scalar_lea.vmem [#allocation3], %s305
        %p307 = pneg %p84
        %p308 = pneg %p81
        %p309 = scmp.lt.s32.totalorder %s20, 2
        %s310 = scalar_select %p309, %s20, 2
        %s311 = scalar_lea.vmem %s2, %s310
        %p312 = pneg %p110
        %p313 = pneg %p107
        %p314 = pneg %p138
        %p315 = pneg %p135
        %s316 = sand.u32 %s125, 1
        %s317 = sand.u32 %s125, 1
        %s318 = smul.addr %s317, 16
        %s319 = scalar_lea.vmem [#allocation4], %s318
        %s320 = smul.u32 2, %s19
        %p321 = scmp.lt.s32.totalorder %s320, 1
        %s322 = scalar_select %p321, %s320, 1
        %p323 = scmp.lt.s32.totalorder %s21, 0
        %s324 = scalar_select %p323, %s21, 0
        %s325 = sadd.s32 %s324, %s322
        %s326 = smul.addr %s325, 8
        %s327 = scalar_lea.vmem %s0, %s326
        %s328 = smul.u32 2, %s19
        %s329 = smul.u32 16, %s21
        %p330 = scmp.lt.s32.totalorder %s20, 2
        %s331 = scalar_select %p330, %s20, 2
        %s332 = scalar_lea.vmem %s2, %s331
        %s333 = smul.u32 2, %s19
        %p334 = scmp.eq.s32.totalorder %s21, 0
        // Predicated region
        $region71: #{transformer_forward.20} parent=65 // pred_check
          %p335 = pneg %p334
        $region72: #{transformer_forward.20} parent=65 // pred_check_branch
          %337 = sbr.rel (%p335) target = $region74
        $region73: #{transformer_forward.20} parent=65 // pred_region
          %338 = vst [vmem:[#allocation2] sm:$0xff] 0.0
          %339 = vst [vmem:[#allocation2 + $0x8] sm:$0xff] 0.0
        $region74: #{transformer_forward.20} parent=65 // pred_fallthru
          _
        %v340 = vld [vmem:[#allocation2] sm:$0xff]
        %v341 = vld [vmem:[#allocation2 + $0x8] sm:$0xff]
        %v342 = vld [vmem:[%s327] sm:$0xff]
        %v343 = vld [vmem:[%s327 + $0x8] sm:$0xff]
        %v344 = vld [vmem:[%s289] sm:$0xff]
        %v345 = vld [vmem:[%s289 + $0x8] sm:$0xff]
        %v346 = vld [vmem:[%s289 + $0x10] sm:$0xff]
        %v347 = vld [vmem:[%s289 + $0x18] sm:$0xff]
        %v348 = vld [vmem:[%s289 + $0x20] sm:$0xff]
        %v349 = vld [vmem:[%s289 + $0x28] sm:$0xff]
        %v350 = vld [vmem:[%s289 + $0x30] sm:$0xff]
        %v351 = vld [vmem:[%s289 + $0x38] sm:$0xff]
        %v352 = vld [vmem:[%s289 + $0x40] sm:$0xff]
        %v353 = vld [vmem:[%s289 + $0x48] sm:$0xff]
        %v354 = vld [vmem:[%s289 + $0x50] sm:$0xff]
        %v355 = vld [vmem:[%s289 + $0x58] sm:$0xff]
        %v356 = vld [vmem:[%s289 + $0x60] sm:$0xff]
        %v357 = vld [vmem:[%s289 + $0x68] sm:$0xff]
        %v358 = vld [vmem:[%s289 + $0x70] sm:$0xff]
        %v359 = vld [vmem:[%s289 + $0x78] sm:$0xff]
        %360 = vmatprep.subr.mxu0 0.0
        %361 = vmatpush1.msra.mxu0 %v344
        %362 = vmatprep.subr.mxu0 0.0
        %363 = vmatpush1.msra.mxu0 %v345
        %364 = vmatprep.subr.mxu0 0.0
        %365 = vmatpush1.msra.mxu0 %v346
        %366 = vmatprep.subr.mxu0 0.0
        %367 = vmatpush1.msra.mxu0 %v347
        %368 = vmatprep.subr.mxu0 0.0
        %369 = vmatpush1.msra.mxu0 %v348
        %370 = vmatprep.subr.mxu0 0.0
        %371 = vmatpush1.msra.mxu0 %v349
        %372 = vmatprep.subr.mxu0 0.0
        %373 = vmatpush1.msra.mxu0 %v350
        %374 = vmatprep.subr.mxu0 0.0
        %375 = vmatpush1.msra.mxu0 %v351
        %376 = vmatprep.subr.mxu0 0.0
        %377 = vmatpush1.msra.mxu0 %v352
        %378 = vmatprep.subr.mxu0 0.0
        %379 = vmatpush1.msra.mxu0 %v353
        %380 = vmatprep.subr.mxu0 0.0
        %381 = vmatpush1.msra.mxu0 %v354
        %382 = vmatprep.subr.mxu0 0.0
        %383 = vmatpush1.msra.mxu0 %v355
        %384 = vmatprep.subr.mxu0 0.0
        %385 = vmatpush1.msra.mxu0 %v356
        %386 = vmatprep.subr.mxu0 0.0
        %387 = vmatpush1.msra.mxu0 %v357
        %388 = vmatprep.subr.mxu0 0.0
        %389 = vmatpush1.msra.mxu0 %v358
        %390 = vmatprep.subr.mxu0 0.0
        %391 = vmatpush1.msra.mxu0 %v359
        %392 = vmatprep.subr.mxu0 0.0
        %393 = vmatpush1.msra.mxu0 0.0
        %394 = vmatprep.subr.mxu0 0.0
        %395 = vmatpush1.msra.mxu0 0.0
        %396 = vmatprep.subr.mxu0 0.0
        %397 = vmatpush1.msra.mxu0 0.0
        %398 = vmatprep.subr.mxu0 0.0
        %399 = vmatpush1.msra.mxu0 0.0
        %400 = vmatprep.subr.mxu0 0.0
        %401 = vmatpush1.msra.mxu0 0.0
        %402 = vmatprep.subr.mxu0 0.0
        %403 = vmatpush1.msra.mxu0 0.0
        %404 = vmatprep.subr.mxu0 0.0
        %405 = vmatpush1.msra.mxu0 0.0
        %406 = vmatprep.subr.mxu0 0.0
        %407 = vmatpush1.msra.mxu0 0.0
        %408 = vmatprep.subr.mxu0 0.0
        %409 = vmatpush1.msra.mxu0 0.0
        %410 = vmatprep.subr.mxu0 0.0
        %411 = vmatpush1.msra.mxu0 0.0
        %412 = vmatprep.subr.mxu0 0.0
        %413 = vmatpush1.msra.mxu0 0.0
        %414 = vmatprep.subr.mxu0 0.0
        %415 = vmatpush1.msra.mxu0 0.0
        %416 = vmatprep.subr.mxu0 0.0
        %417 = vmatpush1.msra.mxu0 0.0
        %418 = vmatprep.subr.mxu0 0.0
        %419 = vmatpush1.msra.mxu0 0.0
        %420 = vmatprep.subr.mxu0 0.0
        %421 = vmatpush1.msra.mxu0 0.0
        %422 = vmatprep.subr.mxu0 0.0
        %423 = vmatpush1.msra.mxu0 0.0
        %424 = vmatprep.mubr.f32.mxu0 0.0
        %425 = vmatmul.mubr.f32.gmra.mrb[0].mxu0 %v342
        %v426 = vpop.f32.mrb[0].mxu0
        %v427 = vadd.f32 0.0, %v426
        %v428 = vpop.f32.mrb[0].mxu0
        %429 = vmatprep.mubr.f32.mxu0 0.0
        %430 = vmatmul.mubr.f32.gmra.mrb[0].mxu0 %v343
        %v431 = vpop.f32.mrb[0].mxu0
        %v432 = vadd.f32 0.0, %v431
        %v433 = vpop.f32.mrb[0].mxu0
        %434 = vdwg.mxu0
        %v435 = vadd.f32 %v340, %v427
        %v436 = vadd.f32 %v341, %v432
        %437 = vst [vmem:[#allocation2] sm:$0xff] %v435
        %438 = vst [vmem:[#allocation2 + $0x8] sm:$0xff] %v436
        // Predicated region
        $region75: #{transformer_forward.20} parent=65 // pred_check
          %p439 = pneg %p334
        $region76: #{transformer_forward.20} parent=65 // pred_check_branch
          %441 = sbr.rel (%p439) target = $region78
        $region77: #{transformer_forward.20} parent=65 // pred_region
          %v442 = vld [vmem:[#allocation2] sm:$0xff]
          %v443 = vld [vmem:[#allocation2 + $0x8] sm:$0xff]
          %v444 = vld [vmem:[%s332] sm:$0x1]
          %v446 = vlaneseq
          %v447 = vshrl.u32 %v446, 7
          %v448 = vsub.s32 0, %v447
          %v449 = vrot.slane %v444, %v448
          %v451 = vadd.f32 %v442, %v449
          %v452 = vadd.f32 %v443, %v449
          %453 = vst [vmem:[%s319] sm:$0xff] %v451
          %454 = vst [vmem:[%s319 + $0x8] sm:$0xff] %v452
        $region78: #{transformer_forward.20} parent=65 // pred_fallthru
          _
        %s455 = sand.u32 %s125, 1
        %s456 = sand.u32 %s125, 1
        %s457 = smul.addr %s456, 16
        %s458 = scalar_lea.vmem [#allocation4], %s457
        // Predicated region
        $region79: #{transformer_forward.20} parent=65 // pred_check
          %p459 = pneg %p135
        $region80: #{transformer_forward.20} parent=65 // pred_check_branch
          %461 = sbr.rel (%p459) target = $region82
        $region81: #{transformer_forward.20} parent=65 // pred_region
          %s462 = smul.u32 2, %s19
          %s463 = smul.addr %s462, 3
          %s464 = sadd.s32 %s20, %s463
          %s465 = smul.addr %s464, 8
          %s466 = scalar_lea.vmem %s3, %s465
          // Predicated region
          $region83: #{transformer_forward.20} parent=81 // pred_check
            _
          $region84: #{transformer_forward.20} parent=81 // pred_check_branch
            %468 = sbr.rel (0) target = $region86
          $region85: #{transformer_forward.20} parent=81 // pred_region
            // Predicated region
            $region87: #{transformer_forward.20} parent=85 // pred_check
              _
            $region88: #{transformer_forward.20} parent=85 // pred_check_branch
              %470 = sbr.rel (0) target = $region90
            $region89: #{transformer_forward.20} parent=85 // pred_region
              // Predicated region
              $region102: #{transformer_forward.20} parent=89 // pred_check
                _
              $region103: #{transformer_forward.20} parent=89 // pred_check_branch
                %487 = sbr.rel (0) target = $region105
              $region104: #{transformer_forward.20} parent=89 // pred_region
                loop: start=0, step=1, limit=1
                $region106: #{transformer_forward.20} parent=104 // loop_pre_header
                  _
                $region107: #{transformer_forward.20} parent=104 // loop_header
                  %s489 = sphi 0, %s493
                  %p490 = scmp.ge.s32.totalorder %s489, 1
                  %s494 = sphi %s458, %s458
                  %s495 = sphi %s466, %s466
                $region108: #{transformer_forward.20} parent=104 // loop_header_branch
                  %492 = sbr.rel (%p490) target = $region112
                $region109: #{transformer_forward.20} parent=104 // loop_body
                  %v496 = vld [vmem:[%s494] sm:$0xff]
                  %497 = vst [vmem:[%s495] sm:$0xff] %v496
                  %v498 = vld [vmem:[%s494 + $0x8] sm:$0xff]
                  %499 = vst [vmem:[%s495 + $0x18] sm:$0xff] %v498
                $region110: #{transformer_forward.20} parent=104 // loop_footer
                  %s493 = sadd.s32 1, %s489
                $region111: #{transformer_forward.20} parent=104 // loop_footer_branch
                  %488 = sbr.rel target = $region107
                $region112: #{transformer_forward.20} parent=104 // loop_exit
                  _
              $region105: #{transformer_forward.20} parent=89 // pred_fallthru
                _
              // Predicated region
              $region113: #{transformer_forward.20} parent=89 // pred_check
                _
              $region114: #{transformer_forward.20} parent=89 // pred_check_branch
                %501 = sbr.rel target = $region116
              $region115: #{transformer_forward.20} parent=89 // pred_region
                _
              $region116: #{transformer_forward.20} parent=89 // pred_fallthru
                _
            $region90: #{transformer_forward.20} parent=85 // pred_fallthru
              _
            // Predicated region
            $region91: #{transformer_forward.20} parent=85 // pred_check
              _
            $region92: #{transformer_forward.20} parent=85 // pred_check_branch
              %472 = sbr.rel target = $region94
            $region93: #{transformer_forward.20} parent=85 // pred_region
              loop: start=0, step=1, limit=1
              $region95: #{transformer_forward.20} parent=93 // loop_pre_header
                _
              $region96: #{transformer_forward.20} parent=93 // loop_header
                %s475 = sphi 0, %s479
                %p476 = scmp.ge.s32.totalorder %s475, 1
                %s480 = sphi %s458, %s458
                %s481 = sphi %s466, %s466
              $region97: #{transformer_forward.20} parent=93 // loop_header_branch
                %478 = sbr.rel (%p476) target = $region101
              $region98: #{transformer_forward.20} parent=93 // loop_body
                %v482 = vld [vmem:[%s480] sm:$0xff]
                %483 = vst [vmem:[%s481] sm:$0xff] %v482
                %v484 = vld [vmem:[%s480 + $0x8] sm:$0xff]
                %485 = vst [vmem:[%s481 + $0x18] sm:$0xff] %v484
              $region99: #{transformer_forward.20} parent=93 // loop_footer
                %s479 = sadd.s32 1, %s475
              $region100: #{transformer_forward.20} parent=93 // loop_footer_branch
                %474 = sbr.rel target = $region96
              $region101: #{transformer_forward.20} parent=93 // loop_exit
                _
            $region94: #{transformer_forward.20} parent=85 // pred_fallthru
              _
          $region86: #{transformer_forward.20} parent=81 // pred_fallthru
            _
          %502 = vnop
        $region82: #{transformer_forward.20} parent=65 // pred_fallthru
          _
      $region66: #{transformer_forward.20} parent=5 // pred_fallthru
        _
      %p503 = scmp.le.s32.totalorder 2, %s9
      // Predicated region
      $region117: #{transformer_forward.20} parent=5 // pred_check
        %p504 = pneg %p503
      $region118: #{transformer_forward.20} parent=5 // pred_check_branch
        %506 = sbr.rel (%p504) target = $region120
      $region119: #{transformer_forward.20} parent=5 // pred_region
        %s507 = ssub.s32 %s9, 2
        // Predicated region
        $region121: #{transformer_forward.20} parent=119 // pred_check
          %p508 = pneg %p141
        $region122: #{transformer_forward.20} parent=119 // pred_check_branch
          %510 = sbr.rel (%p508) target = $region124
        $region123: #{transformer_forward.20} parent=119 // pred_region
          %s511 = sand.u32 %s126, 1
          %s512 = sand.u32 %s126, 1
          %s513 = smul.addr %s512, 16
          %s514 = scalar_lea.vmem [#allocation4], %s513
        $region124: #{transformer_forward.20} parent=119 // pred_fallthru
          _
      $region120: #{transformer_forward.20} parent=5 // pred_fallthru
        _
    $region6: #{transformer_forward.20} parent=1 // loop_footer
      %s13 = sadd.s32 1, %s9
    $region7: #{transformer_forward.20} parent=1 // loop_footer_branch
      %8 = sbr.rel target = $region3
    $region8: #{transformer_forward.20} parent=1 // loop_exit
      _

// kernel: transformer_forward.22
$region0: #{transformer_forward.22}
  #allocation0 [shape = 'u32[]', space=smem, size = 0x4, offset = 0x4, fixed_abs, tag = 'smem constant byte address 0x4 - core index']
  #allocation1 [shape = 'u32[144,128]{1,0:T(1,128)}', space=vmem, size = 0x12000, scoped, tag = 'internal scratch']
  #allocation2 [shape = 'f32[16,128]{1,0:T(8,128)}', space=vmem, size = 0x2000, scoped, tag = 'scratch operand']
  %s0 = inlined_call_operand.vmem [shape: f32[16,128], index: 0, kind: input, shape index: {}]
  %s1 = inlined_call_operand.vmem [shape: f32[128,128], index: 1, kind: input, shape index: {}]
  %s2 = inlined_call_operand.vmem [shape: f32[1,128], index: 2, kind: input, shape index: {}]
  %s3 = inlined_call_operand.vmem [shape: f32[16,128], index: 3, kind: output, shape index: {}]
  %s4 = sld [smem:[#allocation0]]
  $region30: #{transformer_forward.22} parent=0
    _
  %s6 = ssub.s32 1, %s4
  %s7 = scalar_select 0, %s6, %s4
  // Predicated region
  $region2: #{transformer_forward.22} parent=0 // pred_check
    _
  $region3: #{transformer_forward.22} parent=0 // pred_check_branch
    %9 = sbr.rel (0) target = $region5
  $region4: #{transformer_forward.22} parent=0 // pred_region
    _
  $region5: #{transformer_forward.22} parent=0 // pred_fallthru
    _
  // Predicated region
  $region6: #{transformer_forward.22} parent=0 // pred_check
    _
  $region7: #{transformer_forward.22} parent=0 // pred_check_branch
    %11 = sbr.rel (0) target = $region9
  $region8: #{transformer_forward.22} parent=0 // pred_region
    _
  $region9: #{transformer_forward.22} parent=0 // pred_fallthru
    _
  // Predicated region
  $region10: #{transformer_forward.22} parent=0 // pred_check
    _
  $region11: #{transformer_forward.22} parent=0 // pred_check_branch
    %13 = sbr.rel (0) target = $region13
  $region12: #{transformer_forward.22} parent=0 // pred_region
    _
  $region13: #{transformer_forward.22} parent=0 // pred_fallthru
    _
  %p14 = scmp.eq.s32.totalorder 0, 0
  // Predicated region
  $region14: #{transformer_forward.22} parent=0 // pred_check
    %p15 = pneg %p14
  $region15: #{transformer_forward.22} parent=0 // pred_check_branch
    %17 = sbr.rel (%p15) target = $region17
  $region16: #{transformer_forward.22} parent=0 // pred_region
    %18 = vst [vmem:[#allocation2] sm:$0xff] 0.0
    %19 = vst [vmem:[#allocation2 + $0x8] sm:$0xff] 0.0
  $region17: #{transformer_forward.22} parent=0 // pred_fallthru
    _
  %v20 = vld [vmem:[#allocation2] sm:$0xff]
  %v21 = vld [vmem:[#allocation2 + $0x8] sm:$0xff]
  %v22 = vld [vmem:[%s0] sm:$0xff]
  %v23 = vld [vmem:[%s0 + $0x8] sm:$0xff]
  %v24 = vld [vmem:[%s1] sm:$0xff]
  %v25 = vld [vmem:[%s1 + $0x8] sm:$0xff]
  %v26 = vld [vmem:[%s1 + $0x10] sm:$0xff]
  %v27 = vld [vmem:[%s1 + $0x18] sm:$0xff]
  %v28 = vld [vmem:[%s1 + $0x20] sm:$0xff]
  %v29 = vld [vmem:[%s1 + $0x28] sm:$0xff]
  %v30 = vld [vmem:[%s1 + $0x30] sm:$0xff]
  %v31 = vld [vmem:[%s1 + $0x38] sm:$0xff]
  %v32 = vld [vmem:[%s1 + $0x40] sm:$0xff]
  %v33 = vld [vmem:[%s1 + $0x48] sm:$0xff]
  %v34 = vld [vmem:[%s1 + $0x50] sm:$0xff]
  %v35 = vld [vmem:[%s1 + $0x58] sm:$0xff]
  %v36 = vld [vmem:[%s1 + $0x60] sm:$0xff]
  %v37 = vld [vmem:[%s1 + $0x68] sm:$0xff]
  %v38 = vld [vmem:[%s1 + $0x70] sm:$0xff]
  %v39 = vld [vmem:[%s1 + $0x78] sm:$0xff]
  %40 = vmatprep.subr.mxu0 0.0
  %41 = vmatpush1.msra.mxu0 %v24
  %42 = vmatprep.subr.mxu0 0.0
  %43 = vmatpush1.msra.mxu0 %v25
  %44 = vmatprep.subr.mxu0 0.0
  %45 = vmatpush1.msra.mxu0 %v26
  %46 = vmatprep.subr.mxu0 0.0
  %47 = vmatpush1.msra.mxu0 %v27
  %48 = vmatprep.subr.mxu0 0.0
  %49 = vmatpush1.msra.mxu0 %v28
  %50 = vmatprep.subr.mxu0 0.0
  %51 = vmatpush1.msra.mxu0 %v29
  %52 = vmatprep.subr.mxu0 0.0
  %53 = vmatpush1.msra.mxu0 %v30
  %54 = vmatprep.subr.mxu0 0.0
  %55 = vmatpush1.msra.mxu0 %v31
  %56 = vmatprep.subr.mxu0 0.0
  %57 = vmatpush1.msra.mxu0 %v32
  %58 = vmatprep.subr.mxu0 0.0
  %59 = vmatpush1.msra.mxu0 %v33
  %60 = vmatprep.subr.mxu0 0.0
  %61 = vmatpush1.msra.mxu0 %v34
  %62 = vmatprep.subr.mxu0 0.0
  %63 = vmatpush1.msra.mxu0 %v35
  %64 = vmatprep.subr.mxu0 0.0
  %65 = vmatpush1.msra.mxu0 %v36
  %66 = vmatprep.subr.mxu0 0.0
  %67 = vmatpush1.msra.mxu0 %v37
  %68 = vmatprep.subr.mxu0 0.0
  %69 = vmatpush1.msra.mxu0 %v38
  %70 = vmatprep.subr.mxu0 0.0
  %71 = vmatpush1.msra.mxu0 %v39
  %72 = vmatprep.subr.mxu0 0.0
  %73 = vmatpush1.msra.mxu0 0.0
  %74 = vmatprep.subr.mxu0 0.0
  %75 = vmatpush1.msra.mxu0 0.0
  %76 = vmatprep.subr.mxu0 0.0
  %77 = vmatpush1.msra.mxu0 0.0
  %78 = vmatprep.subr.mxu0 0.0
  %79 = vmatpush1.msra.mxu0 0.0
  %80 = vmatprep.subr.mxu0 0.0
  %81 = vmatpush1.msra.mxu0 0.0
  %82 = vmatprep.subr.mxu0 0.0
  %83 = vmatpush1.msra.mxu0 0.0
  %84 = vmatprep.subr.mxu0 0.0
  %85 = vmatpush1.msra.mxu0 0.0
  %86 = vmatprep.subr.mxu0 0.0
  %87 = vmatpush1.msra.mxu0 0.0
  %88 = vmatprep.subr.mxu0 0.0
  %89 = vmatpush1.msra.mxu0 0.0
  %90 = vmatprep.subr.mxu0 0.0
  %91 = vmatpush1.msra.mxu0 0.0
  %92 = vmatprep.subr.mxu0 0.0
  %93 = vmatpush1.msra.mxu0 0.0
  %94 = vmatprep.subr.mxu0 0.0
  %95 = vmatpush1.msra.mxu0 0.0
  %96 = vmatprep.subr.mxu0 0.0
  %97 = vmatpush1.msra.mxu0 0.0
  %98 = vmatprep.subr.mxu0 0.0
  %99 = vmatpush1.msra.mxu0 0.0
  %100 = vmatprep.subr.mxu0 0.0
  %101 = vmatpush1.msra.mxu0 0.0
  %102 = vmatprep.subr.mxu0 0.0
  %103 = vmatpush1.msra.mxu0 0.0
  %104 = vmatprep.mubr.f32.mxu0 0.0
  %105 = vmatmul.mubr.f32.gmra.mrb[0].mxu0 %v22
  %v106 = vpop.f32.mrb[0].mxu0
  %v107 = vadd.f32 0.0, %v106
  %v108 = vpop.f32.mrb[0].mxu0
  %109 = vmatprep.mubr.f32.mxu0 0.0
  %110 = vmatmul.mubr.f32.gmra.mrb[0].mxu0 %v23
  %v111 = vpop.f32.mrb[0].mxu0
  %v112 = vadd.f32 0.0, %v111
  %v113 = vpop.f32.mrb[0].mxu0
  %114 = vdwg.mxu0
  %v115 = vadd.f32 %v20, %v107
  %v116 = vadd.f32 %v21, %v112
  %117 = vst [vmem:[#allocation2] sm:$0xff] %v115
  %118 = vst [vmem:[#allocation2 + $0x8] sm:$0xff] %v116
  // Predicated region
  $region18: #{transformer_forward.22} parent=0 // pred_check
    %p119 = pneg %p14
  $region19: #{transformer_forward.22} parent=0 // pred_check_branch
    %121 = sbr.rel (%p119) target = $region21
  $region20: #{transformer_forward.22} parent=0 // pred_region
    %v122 = vld [vmem:[#allocation2] sm:$0xff]
    %v123 = vld [vmem:[#allocation2 + $0x8] sm:$0xff]
    %v124 = vld [vmem:[%s2] sm:$0x1]
    %v126 = vlaneseq
    %v127 = vshrl.u32 %v126, 7
    %v128 = vsub.s32 0, %v127
    %v129 = vrot.slane %v124, %v128
    %v131 = vadd.f32 %v122, %v129
    %v132 = vadd.f32 %v123, %v129
    %133 = vst [vmem:[%s3] sm:$0xff] %v131
    %134 = vst [vmem:[%s3 + $0x8] sm:$0xff] %v132
  $region21: #{transformer_forward.22} parent=0 // pred_fallthru
    _
  // Predicated region
  $region22: #{transformer_forward.22} parent=0 // pred_check
    _
  $region23: #{transformer_forward.22} parent=0 // pred_check_branch
    %136 = sbr.rel (0) target = $region25
  $region24: #{transformer_forward.22} parent=0 // pred_region
    _
  $region25: #{transformer_forward.22} parent=0 // pred_fallthru
    _
  // Predicated region
  $region26: #{transformer_forward.22} parent=0 // pred_check
    _
  $region27: #{transformer_forward.22} parent=0 // pred_check_branch
    %138 = sbr.rel (0) target = $region29
  $region28: #{transformer_forward.22} parent=0 // pred_region
    _
  $region29: #{transformer_forward.22} parent=0 // pred_fallthru
    _

// kernel: transformer_forward.21
$region0: #{transformer_forward.21}
  #allocation0 [shape = 'u32[]', space=smem, size = 0x4, offset = 0x4, fixed_abs, tag = 'smem constant byte address 0x4 - core index']
  #allocation1 [shape = 'u32[144,128]{1,0:T(1,128)}', space=vmem, size = 0x12000, scoped, tag = 'internal scratch']
  %s0 = inlined_call_operand.vmem [shape: f32[2,8,384], index: 0, kind: input, shape index: {}]
  %s1 = inlined_call_operand.vmem [shape: f32[2,8,128], index: 1, kind: output, shape index: {}]
  %s2 = sld [smem:[#allocation0]]
  $region37: #{transformer_forward.21} parent=0
    _
  %s4 = ssub.s32 1, %s2
  %s5 = scalar_select 0, %s4, %s2
  loop: start=0, step=1, limit=4
  $region2: #{transformer_forward.21} parent=0 // loop_pre_header
    _
  $region3: #{transformer_forward.21} parent=0 // loop_header
    %s7 = sphi 0, %s11
    %p8 = scmp.ge.s32.totalorder %s7, 4
    %s17 = sphi 0, %s19
    %s20 = sphi 0, %s17
    %s21 = sphi 0, %s20
    %s37 = sphi 0, %s21
    %s43 = sphi 0, %s45
    %s46 = sphi 0, %s43
    %s47 = sphi 0, %s46
    %s63 = sphi 0, %s47
  $region4: #{transformer_forward.21} parent=0 // loop_header_branch
    %10 = sbr.rel (%p8) target = $region8
  $region5: #{transformer_forward.21} parent=0 // loop_body
    %s12 = ssub.s32 %s7, 1
    %s13 = ssub.s32 %s7, 2
    %s14 = sadd.s32 %s7, 1
    %s15 = ssub.s32 %s7, %s14
    %p16 = scmp.eq.s32.totalorder %s15, 0
    %s18 = sadd.s32 %s17, 1
    %s19 = scalar_select %p16, %s17, %s18
    %p22 = pneg %p16
    %p23 = scmp.eq.s32.totalorder %s7, 1
    %p24 = por %p22, %p23
    %p25 = scmp.ne.s32.totalorder %s17, %s20
    %p26 = scmp.eq.s32.totalorder %s7, 0
    %p27 = por %p25, %p26
    %p28 = scmp.ne.s32.totalorder %s17, %s20
    %p29 = scmp.eq.s32.totalorder %s12, 1
    %p30 = por %p28, %p29
    %p31 = scmp.ne.s32.totalorder %s20, %s21
    %p32 = scmp.eq.s32.totalorder %s12, 0
    %p33 = por %p31, %p32
    %p34 = scmp.ne.s32.totalorder %s20, %s21
    %p35 = scmp.eq.s32.totalorder %s13, 1
    %p36 = por %p34, %p35
    %p38 = scmp.ne.s32.totalorder %s21, %s37
    %p39 = scmp.eq.s32.totalorder %s13, 0
    %p40 = por %p38, %p39
    %s41 = ssub.s32 %s7, %s14
    %p42 = scmp.eq.s32.totalorder %s41, 0
    %s44 = sadd.s32 %s43, 1
    %s45 = scalar_select %p42, %s43, %s44
    %p48 = pneg %p42
    %p49 = scmp.eq.s32.totalorder %s7, 1
    %p50 = por %p48, %p49
    %p51 = scmp.ne.s32.totalorder %s43, %s46
    %p52 = scmp.eq.s32.totalorder %s7, 0
    %p53 = por %p51, %p52
    %p54 = scmp.ne.s32.totalorder %s43, %s46
    %p55 = scmp.eq.s32.totalorder %s12, 1
    %p56 = por %p54, %p55
    %p57 = scmp.ne.s32.totalorder %s46, %s47
    %p58 = scmp.eq.s32.totalorder %s12, 0
    %p59 = por %p57, %p58
    %p60 = scmp.ne.s32.totalorder %s46, %s47
    %p61 = scmp.eq.s32.totalorder %s13, 1
    %p62 = por %p60, %p61
    %p64 = scmp.ne.s32.totalorder %s47, %s63
    %p65 = scmp.eq.s32.totalorder %s13, 0
    %p66 = por %p64, %p65
    %p67 = scmp.le.s32.totalorder 1, %s7
    %p68 = scmp.lt.s32.totalorder %s7, 3
    %p69 = pnand %p67, %p68
    %p70 = pneg %p69
    // Predicated region
    $region9: #{transformer_forward.21} parent=5 // pred_check
      _
    $region10: #{transformer_forward.21} parent=5 // pred_check_branch
      %72 = sbr.rel (%p69) target = $region12
    $region11: #{transformer_forward.21} parent=5 // pred_region
      %s73 = ssub.s32 %s7, 1
    $region12: #{transformer_forward.21} parent=5 // pred_fallthru
      _
    %p74 = scmp.lt.s32.totalorder %s7, 2
    // Predicated region
    $region13: #{transformer_forward.21} parent=5 // pred_check
      %p75 = pneg %p74
    $region14: #{transformer_forward.21} parent=5 // pred_check_branch
      %77 = sbr.rel (%p75) target = $region16
    $region15: #{transformer_forward.21} parent=5 // pred_region
      // Predicated region
      $region17: #{transformer_forward.21} parent=15 // pred_check
        %p78 = pneg %p27
      $region18: #{transformer_forward.21} parent=15 // pred_check_branch
        %80 = sbr.rel (%p78) target = $region20
      $region19: #{transformer_forward.21} parent=15 // pred_region
        %p81 = scmp.lt.s32.totalorder %s7, 1
        %s82 = scalar_select %p81, %s7, 1
        %s83 = smul.addr %s82, 3
        %s84 = smul.addr %s83, 8
        %s85 = scalar_lea.vmem %s0, %s84
      $region20: #{transformer_forward.21} parent=15 // pred_fallthru
        _
    $region16: #{transformer_forward.21} parent=5 // pred_fallthru
      _
    %p86 = scmp.le.s32.totalorder 1, %s7
    %p87 = scmp.lt.s32.totalorder %s7, 3
    %p88 = pnand %p86, %p87
    %p89 = pneg %p88
    // Predicated region
    $region21: #{transformer_forward.21} parent=5 // pred_check
      _
    $region22: #{transformer_forward.21} parent=5 // pred_check_branch
      %91 = sbr.rel (%p88) target = $region24
    $region23: #{transformer_forward.21} parent=5 // pred_region
      %s92 = ssub.s32 %s7, 1
      %p93 = scmp.lt.s32.totalorder %s12, 1
      %s94 = scalar_select %p93, %s12, 1
      %s95 = smul.addr %s94, 3
      %s96 = smul.addr %s95, 8
      %s97 = scalar_lea.vmem %s0, %s96
      %p98 = pneg %p33
      %p99 = pneg %p30
      %p100 = pneg %p59
      %p101 = pneg %p56
      %p102 = scmp.lt.s32.totalorder %s12, 1
      %s103 = scalar_select %p102, %s12, 1
      %s104 = smul.addr %s103, 8
      %s105 = scalar_lea.vmem %s1, %s104
      %p106 = scmp.lt.s32.totalorder %s12, 1
      %s107 = scalar_select %p106, %s12, 1
      %s108 = smul.addr %s107, 3
      %s109 = smul.addr %s108, 8
      %s110 = scalar_lea.vmem %s0, %s109
      %p111 = scmp.lt.s32.totalorder %s12, 1
      %s112 = scalar_select %p111, %s12, 1
      %s113 = smul.addr %s112, 8
      %s114 = scalar_lea.vmem %s1, %s113
      %v115 = vld [vmem:[%s110] sm:$0xff]
      %v116 = vld [vmem:[%s110 + $0x8] sm:$0xff]
      %v117 = vld [vmem:[%s110 + $0x10] sm:$0xff]
      %v118 = vmul.f32 %v115, 0.25
      %vm119 = vcmask 130048
      %v121 = vsel %vm119, %v118, 0
      %v124 = vsel %vm119, %v116, 0
      %126 = vmatprep.subr.mxu0 0.0
      %127 = vmatpush1.xpose.msra.mxu0 %v124
      %128 = vmatprep.subr.mxu0 0.0
      %129 = vmatpush1.xpose.msra.mxu0 0.0
      %130 = vmatprep.subr.mxu0 0.0
      %131 = vmatpush1.xpose.msra.mxu0 0.0
      %132 = vmatprep.subr.mxu0 0.0
      %133 = vmatpush1.xpose.msra.mxu0 0.0
      %134 = vmatprep.subr.mxu0 0.0
      %135 = vmatpush1.xpose.msra.mxu0 0.0
      %136 = vmatprep.subr.mxu0 0.0
      %137 = vmatpush1.xpose.msra.mxu0 0.0
      %138 = vmatprep.subr.mxu0 0.0
      %139 = vmatpush1.xpose.msra.mxu0 0.0
      %140 = vmatprep.subr.mxu0 0.0
      %141 = vmatpush1.xpose.msra.mxu0 0.0
      %142 = vmatprep.subr.mxu0 0.0
      %143 = vmatpush1.xpose.msra.mxu0 0.0
      %144 = vmatprep.subr.mxu0 0.0
      %145 = vmatpush1.xpose.msra.mxu0 0.0
      %146 = vmatprep.subr.mxu0 0.0
      %147 = vmatpush1.xpose.msra.mxu0 0.0
      %148 = vmatprep.subr.mxu0 0.0
      %149 = vmatpush1.xpose.msra.mxu0 0.0
      %150 = vmatprep.subr.mxu0 0.0
      %151 = vmatpush1.xpose.msra.mxu0 0.0
      %152 = vmatprep.subr.mxu0 0.0
      %153 = vmatpush1.xpose.msra.mxu0 0.0
      %154 = vmatprep.subr.mxu0 0.0
      %155 = vmatpush1.xpose.msra.mxu0 0.0
      %156 = vmatprep.subr.mxu0 0.0
      %157 = vmatpush1.xpose.msra.mxu0 0.0
      %158 = vmatprep.subr.mxu0 0.0
      %159 = vmatpush1.xpose.msra.mxu0 0.0
      %160 = vmatprep.subr.mxu0 0.0
      %161 = vmatpush1.xpose.msra.mxu0 0.0
      %162 = vmatprep.subr.mxu0 0.0
      %163 = vmatpush1.xpose.msra.mxu0 0.0
      %164 = vmatprep.subr.mxu0 0.0
      %165 = vmatpush1.xpose.msra.mxu0 0.0
      %166 = vmatprep.subr.mxu0 0.0
      %167 = vmatpush1.xpose.msra.mxu0 0.0
      %168 = vmatprep.subr.mxu0 0.0
      %169 = vmatpush1.xpose.msra.mxu0 0.0
      %170 = vmatprep.subr.mxu0 0.0
      %171 = vmatpush1.xpose.msra.mxu0 0.0
      %172 = vmatprep.subr.mxu0 0.0
      %173 = vmatpush1.xpose.msra.mxu0 0.0
      %174 = vmatprep.subr.mxu0 0.0
      %175 = vmatpush1.xpose.msra.mxu0 0.0
      %176 = vmatprep.subr.mxu0 0.0
      %177 = vmatpush1.xpose.msra.mxu0 0.0
      %178 = vmatprep.subr.mxu0 0.0
      %179 = vmatpush1.xpose.msra.mxu0 0.0
      %180 = vmatprep.subr.mxu0 0.0
      %181 = vmatpush1.xpose.msra.mxu0 0.0
      %182 = vmatprep.subr.mxu0 0.0
      %183 = vmatpush1.xpose.msra.mxu0 0.0
      %184 = vmatprep.subr.mxu0 0.0
      %185 = vmatpush1.xpose.msra.mxu0 0.0
      %186 = vmatprep.subr.mxu0 0.0
      %187 = vmatpush1.xpose.msra.mxu0 0.0
      %188 = vmatprep.subr.mxu0 0.0
      %189 = vmatpush1.xpose.msra.mxu0 0.0
      %190 = vmatprep.mubr.f32.mxu0 0.0
      %191 = vmatmul.mubr.f32.gmra.mrb[0].mxu0 %v121
      %v192 = vpop.f32.mrb[0].mxu0
      %v193 = vadd.f32 0.0, %v192
      %v194 = vpop.f32.mrb[0].mxu0
      %195 = vdwg.mxu0
      %vm196 = vcmask 64512
      %v197 = vsel %vm196, %v193, -inf
      %198 = vmax.xlane.f32.xlu0 %v197
      %v199 = vpop.xlane.xlu0 %198
      %v200 = vsub.f32 %v193, %v199
      %v201 = vmul.f32 %v200, 1.442695
      %v202 = vpow.pop %v201
      %v203 = vsel %vm196, %v202, 0.0
      %204 = vadd.xlane.f32.xlu0 %v203
      %v205 = vpop.xlane.xlu0 %204
      %v207 = vsel %vm196, %v202, 0
      %209 = vmatprep.subr.mxu0 0.0
      %210 = vmatpush1.msra.mxu0 %v117
      %211 = vmatprep.subr.mxu0 0.0
      %212 = vmatpush1.msra.mxu0 0.0
      %213 = vmatprep.subr.mxu0 0.0
      %214 = vmatpush1.msra.mxu0 0.0
      %215 = vmatprep.subr.mxu0 0.0
      %216 = vmatpush1.msra.mxu0 0.0
      %217 = vmatprep.subr.mxu0 0.0
      %218 = vmatpush1.msra.mxu0 0.0
      %219 = vmatprep.subr.mxu0 0.0
      %220 = vmatpush1.msra.mxu0 0.0
      %221 = vmatprep.subr.mxu0 0.0
      %222 = vmatpush1.msra.mxu0 0.0
      %223 = vmatprep.subr.mxu0 0.0
      %224 = vmatpush1.msra.mxu0 0.0
      %225 = vmatprep.subr.mxu0 0.0
      %226 = vmatpush1.msra.mxu0 0.0
      %227 = vmatprep.subr.mxu0 0.0
      %228 = vmatpush1.msra.mxu0 0.0
      %229 = vmatprep.subr.mxu0 0.0
      %230 = vmatpush1.msra.mxu0 0.0
      %231 = vmatprep.subr.mxu0 0.0
      %232 = vmatpush1.msra.mxu0 0.0
      %233 = vmatprep.subr.mxu0 0.0
      %234 = vmatpush1.msra.mxu0 0.0
      %235 = vmatprep.subr.mxu0 0.0
      %236 = vmatpush1.msra.mxu0 0.0
      %237 = vmatprep.subr.mxu0 0.0
      %238 = vmatpush1.msra.mxu0 0.0
      %239 = vmatprep.subr.mxu0 0.0
      %240 = vmatpush1.msra.mxu0 0.0
      %241 = vmatprep.subr.mxu0 0.0
      %242 = vmatpush1.msra.mxu0 0.0
      %243 = vmatprep.subr.mxu0 0.0
      %244 = vmatpush1.msra.mxu0 0.0
      %245 = vmatprep.subr.mxu0 0.0
      %246 = vmatpush1.msra.mxu0 0.0
      %247 = vmatprep.subr.mxu0 0.0
      %248 = vmatpush1.msra.mxu0 0.0
      %249 = vmatprep.subr.mxu0 0.0
      %250 = vmatpush1.msra.mxu0 0.0
      %251 = vmatprep.subr.mxu0 0.0
      %252 = vmatpush1.msra.mxu0 0.0
      %253 = vmatprep.subr.mxu0 0.0
      %254 = vmatpush1.msra.mxu0 0.0
      %255 = vmatprep.subr.mxu0 0.0
      %256 = vmatpush1.msra.mxu0 0.0
      %257 = vmatprep.subr.mxu0 0.0
      %258 = vmatpush1.msra.mxu0 0.0
      %259 = vmatprep.subr.mxu0 0.0
      %260 = vmatpush1.msra.mxu0 0.0
      %261 = vmatprep.subr.mxu0 0.0
      %262 = vmatpush1.msra.mxu0 0.0
      %263 = vmatprep.subr.mxu0 0.0
      %264 = vmatpush1.msra.mxu0 0.0
      %265 = vmatprep.subr.mxu0 0.0
      %266 = vmatpush1.msra.mxu0 0.0
      %267 = vmatprep.subr.mxu0 0.0
      %268 = vmatpush1.msra.mxu0 0.0
      %269 = vmatprep.subr.mxu0 0.0
      %270 = vmatpush1.msra.mxu0 0.0
      %271 = vmatprep.subr.mxu0 0.0
      %272 = vmatpush1.msra.mxu0 0.0
      %273 = vmatprep.mubr.f32.mxu0 0.0
      %274 = vmatmul.mubr.f32.gmra.mrb[0].mxu0 %v207
      %v275 = vpop.f32.mrb[0].mxu0
      %v276 = vadd.f32 0.0, %v275
      %v277 = vpop.f32.mrb[0].mxu0
      %278 = vdwg.mxu0
      %v279 = vrcp.pop %v205
      %v280 = vmul.f32 %v276, %v279
      %281 = vrot.lane.b32.xlu0 %v118, 112
      %v282 = vpop.permute.xlu0 %281
      %283 = vrot.lane.b32.xlu0 %v116, 112
      %v284 = vpop.permute.xlu0 %283
      %v285 = vsel %vm119, %v282, 0
      %v287 = vsel %vm119, %v284, 0
      %289 = vmatprep.subr.mxu0 0.0
      %290 = vmatpush1.xpose.msra.mxu0 %v287
      %291 = vmatprep.subr.mxu0 0.0
      %292 = vmatpush1.xpose.msra.mxu0 0.0
      %293 = vmatprep.subr.mxu0 0.0
      %294 = vmatpush1.xpose.msra.mxu0 0.0
      %295 = vmatprep.subr.mxu0 0.0
      %296 = vmatpush1.xpose.msra.mxu0 0.0
      %297 = vmatprep.subr.mxu0 0.0
      %298 = vmatpush1.xpose.msra.mxu0 0.0
      %299 = vmatprep.subr.mxu0 0.0
      %300 = vmatpush1.xpose.msra.mxu0 0.0
      %301 = vmatprep.subr.mxu0 0.0
      %302 = vmatpush1.xpose.msra.mxu0 0.0
      %303 = vmatprep.subr.mxu0 0.0
      %304 = vmatpush1.xpose.msra.mxu0 0.0
      %305 = vmatprep.subr.mxu0 0.0
      %306 = vmatpush1.xpose.msra.mxu0 0.0
      %307 = vmatprep.subr.mxu0 0.0
      %308 = vmatpush1.xpose.msra.mxu0 0.0
      %309 = vmatprep.subr.mxu0 0.0
      %310 = vmatpush1.xpose.msra.mxu0 0.0
      %311 = vmatprep.subr.mxu0 0.0
      %312 = vmatpush1.xpose.msra.mxu0 0.0
      %313 = vmatprep.subr.mxu0 0.0
      %314 = vmatpush1.xpose.msra.mxu0 0.0
      %315 = vmatprep.subr.mxu0 0.0
      %316 = vmatpush1.xpose.msra.mxu0 0.0
      %317 = vmatprep.subr.mxu0 0.0
      %318 = vmatpush1.xpose.msra.mxu0 0.0
      %319 = vmatprep.subr.mxu0 0.0
      %320 = vmatpush1.xpose.msra.mxu0 0.0
      %321 = vmatprep.subr.mxu0 0.0
      %322 = vmatpush1.xpose.msra.mxu0 0.0
      %323 = vmatprep.subr.mxu0 0.0
      %324 = vmatpush1.xpose.msra.mxu0 0.0
      %325 = vmatprep.subr.mxu0 0.0
      %326 = vmatpush1.xpose.msra.mxu0 0.0
      %327 = vmatprep.subr.mxu0 0.0
      %328 = vmatpush1.xpose.msra.mxu0 0.0
      %329 = vmatprep.subr.mxu0 0.0
      %330 = vmatpush1.xpose.msra.mxu0 0.0
      %331 = vmatprep.subr.mxu0 0.0
      %332 = vmatpush1.xpose.msra.mxu0 0.0
      %333 = vmatprep.subr.mxu0 0.0
      %334 = vmatpush1.xpose.msra.mxu0 0.0
      %335 = vmatprep.subr.mxu0 0.0
      %336 = vmatpush1.xpose.msra.mxu0 0.0
      %337 = vmatprep.subr.mxu0 0.0
      %338 = vmatpush1.xpose.msra.mxu0 0.0
      %339 = vmatprep.subr.mxu0 0.0
      %340 = vmatpush1.xpose.msra.mxu0 0.0
      %341 = vmatprep.subr.mxu0 0.0
      %342 = vmatpush1.xpose.msra.mxu0 0.0
      %343 = vmatprep.subr.mxu0 0.0
      %344 = vmatpush1.xpose.msra.mxu0 0.0
      %345 = vmatprep.subr.mxu0 0.0
      %346 = vmatpush1.xpose.msra.mxu0 0.0
      %347 = vmatprep.subr.mxu0 0.0
      %348 = vmatpush1.xpose.msra.mxu0 0.0
      %349 = vmatprep.subr.mxu0 0.0
      %350 = vmatpush1.xpose.msra.mxu0 0.0
      %351 = vmatprep.subr.mxu0 0.0
      %352 = vmatpush1.xpose.msra.mxu0 0.0
      %353 = vmatprep.mubr.f32.mxu0 0.0
      %354 = vmatmul.mubr.f32.gmra.mrb[0].mxu0 %v285
      %v355 = vpop.f32.mrb[0].mxu0
      %v356 = vadd.f32 0.0, %v355
      %v357 = vpop.f32.mrb[0].mxu0
      %358 = vdwg.mxu0
      %v359 = vsel %vm196, %v356, -inf
      %360 = vmax.xlane.f32.xlu0 %v359
      %v361 = vpop.xlane.xlu0 %360
      %v362 = vsub.f32 %v356, %v361
      %v363 = vmul.f32 %v362, 1.442695
      %v364 = vpow.pop %v363
      %v365 = vsel %vm196, %v364, 0.0
      %366 = vadd.xlane.f32.xlu0 %v365
      %v367 = vpop.xlane.xlu0 %366
      %369 = vrot.lane.b32.xlu0 %v117, 112
      %v370 = vpop.permute.xlu0 %369
      %v373 = vsel %vm196, %v364, 0
      %375 = vmatprep.subr.mxu0 0.0
      %376 = vmatpush1.msra.mxu0 %v370
      %377 = vmatprep.subr.mxu0 0.0
      %378 = vmatpush1.msra.mxu0 0.0
      %379 = vmatprep.subr.mxu0 0.0
      %380 = vmatpush1.msra.mxu0 0.0
      %381 = vmatprep.subr.mxu0 0.0
      %382 = vmatpush1.msra.mxu0 0.0
      %383 = vmatprep.subr.mxu0 0.0
      %384 = vmatpush1.msra.mxu0 0.0
      %385 = vmatprep.subr.mxu0 0.0
      %386 = vmatpush1.msra.mxu0 0.0
      %387 = vmatprep.subr.mxu0 0.0
      %388 = vmatpush1.msra.mxu0 0.0
      %389 = vmatprep.subr.mxu0 0.0
      %390 = vmatpush1.msra.mxu0 0.0
      %391 = vmatprep.subr.mxu0 0.0
      %392 = vmatpush1.msra.mxu0 0.0
      %393 = vmatprep.subr.mxu0 0.0
      %394 = vmatpush1.msra.mxu0 0.0
      %395 = vmatprep.subr.mxu0 0.0
      %396 = vmatpush1.msra.mxu0 0.0
      %397 = vmatprep.subr.mxu0 0.0
      %398 = vmatpush1.msra.mxu0 0.0
      %399 = vmatprep.subr.mxu0 0.0
      %400 = vmatpush1.msra.mxu0 0.0
      %401 = vmatprep.subr.mxu0 0.0
      %402 = vmatpush1.msra.mxu0 0.0
      %403 = vmatprep.subr.mxu0 0.0
      %404 = vmatpush1.msra.mxu0 0.0
      %405 = vmatprep.subr.mxu0 0.0
      %406 = vmatpush1.msra.mxu0 0.0
      %407 = vmatprep.subr.mxu0 0.0
      %408 = vmatpush1.msra.mxu0 0.0
      %409 = vmatprep.subr.mxu0 0.0
      %410 = vmatpush1.msra.mxu0 0.0
      %411 = vmatprep.subr.mxu0 0.0
      %412 = vmatpush1.msra.mxu0 0.0
      %413 = vmatprep.subr.mxu0 0.0
      %414 = vmatpush1.msra.mxu0 0.0
      %415 = vmatprep.subr.mxu0 0.0
      %416 = vmatpush1.msra.mxu0 0.0
      %417 = vmatprep.subr.mxu0 0.0
      %418 = vmatpush1.msra.mxu0 0.0
      %419 = vmatprep.subr.mxu0 0.0
      %420 = vmatpush1.msra.mxu0 0.0
      %421 = vmatprep.subr.mxu0 0.0
      %422 = vmatpush1.msra.mxu0 0.0
      %423 = vmatprep.subr.mxu0 0.0
      %424 = vmatpush1.msra.mxu0 0.0
      %425 = vmatprep.subr.mxu0 0.0
      %426 = vmatpush1.msra.mxu0 0.0
      %427 = vmatprep.subr.mxu0 0.0
      %428 = vmatpush1.msra.mxu0 0.0
      %429 = vmatprep.subr.mxu0 0.0
      %430 = vmatpush1.msra.mxu0 0.0
      %431 = vmatprep.subr.mxu0 0.0
      %432 = vmatpush1.msra.mxu0 0.0
      %433 = vmatprep.subr.mxu0 0.0
      %434 = vmatpush1.msra.mxu0 0.0
      %435 = vmatprep.subr.mxu0 0.0
      %436 = vmatpush1.msra.mxu0 0.0
      %437 = vmatprep.subr.mxu0 0.0
      %438 = vmatpush1.msra.mxu0 0.0
      %439 = vmatprep.mubr.f32.mxu0 0.0
      %440 = vmatmul.mubr.f32.gmra.mrb[0].mxu0 %v373
      %v441 = vpop.f32.mrb[0].mxu0
      %v442 = vadd.f32 0.0, %v441
      %v443 = vpop.f32.mrb[0].mxu0
      %444 = vdwg.mxu0
      %v445 = vrcp.pop %v367
      %v446 = vmul.f32 %v442, %v445
      %447 = vrot.lane.b32.xlu0 %v118, 96
      %v448 = vpop.permute.xlu0 %447
      %449 = vrot.lane.b32.xlu0 %v116, 96
      %v450 = vpop.permute.xlu0 %449
      %v451 = vsel %vm119, %v448, 0
      %v453 = vsel %vm119, %v450, 0
      %455 = vmatprep.subr.mxu0 0.0
      %456 = vmatpush1.xpose.msra.mxu0 %v453
      %457 = vmatprep.subr.mxu0 0.0
      %458 = vmatpush1.xpose.msra.mxu0 0.0
      %459 = vmatprep.subr.mxu0 0.0
      %460 = vmatpush1.xpose.msra.mxu0 0.0
      %461 = vmatprep.subr.mxu0 0.0
      %462 = vmatpush1.xpose.msra.mxu0 0.0
      %463 = vmatprep.subr.mxu0 0.0
      %464 = vmatpush1.xpose.msra.mxu0 0.0
      %465 = vmatprep.subr.mxu0 0.0
      %466 = vmatpush1.xpose.msra.mxu0 0.0
      %467 = vmatprep.subr.mxu0 0.0
      %468 = vmatpush1.xpose.msra.mxu0 0.0
      %469 = vmatprep.subr.mxu0 0.0
      %470 = vmatpush1.xpose.msra.mxu0 0.0
      %471 = vmatprep.subr.mxu0 0.0
      %472 = vmatpush1.xpose.msra.mxu0 0.0
      %473 = vmatprep.subr.mxu0 0.0
      %474 = vmatpush1.xpose.msra.mxu0 0.0
      %475 = vmatprep.subr.mxu0 0.0
      %476 = vmatpush1.xpose.msra.mxu0 0.0
      %477 = vmatprep.subr.mxu0 0.0
      %478 = vmatpush1.xpose.msra.mxu0 0.0
      %479 = vmatprep.subr.mxu0 0.0
      %480 = vmatpush1.xpose.msra.mxu0 0.0
      %481 = vmatprep.subr.mxu0 0.0
      %482 = vmatpush1.xpose.msra.mxu0 0.0
      %483 = vmatprep.subr.mxu0 0.0
      %484 = vmatpush1.xpose.msra.mxu0 0.0
      %485 = vmatprep.subr.mxu0 0.0
      %486 = vmatpush1.xpose.msra.mxu0 0.0
      %487 = vmatprep.subr.mxu0 0.0
      %488 = vmatpush1.xpose.msra.mxu0 0.0
      %489 = vmatprep.subr.mxu0 0.0
      %490 = vmatpush1.xpose.msra.mxu0 0.0
      %491 = vmatprep.subr.mxu0 0.0
      %492 = vmatpush1.xpose.msra.mxu0 0.0
      %493 = vmatprep.subr.mxu0 0.0
      %494 = vmatpush1.xpose.msra.mxu0 0.0
      %495 = vmatprep.subr.mxu0 0.0
      %496 = vmatpush1.xpose.msra.mxu0 0.0
      %497 = vmatprep.subr.mxu0 0.0
      %498 = vmatpush1.xpose.msra.mxu0 0.0
      %499 = vmatprep.subr.mxu0 0.0
      %500 = vmatpush1.xpose.msra.mxu0 0.0
      %501 = vmatprep.subr.mxu0 0.0
      %502 = vmatpush1.xpose.msra.mxu0 0.0
      %503 = vmatprep.subr.mxu0 0.0
      %504 = vmatpush1.xpose.msra.mxu0 0.0
      %505 = vmatprep.subr.mxu0 0.0
      %506 = vmatpush1.xpose.msra.mxu0 0.0
      %507 = vmatprep.subr.mxu0 0.0
      %508 = vmatpush1.xpose.msra.mxu0 0.0
      %509 = vmatprep.subr.mxu0 0.0
      %510 = vmatpush1.xpose.msra.mxu0 0.0
      %511 = vmatprep.subr.mxu0 0.0
      %512 = vmatpush1.xpose.msra.mxu0 0.0
      %513 = vmatprep.subr.mxu0 0.0
      %514 = vmatpush1.xpose.msra.mxu0 0.0
      %515 = vmatprep.subr.mxu0 0.0
      %516 = vmatpush1.xpose.msra.mxu0 0.0
      %517 = vmatprep.subr.mxu0 0.0
      %518 = vmatpush1.xpose.msra.mxu0 0.0
      %519 = vmatprep.mubr.f32.mxu0 0.0
      %520 = vmatmul.mubr.f32.gmra.mrb[0].mxu0 %v451
      %v521 = vpop.f32.mrb[0].mxu0
      %v522 = vadd.f32 0.0, %v521
      %v523 = vpop.f32.mrb[0].mxu0
      %524 = vdwg.mxu0
      %v525 = vsel %vm196, %v522, -inf
      %526 = vmax.xlane.f32.xlu0 %v525
      %v527 = vpop.xlane.xlu0 %526
      %v528 = vsub.f32 %v522, %v527
      %v529 = vmul.f32 %v528, 1.442695
      %v530 = vpow.pop %v529
      %v531 = vsel %vm196, %v530, 0.0
      %532 = vadd.xlane.f32.xlu0 %v531
      %v533 = vpop.xlane.xlu0 %532
      %534 = vrot.lane.b32.xlu0 %v117, 96
      %v535 = vpop.permute.xlu0 %534
      %v538 = vsel %vm196, %v530, 0
      %540 = vmatprep.subr.mxu0 0.0
      %541 = vmatpush1.msra.mxu0 %v535
      %542 = vmatprep.subr.mxu0 0.0
      %543 = vmatpush1.msra.mxu0 0.0
      %544 = vmatprep.subr.mxu0 0.0
      %545 = vmatpush1.msra.mxu0 0.0
      %546 = vmatprep.subr.mxu0 0.0
      %547 = vmatpush1.msra.mxu0 0.0
      %548 = vmatprep.subr.mxu0 0.0
      %549 = vmatpush1.msra.mxu0 0.0
      %550 = vmatprep.subr.mxu0 0.0
      %551 = vmatpush1.msra.mxu0 0.0
      %552 = vmatprep.subr.mxu0 0.0
      %553 = vmatpush1.msra.mxu0 0.0
      %554 = vmatprep.subr.mxu0 0.0
      %555 = vmatpush1.msra.mxu0 0.0
      %556 = vmatprep.subr.mxu0 0.0
      %557 = vmatpush1.msra.mxu0 0.0
      %558 = vmatprep.subr.mxu0 0.0
      %559 = vmatpush1.msra.mxu0 0.0
      %560 = vmatprep.subr.mxu0 0.0
      %561 = vmatpush1.msra.mxu0 0.0
      %562 = vmatprep.subr.mxu0 0.0
      %563 = vmatpush1.msra.mxu0 0.0
      %564 = vmatprep.subr.mxu0 0.0
      %565 = vmatpush1.msra.mxu0 0.0
      %566 = vmatprep.subr.mxu0 0.0
      %567 = vmatpush1.msra.mxu0 0.0
      %568 = vmatprep.subr.mxu0 0.0
      %569 = vmatpush1.msra.mxu0 0.0
      %570 = vmatprep.subr.mxu0 0.0
      %571 = vmatpush1.msra.mxu0 0.0
      %572 = vmatprep.subr.mxu0 0.0
      %573 = vmatpush1.msra.mxu0 0.0
      %574 = vmatprep.subr.mxu0 0.0
      %575 = vmatpush1.msra.mxu0 0.0
      %576 = vmatprep.subr.mxu0 0.0
      %577 = vmatpush1.msra.mxu0 0.0
      %578 = vmatprep.subr.mxu0 0.0
      %579 = vmatpush1.msra.mxu0 0.0
      %580 = vmatprep.subr.mxu0 0.0
      %581 = vmatpush1.msra.mxu0 0.0
      %582 = vmatprep.subr.mxu0 0.0
      %583 = vmatpush1.msra.mxu0 0.0
      %584 = vmatprep.subr.mxu0 0.0
      %585 = vmatpush1.msra.mxu0 0.0
      %586 = vmatprep.subr.mxu0 0.0
      %587 = vmatpush1.msra.mxu0 0.0
      %588 = vmatprep.subr.mxu0 0.0
      %589 = vmatpush1.msra.mxu0 0.0
      %590 = vmatprep.subr.mxu0 0.0
      %591 = vmatpush1.msra.mxu0 0.0
      %592 = vmatprep.subr.mxu0 0.0
      %593 = vmatpush1.msra.mxu0 0.0
      %594 = vmatprep.subr.mxu0 0.0
      %595 = vmatpush1.msra.mxu0 0.0
      %596 = vmatprep.subr.mxu0 0.0
      %597 = vmatpush1.msra.mxu0 0.0
      %598 = vmatprep.subr.mxu0 0.0
      %599 = vmatpush1.msra.mxu0 0.0
      %600 = vmatprep.subr.mxu0 0.0
      %601 = vmatpush1.msra.mxu0 0.0
      %602 = vmatprep.subr.mxu0 0.0
      %603 = vmatpush1.msra.mxu0 0.0
      %604 = vmatprep.mubr.f32.mxu0 0.0
      %605 = vmatmul.mubr.f32.gmra.mrb[0].mxu0 %v538
      %v606 = vpop.f32.mrb[0].mxu0
      %v607 = vadd.f32 0.0, %v606
      %v608 = vpop.f32.mrb[0].mxu0
      %609 = vdwg.mxu0
      %v610 = vrcp.pop %v533
      %v611 = vmul.f32 %v607, %v610
      %612 = vrot.lane.b32.xlu0 %v118, 80
      %v613 = vpop.permute.xlu0 %612
      %614 = vrot.lane.b32.xlu0 %v116, 80
      %v615 = vpop.permute.xlu0 %614
      %v616 = vsel %vm119, %v613, 0
      %v618 = vsel %vm119, %v615, 0
      %620 = vmatprep.subr.mxu0 0.0
      %621 = vmatpush1.xpose.msra.mxu0 %v618
      %622 = vmatprep.subr.mxu0 0.0
      %623 = vmatpush1.xpose.msra.mxu0 0.0
      %624 = vmatprep.subr.mxu0 0.0
      %625 = vmatpush1.xpose.msra.mxu0 0.0
      %626 = vmatprep.subr.mxu0 0.0
      %627 = vmatpush1.xpose.msra.mxu0 0.0
      %628 = vmatprep.subr.mxu0 0.0
      %629 = vmatpush1.xpose.msra.mxu0 0.0
      %630 = vmatprep.subr.mxu0 0.0
      %631 = vmatpush1.xpose.msra.mxu0 0.0
      %632 = vmatprep.subr.mxu0 0.0
      %633 = vmatpush1.xpose.msra.mxu0 0.0
      %634 = vmatprep.subr.mxu0 0.0
      %635 = vmatpush1.xpose.msra.mxu0 0.0
      %636 = vmatprep.subr.mxu0 0.0
      %637 = vmatpush1.xpose.msra.mxu0 0.0
      %638 = vmatprep.subr.mxu0 0.0
      %639 = vmatpush1.xpose.msra.mxu0 0.0
      %640 = vmatprep.subr.mxu0 0.0
      %641 = vmatpush1.xpose.msra.mxu0 0.0
      %642 = vmatprep.subr.mxu0 0.0
      %643 = vmatpush1.xpose.msra.mxu0 0.0
      %644 = vmatprep.subr.mxu0 0.0
      %645 = vmatpush1.xpose.msra.mxu0 0.0
      %646 = vmatprep.subr.mxu0 0.0
      %647 = vmatpush1.xpose.msra.mxu0 0.0
      %648 = vmatprep.subr.mxu0 0.0
      %649 = vmatpush1.xpose.msra.mxu0 0.0
      %650 = vmatprep.subr.mxu0 0.0
      %651 = vmatpush1.xpose.msra.mxu0 0.0
      %652 = vmatprep.subr.mxu0 0.0
      %653 = vmatpush1.xpose.msra.mxu0 0.0
      %654 = vmatprep.subr.mxu0 0.0
      %655 = vmatpush1.xpose.msra.mxu0 0.0
      %656 = vmatprep.subr.mxu0 0.0
      %657 = vmatpush1.xpose.msra.mxu0 0.0
      %658 = vmatprep.subr.mxu0 0.0
      %659 = vmatpush1.xpose.msra.mxu0 0.0
      %660 = vmatprep.subr.mxu0 0.0
      %661 = vmatpush1.xpose.msra.mxu0 0.0
      %662 = vmatprep.subr.mxu0 0.0
      %663 = vmatpush1.xpose.msra.mxu0 0.0
      %664 = vmatprep.subr.mxu0 0.0
      %665 = vmatpush1.xpose.msra.mxu0 0.0
      %666 = vmatprep.subr.mxu0 0.0
      %667 = vmatpush1.xpose.msra.mxu0 0.0
      %668 = vmatprep.subr.mxu0 0.0
      %669 = vmatpush1.xpose.msra.mxu0 0.0
      %670 = vmatprep.subr.mxu0 0.0
      %671 = vmatpush1.xpose.msra.mxu0 0.0
      %672 = vmatprep.subr.mxu0 0.0
      %673 = vmatpush1.xpose.msra.mxu0 0.0
      %674 = vmatprep.subr.mxu0 0.0
      %675 = vmatpush1.xpose.msra.mxu0 0.0
      %676 = vmatprep.subr.mxu0 0.0
      %677 = vmatpush1.xpose.msra.mxu0 0.0
      %678 = vmatprep.subr.mxu0 0.0
      %679 = vmatpush1.xpose.msra.mxu0 0.0
      %680 = vmatprep.subr.mxu0 0.0
      %681 = vmatpush1.xpose.msra.mxu0 0.0
      %682 = vmatprep.subr.mxu0 0.0
      %683 = vmatpush1.xpose.msra.mxu0 0.0
      %684 = vmatprep.mubr.f32.mxu0 0.0
      %685 = vmatmul.mubr.f32.gmra.mrb[0].mxu0 %v616
      %v686 = vpop.f32.mrb[0].mxu0
      %v687 = vadd.f32 0.0, %v686
      %v688 = vpop.f32.mrb[0].mxu0
      %689 = vdwg.mxu0
      %v690 = vsel %vm196, %v687, -inf
      %691 = vmax.xlane.f32.xlu0 %v690
      %v692 = vpop.xlane.xlu0 %691
      %v693 = vsub.f32 %v687, %v692
      %v694 = vmul.f32 %v693, 1.442695
      %v695 = vpow.pop %v694
      %v696 = vsel %vm196, %v695, 0.0
      %697 = vadd.xlane.f32.xlu0 %v696
      %v698 = vpop.xlane.xlu0 %697
      %699 = vrot.lane.b32.xlu0 %v117, 80
      %v700 = vpop.permute.xlu0 %699
      %v703 = vsel %vm196, %v695, 0
      %705 = vmatprep.subr.mxu0 0.0
      %706 = vmatpush1.msra.mxu0 %v700
      %707 = vmatprep.subr.mxu0 0.0
      %708 = vmatpush1.msra.mxu0 0.0
      %709 = vmatprep.subr.mxu0 0.0
      %710 = vmatpush1.msra.mxu0 0.0
      %711 = vmatprep.subr.mxu0 0.0
      %712 = vmatpush1.msra.mxu0 0.0
      %713 = vmatprep.subr.mxu0 0.0
      %714 = vmatpush1.msra.mxu0 0.0
      %715 = vmatprep.subr.mxu0 0.0
      %716 = vmatpush1.msra.mxu0 0.0
      %717 = vmatprep.subr.mxu0 0.0
      %718 = vmatpush1.msra.mxu0 0.0
      %719 = vmatprep.subr.mxu0 0.0
      %720 = vmatpush1.msra.mxu0 0.0
      %721 = vmatprep.subr.mxu0 0.0
      %722 = vmatpush1.msra.mxu0 0.0
      %723 = vmatprep.subr.mxu0 0.0
      %724 = vmatpush1.msra.mxu0 0.0
      %725 = vmatprep.subr.mxu0 0.0
      %726 = vmatpush1.msra.mxu0 0.0
      %727 = vmatprep.subr.mxu0 0.0
      %728 = vmatpush1.msra.mxu0 0.0
      %729 = vmatprep.subr.mxu0 0.0
      %730 = vmatpush1.msra.mxu0 0.0
      %731 = vmatprep.subr.mxu0 0.0
      %732 = vmatpush1.msra.mxu0 0.0
      %733 = vmatprep.subr.mxu0 0.0
      %734 = vmatpush1.msra.mxu0 0.0
      %735 = vmatprep.subr.mxu0 0.0
      %736 = vmatpush1.msra.mxu0 0.0
      %737 = vmatprep.subr.mxu0 0.0
      %738 = vmatpush1.msra.mxu0 0.0
      %739 = vmatprep.subr.mxu0 0.0
      %740 = vmatpush1.msra.mxu0 0.0
      %741 = vmatprep.subr.mxu0 0.0
      %742 = vmatpush1.msra.mxu0 0.0
      %743 = vmatprep.subr.mxu0 0.0
      %744 = vmatpush1.msra.mxu0 0.0
      %745 = vmatprep.subr.mxu0 0.0
      %746 = vmatpush1.msra.mxu0 0.0
      %747 = vmatprep.subr.mxu0 0.0
      %748 = vmatpush1.msra.mxu0 0.0
      %749 = vmatprep.subr.mxu0 0.0
      %750 = vmatpush1.msra.mxu0 0.0
      %751 = vmatprep.subr.mxu0 0.0
      %752 = vmatpush1.msra.mxu0 0.0
      %753 = vmatprep.subr.mxu0 0.0
      %754 = vmatpush1.msra.mxu0 0.0
      %755 = vmatprep.subr.mxu0 0.0
      %756 = vmatpush1.msra.mxu0 0.0
      %757 = vmatprep.subr.mxu0 0.0
      %758 = vmatpush1.msra.mxu0 0.0
      %759 = vmatprep.subr.mxu0 0.0
      %760 = vmatpush1.msra.mxu0 0.0
      %761 = vmatprep.subr.mxu0 0.0
      %762 = vmatpush1.msra.mxu0 0.0
      %763 = vmatprep.subr.mxu0 0.0
      %764 = vmatpush1.msra.mxu0 0.0
      %765 = vmatprep.subr.mxu0 0.0
      %766 = vmatpush1.msra.mxu0 0.0
      %767 = vmatprep.subr.mxu0 0.0
      %768 = vmatpush1.msra.mxu0 0.0
      %769 = vmatprep.mubr.f32.mxu0 0.0
      %770 = vmatmul.mubr.f32.gmra.mrb[0].mxu0 %v703
      %v771 = vpop.f32.mrb[0].mxu0
      %v772 = vadd.f32 0.0, %v771
      %v773 = vpop.f32.mrb[0].mxu0
      %774 = vdwg.mxu0
      %v775 = vrcp.pop %v698
      %v776 = vmul.f32 %v772, %v775
      %777 = vrot.lane.b32.xlu0 %v118, 64
      %v778 = vpop.permute.xlu0 %777
      %779 = vrot.lane.b32.xlu0 %v116, 64
      %v780 = vpop.permute.xlu0 %779
      %v781 = vsel %vm119, %v778, 0
      %v783 = vsel %vm119, %v780, 0
      %785 = vmatprep.subr.mxu0 0.0
      %786 = vmatpush1.xpose.msra.mxu0 %v783
      %787 = vmatprep.subr.mxu0 0.0
      %788 = vmatpush1.xpose.msra.mxu0 0.0
      %789 = vmatprep.subr.mxu0 0.0
      %790 = vmatpush1.xpose.msra.mxu0 0.0
      %791 = vmatprep.subr.mxu0 0.0
      %792 = vmatpush1.xpose.msra.mxu0 0.0
      %793 = vmatprep.subr.mxu0 0.0
      %794 = vmatpush1.xpose.msra.mxu0 0.0
      %795 = vmatprep.subr.mxu0 0.0
      %796 = vmatpush1.xpose.msra.mxu0 0.0
      %797 = vmatprep.subr.mxu0 0.0
      %798 = vmatpush1.xpose.msra.mxu0 0.0
      %799 = vmatprep.subr.mxu0 0.0
      %800 = vmatpush1.xpose.msra.mxu0 0.0
      %801 = vmatprep.subr.mxu0 0.0
      %802 = vmatpush1.xpose.msra.mxu0 0.0
      %803 = vmatprep.subr.mxu0 0.0
      %804 = vmatpush1.xpose.msra.mxu0 0.0
      %805 = vmatprep.subr.mxu0 0.0
      %806 = vmatpush1.xpose.msra.mxu0 0.0
      %807 = vmatprep.subr.mxu0 0.0
      %808 = vmatpush1.xpose.msra.mxu0 0.0
      %809 = vmatprep.subr.mxu0 0.0
      %810 = vmatpush1.xpose.msra.mxu0 0.0
      %811 = vmatprep.subr.mxu0 0.0
      %812 = vmatpush1.xpose.msra.mxu0 0.0
      %813 = vmatprep.subr.mxu0 0.0
      %814 = vmatpush1.xpose.msra.mxu0 0.0
      %815 = vmatprep.subr.mxu0 0.0
      %816 = vmatpush1.xpose.msra.mxu0 0.0
      %817 = vmatprep.subr.mxu0 0.0
      %818 = vmatpush1.xpose.msra.mxu0 0.0
      %819 = vmatprep.subr.mxu0 0.0
      %820 = vmatpush1.xpose.msra.mxu0 0.0
      %821 = vmatprep.subr.mxu0 0.0
      %822 = vmatpush1.xpose.msra.mxu0 0.0
      %823 = vmatprep.subr.mxu0 0.0
      %824 = vmatpush1.xpose.msra.mxu0 0.0
      %825 = vmatprep.subr.mxu0 0.0
      %826 = vmatpush1.xpose.msra.mxu0 0.0
      %827 = vmatprep.subr.mxu0 0.0
      %828 = vmatpush1.xpose.msra.mxu0 0.0
      %829 = vmatprep.subr.mxu0 0.0
      %830 = vmatpush1.xpose.msra.mxu0 0.0
      %831 = vmatprep.subr.mxu0 0.0
      %832 = vmatpush1.xpose.msra.mxu0 0.0
      %833 = vmatprep.subr.mxu0 0.0
      %834 = vmatpush1.xpose.msra.mxu0 0.0
      %835 = vmatprep.subr.mxu0 0.0
      %836 = vmatpush1.xpose.msra.mxu0 0.0
      %837 = vmatprep.subr.mxu0 0.0
      %838 = vmatpush1.xpose.msra.mxu0 0.0
      %839 = vmatprep.subr.mxu0 0.0
      %840 = vmatpush1.xpose.msra.mxu0 0.0
      %841 = vmatprep.subr.mxu0 0.0
      %842 = vmatpush1.xpose.msra.mxu0 0.0
      %843 = vmatprep.subr.mxu0 0.0
      %844 = vmatpush1.xpose.msra.mxu0 0.0
      %845 = vmatprep.subr.mxu0 0.0
      %846 = vmatpush1.xpose.msra.mxu0 0.0
      %847 = vmatprep.subr.mxu0 0.0
      %848 = vmatpush1.xpose.msra.mxu0 0.0
      %849 = vmatprep.mubr.f32.mxu0 0.0
      %850 = vmatmul.mubr.f32.gmra.mrb[0].mxu0 %v781
      %v851 = vpop.f32.mrb[0].mxu0
      %v852 = vadd.f32 0.0, %v851
      %v853 = vpop.f32.mrb[0].mxu0
      %854 = vdwg.mxu0
      %v855 = vsel %vm196, %v852, -inf
      %856 = vmax.xlane.f32.xlu0 %v855
      %v857 = vpop.xlane.xlu0 %856
      %v858 = vsub.f32 %v852, %v857
      %v859 = vmul.f32 %v858, 1.442695
      %v860 = vpow.pop %v859
      %v861 = vsel %vm196, %v860, 0.0
      %862 = vadd.xlane.f32.xlu0 %v861
      %v863 = vpop.xlane.xlu0 %862
      %864 = vrot.lane.b32.xlu0 %v117, 64
      %v865 = vpop.permute.xlu0 %864
      %v868 = vsel %vm196, %v860, 0
      %870 = vmatprep.subr.mxu0 0.0
      %871 = vmatpush1.msra.mxu0 %v865
      %872 = vmatprep.subr.mxu0 0.0
      %873 = vmatpush1.msra.mxu0 0.0
      %874 = vmatprep.subr.mxu0 0.0
      %875 = vmatpush1.msra.mxu0 0.0
      %876 = vmatprep.subr.mxu0 0.0
      %877 = vmatpush1.msra.mxu0 0.0
      %878 = vmatprep.subr.mxu0 0.0
      %879 = vmatpush1.msra.mxu0 0.0
      %880 = vmatprep.subr.mxu0 0.0
      %881 = vmatpush1.msra.mxu0 0.0
      %882 = vmatprep.subr.mxu0 0.0
      %883 = vmatpush1.msra.mxu0 0.0
      %884 = vmatprep.subr.mxu0 0.0
      %885 = vmatpush1.msra.mxu0 0.0
      %886 = vmatprep.subr.mxu0 0.0
      %887 = vmatpush1.msra.mxu0 0.0
      %888 = vmatprep.subr.mxu0 0.0
      %889 = vmatpush1.msra.mxu0 0.0
      %890 = vmatprep.subr.mxu0 0.0
      %891 = vmatpush1.msra.mxu0 0.0
      %892 = vmatprep.subr.mxu0 0.0
      %893 = vmatpush1.msra.mxu0 0.0
      %894 = vmatprep.subr.mxu0 0.0
      %895 = vmatpush1.msra.mxu0 0.0
      %896 = vmatprep.subr.mxu0 0.0
      %897 = vmatpush1.msra.mxu0 0.0
      %898 = vmatprep.subr.mxu0 0.0
      %899 = vmatpush1.msra.mxu0 0.0
      %900 = vmatprep.subr.mxu0 0.0
      %901 = vmatpush1.msra.mxu0 0.0
      %902 = vmatprep.subr.mxu0 0.0
      %903 = vmatpush1.msra.mxu0 0.0
      %904 = vmatprep.subr.mxu0 0.0
      %905 = vmatpush1.msra.mxu0 0.0
      %906 = vmatprep.subr.mxu0 0.0
      %907 = vmatpush1.msra.mxu0 0.0
      %908 = vmatprep.subr.mxu0 0.0
      %909 = vmatpush1.msra.mxu0 0.0
      %910 = vmatprep.subr.mxu0 0.0
      %911 = vmatpush1.msra.mxu0 0.0
      %912 = vmatprep.subr.mxu0 0.0
      %913 = vmatpush1.msra.mxu0 0.0
      %914 = vmatprep.subr.mxu0 0.0
      %915 = vmatpush1.msra.mxu0 0.0
      %916 = vmatprep.subr.mxu0 0.0
      %917 = vmatpush1.msra.mxu0 0.0
      %918 = vmatprep.subr.mxu0 0.0
      %919 = vmatpush1.msra.mxu0 0.0
      %920 = vmatprep.subr.mxu0 0.0
      %921 = vmatpush1.msra.mxu0 0.0
      %922 = vmatprep.subr.mxu0 0.0
      %923 = vmatpush1.msra.mxu0 0.0
      %924 = vmatprep.subr.mxu0 0.0
      %925 = vmatpush1.msra.mxu0 0.0
      %926 = vmatprep.subr.mxu0 0.0
      %927 = vmatpush1.msra.mxu0 0.0
      %928 = vmatprep.subr.mxu0 0.0
      %929 = vmatpush1.msra.mxu0 0.0
      %930 = vmatprep.subr.mxu0 0.0
      %931 = vmatpush1.msra.mxu0 0.0
      %932 = vmatprep.subr.mxu0 0.0
      %933 = vmatpush1.msra.mxu0 0.0
      %934 = vmatprep.mubr.f32.mxu0 0.0
      %935 = vmatmul.mubr.f32.gmra.mrb[0].mxu0 %v868
      %v936 = vpop.f32.mrb[0].mxu0
      %v937 = vadd.f32 0.0, %v936
      %v938 = vpop.f32.mrb[0].mxu0
      %939 = vdwg.mxu0
      %v940 = vrcp.pop %v863
      %v941 = vmul.f32 %v937, %v940
      %942 = vrot.lane.b32.xlu0 %v118, 48
      %v943 = vpop.permute.xlu0 %942
      %944 = vrot.lane.b32.xlu0 %v116, 48
      %v945 = vpop.permute.xlu0 %944
      %v946 = vsel %vm119, %v943, 0
      %v948 = vsel %vm119, %v945, 0
      %950 = vmatprep.subr.mxu0 0.0
      %951 = vmatpush1.xpose.msra.mxu0 %v948
      %952 = vmatprep.subr.mxu0 0.0
      %953 = vmatpush1.xpose.msra.mxu0 0.0
      %954 = vmatprep.subr.mxu0 0.0
      %955 = vmatpush1.xpose.msra.mxu0 0.0
      %956 = vmatprep.subr.mxu0 0.0
      %957 = vmatpush1.xpose.msra.mxu0 0.0
      %958 = vmatprep.subr.mxu0 0.0
      %959 = vmatpush1.xpose.msra.mxu0 0.0
      %960 = vmatprep.subr.mxu0 0.0
      %961 = vmatpush1.xpose.msra.mxu0 0.0
      %962 = vmatprep.subr.mxu0 0.0
      %963 = vmatpush1.xpose.msra.mxu0 0.0
      %964 = vmatprep.subr.mxu0 0.0
      %965 = vmatpush1.xpose.msra.mxu0 0.0
      %966 = vmatprep.subr.mxu0 0.0
      %967 = vmatpush1.xpose.msra.mxu0 0.0
      %968 = vmatprep.subr.mxu0 0.0
      %969 = vmatpush1.xpose.msra.mxu0 0.0
      %970 = vmatprep.subr.mxu0 0.0
      %971 = vmatpush1.xpose.msra.mxu0 0.0
      %972 = vmatprep.subr.mxu0 0.0
      %973 = vmatpush1.xpose.msra.mxu0 0.0
      %974 = vmatprep.subr.mxu0 0.0
      %975 = vmatpush1.xpose.msra.mxu0 0.0
      %976 = vmatprep.subr.mxu0 0.0
      %977 = vmatpush1.xpose.msra.mxu0 0.0
      %978 = vmatprep.subr.mxu0 0.0
      %979 = vmatpush1.xpose.msra.mxu0 0.0
      %980 = vmatprep.subr.mxu0 0.0
      %981 = vmatpush1.xpose.msra.mxu0 0.0
      %982 = vmatprep.subr.mxu0 0.0
      %983 = vmatpush1.xpose.msra.mxu0 0.0
      %984 = vmatprep.subr.mxu0 0.0
      %985 = vmatpush1.xpose.msra.mxu0 0.0
      %986 = vmatprep.subr.mxu0 0.0
      %987 = vmatpush1.xpose.msra.mxu0 0.0
      %988 = vmatprep.subr.mxu0 0.0
      %989 = vmatpush1.xpose.msra.mxu0 0.0
      %990 = vmatprep.subr.mxu0 0.0
      %991 = vmatpush1.xpose.msra.mxu0 0.0
      %992 = vmatprep.subr.mxu0 0.0
      %993 = vmatpush1.xpose.msra.mxu0 0.0
      %994 = vmatprep.subr.mxu0 0.0
      %995 = vmatpush1.xpose.msra.mxu0 0.0
      %996 = vmatprep.subr.mxu0 0.0
      %997 = vmatpush1.xpose.msra.mxu0 0.0
      %998 = vmatprep.subr.mxu0 0.0
      %999 = vmatpush1.xpose.msra.mxu0 0.0
      %1000 = vmatprep.subr.mxu0 0.0
      %1001 = vmatpush1.xpose.msra.mxu0 0.0
      %1002 = vmatprep.subr.mxu0 0.0
      %1003 = vmatpush1.xpose.msra.mxu0 0.0
      %1004 = vmatprep.subr.mxu0 0.0
      %1005 = vmatpush1.xpose.msra.mxu0 0.0
      %1006 = vmatprep.subr.mxu0 0.0
      %1007 = vmatpush1.xpose.msra.mxu0 0.0
      %1008 = vmatprep.subr.mxu0 0.0
      %1009 = vmatpush1.xpose.msra.mxu0 0.0
      %1010 = vmatprep.subr.mxu0 0.0
      %1011 = vmatpush1.xpose.msra.mxu0 0.0
      %1012 = vmatprep.subr.mxu0 0.0
      %1013 = vmatpush1.xpose.msra.mxu0 0.0
      %1014 = vmatprep.mubr.f32.mxu0 0.0
      %1015 = vmatmul.mubr.f32.gmra.mrb[0].mxu0 %v946
      %v1016 = vpop.f32.mrb[0].mxu0
      %v1017 = vadd.f32 0.0, %v1016
      %v1018 = vpop.f32.mrb[0].mxu0
      %1019 = vdwg.mxu0
      %v1020 = vsel %vm196, %v1017, -inf
      %1021 = vmax.xlane.f32.xlu0 %v1020
      %v1022 = vpop.xlane.xlu0 %1021
      %v1023 = vsub.f32 %v1017, %v1022
      %v1024 = vmul.f32 %v1023, 1.442695
      %v1025 = vpow.pop %v1024
      %v1026 = vsel %vm196, %v1025, 0.0
      %1027 = vadd.xlane.f32.xlu0 %v1026
      %v1028 = vpop.xlane.xlu0 %1027
      %1029 = vrot.lane.b32.xlu0 %v117, 48
      %v1030 = vpop.permute.xlu0 %1029
      %v1033 = vsel %vm196, %v1025, 0
      %1035 = vmatprep.subr.mxu0 0.0
      %1036 = vmatpush1.msra.mxu0 %v1030
      %1037 = vmatprep.subr.mxu0 0.0
      %1038 = vmatpush1.msra.mxu0 0.0
      %1039 = vmatprep.subr.mxu0 0.0
      %1040 = vmatpush1.msra.mxu0 0.0
      %1041 = vmatprep.subr.mxu0 0.0
      %1042 = vmatpush1.msra.mxu0 0.0
      %1043 = vmatprep.subr.mxu0 0.0
      %1044 = vmatpush1.msra.mxu0 0.0
      %1045 = vmatprep.subr.mxu0 0.0
      %1046 = vmatpush1.msra.mxu0 0.0
      %1047 = vmatprep.subr.mxu0 0.0
      %1048 = vmatpush1.msra.mxu0 0.0
      %1049 = vmatprep.subr.mxu0 0.0
      %1050 = vmatpush1.msra.mxu0 0.0
      %1051 = vmatprep.subr.mxu0 0.0
      %1052 = vmatpush1.msra.mxu0 0.0
      %1053 = vmatprep.subr.mxu0 0.0
      %1054 = vmatpush1.msra.mxu0 0.0
      %1055 = vmatprep.subr.mxu0 0.0
      %1056 = vmatpush1.msra.mxu0 0.0
      %1057 = vmatprep.subr.mxu0 0.0
      %1058 = vmatpush1.msra.mxu0 0.0
      %1059 = vmatprep.subr.mxu0 0.0
      %1060 = vmatpush1.msra.mxu0 0.0
      %1061 = vmatprep.subr.mxu0 0.0
      %1062 = vmatpush1.msra.mxu0 0.0
      %1063 = vmatprep.subr.mxu0 0.0
      %1064 = vmatpush1.msra.mxu0 0.0
      %1065 = vmatprep.subr.mxu0 0.0
      %1066 = vmatpush1.msra.mxu0 0.0
      %1067 = vmatprep.subr.mxu0 0.0
      %1068 = vmatpush1.msra.mxu0 0.0
      %1069 = vmatprep.subr.mxu0 0.0
      %1070 = vmatpush1.msra.mxu0 0.0
      %1071 = vmatprep.subr.mxu0 0.0
      %1072 = vmatpush1.msra.mxu0 0.0
      %1073 = vmatprep.subr.mxu0 0.0
      %1074 = vmatpush1.msra.mxu0 0.0
      %1075 = vmatprep.subr.mxu0 0.0
      %1076 = vmatpush1.msra.mxu0 0.0
      %1077 = vmatprep.subr.mxu0 0.0
      %1078 = vmatpush1.msra.mxu0 0.0
      %1079 = vmatprep.subr.mxu0 0.0
      %1080 = vmatpush1.msra.mxu0 0.0
      %1081 = vmatprep.subr.mxu0 0.0
      %1082 = vmatpush1.msra.mxu0 0.0
      %1083 = vmatprep.subr.mxu0 0.0
      %1084 = vmatpush1.msra.mxu0 0.0
      %1085 = vmatprep.subr.mxu0 0.0
      %1086 = vmatpush1.msra.mxu0 0.0
      %1087 = vmatprep.subr.mxu0 0.0
      %1088 = vmatpush1.msra.mxu0 0.0
      %1089 = vmatprep.subr.mxu0 0.0
      %1090 = vmatpush1.msra.mxu0 0.0
      %1091 = vmatprep.subr.mxu0 0.0
      %1092 = vmatpush1.msra.mxu0 0.0
      %1093 = vmatprep.subr.mxu0 0.0
      %1094 = vmatpush1.msra.mxu0 0.0
      %1095 = vmatprep.subr.mxu0 0.0
      %1096 = vmatpush1.msra.mxu0 0.0
      %1097 = vmatprep.subr.mxu0 0.0
      %1098 = vmatpush1.msra.mxu0 0.0
      %1099 = vmatprep.mubr.f32.mxu0 0.0
      %1100 = vmatmul.mubr.f32.gmra.mrb[0].mxu0 %v1033
      %v1101 = vpop.f32.mrb[0].mxu0
      %v1102 = vadd.f32 0.0, %v1101
      %v1103 = vpop.f32.mrb[0].mxu0
      %1104 = vdwg.mxu0
      %v1105 = vrcp.pop %v1028
      %v1106 = vmul.f32 %v1102, %v1105
      %1107 = vrot.lane.b32.xlu0 %v118, 32
      %v1108 = vpop.permute.xlu0 %1107
      %1109 = vrot.lane.b32.xlu0 %v116, 32
      %v1110 = vpop.permute.xlu0 %1109
      %v1111 = vsel %vm119, %v1108, 0
      %v1113 = vsel %vm119, %v1110, 0
      %1115 = vmatprep.subr.mxu0 0.0
      %1116 = vmatpush1.xpose.msra.mxu0 %v1113
      %1117 = vmatprep.subr.mxu0 0.0
      %1118 = vmatpush1.xpose.msra.mxu0 0.0
      %1119 = vmatprep.subr.mxu0 0.0
      %1120 = vmatpush1.xpose.msra.mxu0 0.0
      %1121 = vmatprep.subr.mxu0 0.0
      %1122 = vmatpush1.xpose.msra.mxu0 0.0
      %1123 = vmatprep.subr.mxu0 0.0
      %1124 = vmatpush1.xpose.msra.mxu0 0.0
      %1125 = vmatprep.subr.mxu0 0.0
      %1126 = vmatpush1.xpose.msra.mxu0 0.0
      %1127 = vmatprep.subr.mxu0 0.0
      %1128 = vmatpush1.xpose.msra.mxu0 0.0
      %1129 = vmatprep.subr.mxu0 0.0
      %1130 = vmatpush1.xpose.msra.mxu0 0.0
      %1131 = vmatprep.subr.mxu0 0.0
      %1132 = vmatpush1.xpose.msra.mxu0 0.0
      %1133 = vmatprep.subr.mxu0 0.0
      %1134 = vmatpush1.xpose.msra.mxu0 0.0
      %1135 = vmatprep.subr.mxu0 0.0
      %1136 = vmatpush1.xpose.msra.mxu0 0.0
      %1137 = vmatprep.subr.mxu0 0.0
      %1138 = vmatpush1.xpose.msra.mxu0 0.0
      %1139 = vmatprep.subr.mxu0 0.0
      %1140 = vmatpush1.xpose.msra.mxu0 0.0
      %1141 = vmatprep.subr.mxu0 0.0
      %1142 = vmatpush1.xpose.msra.mxu0 0.0
      %1143 = vmatprep.subr.mxu0 0.0
      %1144 = vmatpush1.xpose.msra.mxu0 0.0
      %1145 = vmatprep.subr.mxu0 0.0
      %1146 = vmatpush1.xpose.msra.mxu0 0.0
      %1147 = vmatprep.subr.mxu0 0.0
      %1148 = vmatpush1.xpose.msra.mxu0 0.0
      %1149 = vmatprep.subr.mxu0 0.0
      %1150 = vmatpush1.xpose.msra.mxu0 0.0
      %1151 = vmatprep.subr.mxu0 0.0
      %1152 = vmatpush1.xpose.msra.mxu0 0.0
      %1153 = vmatprep.subr.mxu0 0.0
      %1154 = vmatpush1.xpose.msra.mxu0 0.0
      %1155 = vmatprep.subr.mxu0 0.0
      %1156 = vmatpush1.xpose.msra.mxu0 0.0
      %1157 = vmatprep.subr.mxu0 0.0
      %1158 = vmatpush1.xpose.msra.mxu0 0.0
      %1159 = vmatprep.subr.mxu0 0.0
      %1160 = vmatpush1.xpose.msra.mxu0 0.0
      %1161 = vmatprep.subr.mxu0 0.0
      %1162 = vmatpush1.xpose.msra.mxu0 0.0
      %1163 = vmatprep.subr.mxu0 0.0
      %1164 = vmatpush1.xpose.msra.mxu0 0.0
      %1165 = vmatprep.subr.mxu0 0.0
      %1166 = vmatpush1.xpose.msra.mxu0 0.0
      %1167 = vmatprep.subr.mxu0 0.0
      %1168 = vmatpush1.xpose.msra.mxu0 0.0
      %1169 = vmatprep.subr.mxu0 0.0
      %1170 = vmatpush1.xpose.msra.mxu0 0.0
      %1171 = vmatprep.subr.mxu0 0.0
      %1172 = vmatpush1.xpose.msra.mxu0 0.0
      %1173 = vmatprep.subr.mxu0 0.0
      %1174 = vmatpush1.xpose.msra.mxu0 0.0
      %1175 = vmatprep.subr.mxu0 0.0
      %1176 = vmatpush1.xpose.msra.mxu0 0.0
      %1177 = vmatprep.subr.mxu0 0.0
      %1178 = vmatpush1.xpose.msra.mxu0 0.0
      %1179 = vmatprep.mubr.f32.mxu0 0.0
      %1180 = vmatmul.mubr.f32.gmra.mrb[0].mxu0 %v1111
      %v1181 = vpop.f32.mrb[0].mxu0
      %v1182 = vadd.f32 0.0, %v1181
      %v1183 = vpop.f32.mrb[0].mxu0
      %1184 = vdwg.mxu0
      %v1185 = vsel %vm196, %v1182, -inf
      %1186 = vmax.xlane.f32.xlu0 %v1185
      %v1187 = vpop.xlane.xlu0 %1186
      %v1188 = vsub.f32 %v1182, %v1187
      %v1189 = vmul.f32 %v1188, 1.442695
      %v1190 = vpow.pop %v1189
      %v1191 = vsel %vm196, %v1190, 0.0
      %1192 = vadd.xlane.f32.xlu0 %v1191
      %v1193 = vpop.xlane.xlu0 %1192
      %1194 = vrot.lane.b32.xlu0 %v117, 32
      %v1195 = vpop.permute.xlu0 %1194
      %v1198 = vsel %vm196, %v1190, 0
      %1200 = vmatprep.subr.mxu0 0.0
      %1201 = vmatpush1.msra.mxu0 %v1195
      %1202 = vmatprep.subr.mxu0 0.0
      %1203 = vmatpush1.msra.mxu0 0.0
      %1204 = vmatprep.subr.mxu0 0.0
      %1205 = vmatpush1.msra.mxu0 0.0
      %1206 = vmatprep.subr.mxu0 0.0
      %1207 = vmatpush1.msra.mxu0 0.0
      %1208 = vmatprep.subr.mxu0 0.0
      %1209 = vmatpush1.msra.mxu0 0.0
      %1210 = vmatprep.subr.mxu0 0.0
      %1211 = vmatpush1.msra.mxu0 0.0
      %1212 = vmatprep.subr.mxu0 0.0
      %1213 = vmatpush1.msra.mxu0 0.0
      %1214 = vmatprep.subr.mxu0 0.0
      %1215 = vmatpush1.msra.mxu0 0.0
      %1216 = vmatprep.subr.mxu0 0.0
      %1217 = vmatpush1.msra.mxu0 0.0
      %1218 = vmatprep.subr.mxu0 0.0
      %1219 = vmatpush1.msra.mxu0 0.0
      %1220 = vmatprep.subr.mxu0 0.0
      %1221 = vmatpush1.msra.mxu0 0.0
      %1222 = vmatprep.subr.mxu0 0.0
      %1223 = vmatpush1.msra.mxu0 0.0
      %1224 = vmatprep.subr.mxu0 0.0
      %1225 = vmatpush1.msra.mxu0 0.0
      %1226 = vmatprep.subr.mxu0 0.0
      %1227 = vmatpush1.msra.mxu0 0.0
      %1228 = vmatprep.subr.mxu0 0.0
      %1229 = vmatpush1.msra.mxu0 0.0
      %1230 = vmatprep.subr.mxu0 0.0
      %1231 = vmatpush1.msra.mxu0 0.0
      %1232 = vmatprep.subr.mxu0 0.0
      %1233 = vmatpush1.msra.mxu0 0.0
      %1234 = vmatprep.subr.mxu0 0.0
      %1235 = vmatpush1.msra.mxu0 0.0
      %1236 = vmatprep.subr.mxu0 0.0
      %1237 = vmatpush1.msra.mxu0 0.0
      %1238 = vmatprep.subr.mxu0 0.0
      %1239 = vmatpush1.msra.mxu0 0.0
      %1240 = vmatprep.subr.mxu0 0.0
      %1241 = vmatpush1.msra.mxu0 0.0
      %1242 = vmatprep.subr.mxu0 0.0
      %1243 = vmatpush1.msra.mxu0 0.0
      %1244 = vmatprep.subr.mxu0 0.0
      %1245 = vmatpush1.msra.mxu0 0.0
      %1246 = vmatprep.subr.mxu0 0.0
      %1247 = vmatpush1.msra.mxu0 0.0
      %1248 = vmatprep.subr.mxu0 0.0
      %1249 = vmatpush1.msra.mxu0 0.0
      %1250 = vmatprep.subr.mxu0 0.0
      %1251 = vmatpush1.msra.mxu0 0.0
      %1252 = vmatprep.subr.mxu0 0.0
      %1253 = vmatpush1.msra.mxu0 0.0
      %1254 = vmatprep.subr.mxu0 0.0
      %1255 = vmatpush1.msra.mxu0 0.0
      %1256 = vmatprep.subr.mxu0 0.0
      %1257 = vmatpush1.msra.mxu0 0.0
      %1258 = vmatprep.subr.mxu0 0.0
      %1259 = vmatpush1.msra.mxu0 0.0
      %1260 = vmatprep.subr.mxu0 0.0
      %1261 = vmatpush1.msra.mxu0 0.0
      %1262 = vmatprep.subr.mxu0 0.0
      %1263 = vmatpush1.msra.mxu0 0.0
      %1264 = vmatprep.mubr.f32.mxu0 0.0
      %1265 = vmatmul.mubr.f32.gmra.mrb[0].mxu0 %v1198
      %v1266 = vpop.f32.mrb[0].mxu0
      %v1267 = vadd.f32 0.0, %v1266
      %v1268 = vpop.f32.mrb[0].mxu0
      %1269 = vdwg.mxu0
      %v1270 = vrcp.pop %v1193
      %v1271 = vmul.f32 %v1267, %v1270
      %1272 = vrot.lane.b32.xlu0 %v118, 16
      %v1273 = vpop.permute.xlu0 %1272
      %1274 = vrot.lane.b32.xlu0 %v116, 16
      %v1275 = vpop.permute.xlu0 %1274
      %v1276 = vsel %vm119, %v1273, 0
      %v1278 = vsel %vm119, %v1275, 0
      %1280 = vmatprep.subr.mxu0 0.0
      %1281 = vmatpush1.xpose.msra.mxu0 %v1278
      %1282 = vmatprep.subr.mxu0 0.0
      %1283 = vmatpush1.xpose.msra.mxu0 0.0
      %1284 = vmatprep.subr.mxu0 0.0
      %1285 = vmatpush1.xpose.msra.mxu0 0.0
      %1286 = vmatprep.subr.mxu0 0.0
      %1287 = vmatpush1.xpose.msra.mxu0 0.0
      %1288 = vmatprep.subr.mxu0 0.0
      %1289 = vmatpush1.xpose.msra.mxu0 0.0
      %1290 = vmatprep.subr.mxu0 0.0
      %1291 = vmatpush1.xpose.msra.mxu0 0.0
      %1292 = vmatprep.subr.mxu0 0.0
      %1293 = vmatpush1.xpose.msra.mxu0 0.0
      %1294 = vmatprep.subr.mxu0 0.0
      %1295 = vmatpush1.xpose.msra.mxu0 0.0
      %1296 = vmatprep.subr.mxu0 0.0
      %1297 = vmatpush1.xpose.msra.mxu0 0.0
      %1298 = vmatprep.subr.mxu0 0.0
      %1299 = vmatpush1.xpose.msra.mxu0 0.0
      %1300 = vmatprep.subr.mxu0 0.0
      %1301 = vmatpush1.xpose.msra.mxu0 0.0
      %1302 = vmatprep.subr.mxu0 0.0
      %1303 = vmatpush1.xpose.msra.mxu0 0.0
      %1304 = vmatprep.subr.mxu0 0.0
      %1305 = vmatpush1.xpose.msra.mxu0 0.0
      %1306 = vmatprep.subr.mxu0 0.0
      %1307 = vmatpush1.xpose.msra.mxu0 0.0
      %1308 = vmatprep.subr.mxu0 0.0
      %1309 = vmatpush1.xpose.msra.mxu0 0.0
      %1310 = vmatprep.subr.mxu0 0.0
      %1311 = vmatpush1.xpose.msra.mxu0 0.0
      %1312 = vmatprep.subr.mxu0 0.0
      %1313 = vmatpush1.xpose.msra.mxu0 0.0
      %1314 = vmatprep.subr.mxu0 0.0
      %1315 = vmatpush1.xpose.msra.mxu0 0.0
      %1316 = vmatprep.subr.mxu0 0.0
      %1317 = vmatpush1.xpose.msra.mxu0 0.0
      %1318 = vmatprep.subr.mxu0 0.0
      %1319 = vmatpush1.xpose.msra.mxu0 0.0
      %1320 = vmatprep.subr.mxu0 0.0
      %1321 = vmatpush1.xpose.msra.mxu0 0.0
      %1322 = vmatprep.subr.mxu0 0.0
      %1323 = vmatpush1.xpose.msra.mxu0 0.0
      %1324 = vmatprep.subr.mxu0 0.0
      %1325 = vmatpush1.xpose.msra.mxu0 0.0
      %1326 = vmatprep.subr.mxu0 0.0
      %1327 = vmatpush1.xpose.msra.mxu0 0.0
      %1328 = vmatprep.subr.mxu0 0.0
      %1329 = vmatpush1.xpose.msra.mxu0 0.0
      %1330 = vmatprep.subr.mxu0 0.0
      %1331 = vmatpush1.xpose.msra.mxu0 0.0
      %1332 = vmatprep.subr.mxu0 0.0
      %1333 = vmatpush1.xpose.msra.mxu0 0.0
      %1334 = vmatprep.subr.mxu0 0.0
      %1335 = vmatpush1.xpose.msra.mxu0 0.0
      %1336 = vmatprep.subr.mxu0 0.0
      %1337 = vmatpush1.xpose.msra.mxu0 0.0
      %1338 = vmatprep.subr.mxu0 0.0
      %1339 = vmatpush1.xpose.msra.mxu0 0.0
      %1340 = vmatprep.subr.mxu0 0.0
      %1341 = vmatpush1.xpose.msra.mxu0 0.0
      %1342 = vmatprep.subr.mxu0 0.0
      %1343 = vmatpush1.xpose.msra.mxu0 0.0
      %1344 = vmatprep.mubr.f32.mxu0 0.0
      %1345 = vmatmul.mubr.f32.gmra.mrb[0].mxu0 %v1276
      %v1346 = vpop.f32.mrb[0].mxu0
      %v1347 = vadd.f32 0.0, %v1346
      %v1348 = vpop.f32.mrb[0].mxu0
      %1349 = vdwg.mxu0
      %v1350 = vsel %vm196, %v1347, -inf
      %1351 = vmax.xlane.f32.xlu0 %v1350
      %v1352 = vpop.xlane.xlu0 %1351
      %v1353 = vsub.f32 %v1347, %v1352
      %v1354 = vmul.f32 %v1353, 1.442695
      %v1355 = vpow.pop %v1354
      %v1356 = vsel %vm196, %v1355, 0.0
      %1357 = vadd.xlane.f32.xlu0 %v1356
      %v1358 = vpop.xlane.xlu0 %1357
      %1359 = vrot.lane.b32.xlu0 %v117, 16
      %v1360 = vpop.permute.xlu0 %1359
      %v1363 = vsel %vm196, %v1355, 0
      %1365 = vmatprep.subr.mxu0 0.0
      %1366 = vmatpush1.msra.mxu0 %v1360
      %1367 = vmatprep.subr.mxu0 0.0
      %1368 = vmatpush1.msra.mxu0 0.0
      %1369 = vmatprep.subr.mxu0 0.0
      %1370 = vmatpush1.msra.mxu0 0.0
      %1371 = vmatprep.subr.mxu0 0.0
      %1372 = vmatpush1.msra.mxu0 0.0
      %1373 = vmatprep.subr.mxu0 0.0
      %1374 = vmatpush1.msra.mxu0 0.0
      %1375 = vmatprep.subr.mxu0 0.0
      %1376 = vmatpush1.msra.mxu0 0.0
      %1377 = vmatprep.subr.mxu0 0.0
      %1378 = vmatpush1.msra.mxu0 0.0
      %1379 = vmatprep.subr.mxu0 0.0
      %1380 = vmatpush1.msra.mxu0 0.0
      %1381 = vmatprep.subr.mxu0 0.0
      %1382 = vmatpush1.msra.mxu0 0.0
      %1383 = vmatprep.subr.mxu0 0.0
      %1384 = vmatpush1.msra.mxu0 0.0
      %1385 = vmatprep.subr.mxu0 0.0
      %1386 = vmatpush1.msra.mxu0 0.0
      %1387 = vmatprep.subr.mxu0 0.0
      %1388 = vmatpush1.msra.mxu0 0.0
      %1389 = vmatprep.subr.mxu0 0.0
      %1390 = vmatpush1.msra.mxu0 0.0
      %1391 = vmatprep.subr.mxu0 0.0
      %1392 = vmatpush1.msra.mxu0 0.0
      %1393 = vmatprep.subr.mxu0 0.0
      %1394 = vmatpush1.msra.mxu0 0.0
      %1395 = vmatprep.subr.mxu0 0.0
      %1396 = vmatpush1.msra.mxu0 0.0
      %1397 = vmatprep.subr.mxu0 0.0
      %1398 = vmatpush1.msra.mxu0 0.0
      %1399 = vmatprep.subr.mxu0 0.0
      %1400 = vmatpush1.msra.mxu0 0.0
      %1401 = vmatprep.subr.mxu0 0.0
      %1402 = vmatpush1.msra.mxu0 0.0
      %1403 = vmatprep.subr.mxu0 0.0
      %1404 = vmatpush1.msra.mxu0 0.0
      %1405 = vmatprep.subr.mxu0 0.0
      %1406 = vmatpush1.msra.mxu0 0.0
      %1407 = vmatprep.subr.mxu0 0.0
      %1408 = vmatpush1.msra.mxu0 0.0
      %1409 = vmatprep.subr.mxu0 0.0
      %1410 = vmatpush1.msra.mxu0 0.0
      %1411 = vmatprep.subr.mxu0 0.0
      %1412 = vmatpush1.msra.mxu0 0.0
      %1413 = vmatprep.subr.mxu0 0.0
      %1414 = vmatpush1.msra.mxu0 0.0
      %1415 = vmatprep.subr.mxu0 0.0
      %1416 = vmatpush1.msra.mxu0 0.0
      %1417 = vmatprep.subr.mxu0 0.0
      %1418 = vmatpush1.msra.mxu0 0.0
      %1419 = vmatprep.subr.mxu0 0.0
      %1420 = vmatpush1.msra.mxu0 0.0
      %1421 = vmatprep.subr.mxu0 0.0
      %1422 = vmatpush1.msra.mxu0 0.0
      %1423 = vmatprep.subr.mxu0 0.0
      %1424 = vmatpush1.msra.mxu0 0.0
      %1425 = vmatprep.subr.mxu0 0.0
      %1426 = vmatpush1.msra.mxu0 0.0
      %1427 = vmatprep.subr.mxu0 0.0
      %1428 = vmatpush1.msra.mxu0 0.0
      %1429 = vmatprep.mubr.f32.mxu0 0.0
      %1430 = vmatmul.mubr.f32.gmra.mrb[0].mxu0 %v1363
      %v1431 = vpop.f32.mrb[0].mxu0
      %v1432 = vadd.f32 0.0, %v1431
      %v1433 = vpop.f32.mrb[0].mxu0
      %1434 = vdwg.mxu0
      %v1435 = vrcp.pop %v1358
      %v1436 = vmul.f32 %v1432, %v1435
      %1438 = vrot.lane.b32.xlu0 %v446, 16
      %v1439 = vpop.permute.xlu0 %1438
      %1442 = vrot.lane.b32.xlu0 %v611, 32
      %v1443 = vpop.permute.xlu0 %1442
      %1446 = vrot.lane.b32.xlu0 %v776, 48
      %v1447 = vpop.permute.xlu0 %1446
      %1450 = vrot.lane.b32.xlu0 %v941, 64
      %v1451 = vpop.permute.xlu0 %1450
      %1454 = vrot.lane.b32.xlu0 %v1106, 80
      %v1455 = vpop.permute.xlu0 %1454
      %1458 = vrot.lane.b32.xlu0 %v1271, 96
      %v1459 = vpop.permute.xlu0 %1458
      %1462 = vrot.lane.b32.xlu0 %v1436, 112
      %v1463 = vpop.permute.xlu0 %1462
      %v1465 = vsel %vm119, %v280, %v1439
      %vm1466 = vcmask 261120
      %v1467 = vsel %vm1466, %v1465, %v1443
      %vm1468 = vcmask 392192
      %v1469 = vsel %vm1468, %v1467, %v1447
      %vm1470 = vcmask 523264
      %v1471 = vsel %vm1470, %v1469, %v1451
      %vm1472 = vcmask 654336
      %v1473 = vsel %vm1472, %v1471, %v1455
      %vm1474 = vcmask 785408
      %v1475 = vsel %vm1474, %v1473, %v1459
      %vm1476 = vcmask 916480
      %v1477 = vsel %vm1476, %v1475, %v1463
      %1478 = vst [vmem:[%s114] sm:$0xff] %v1477
      %p1479 = scmp.lt.s32.totalorder %s12, 1
      %s1480 = scalar_select %p1479, %s12, 1
      %s1481 = smul.addr %s1480, 8
      %s1482 = scalar_lea.vmem %s1, %s1481
      // Predicated region
      $region25: #{transformer_forward.21} parent=23 // pred_check
        %p1483 = pneg %p56
      $region26: #{transformer_forward.21} parent=23 // pred_check_branch
        %1485 = sbr.rel (%p1483) target = $region28
      $region27: #{transformer_forward.21} parent=23 // pred_region
        _
      $region28: #{transformer_forward.21} parent=23 // pred_fallthru
        _
    $region24: #{transformer_forward.21} parent=5 // pred_fallthru
      _
    %p1486 = scmp.le.s32.totalorder 2, %s7
    // Predicated region
    $region29: #{transformer_forward.21} parent=5 // pred_check
      %p1487 = pneg %p1486
    $region30: #{transformer_forward.21} parent=5 // pred_check_branch
      %1489 = sbr.rel (%p1487) target = $region32
    $region31: #{transformer_forward.21} parent=5 // pred_region
      %s1490 = ssub.s32 %s7, 2
      // Predicated region
      $region33: #{transformer_forward.21} parent=31 // pred_check
        %p1491 = pneg %p62
      $region34: #{transformer_forward.21} parent=31 // pred_check_branch
        %1493 = sbr.rel (%p1491) target = $region36
      $region35: #{transformer_forward.21} parent=31 // pred_region
        %p1494 = scmp.lt.s32.totalorder %s13, 1
        %s1495 = scalar_select %p1494, %s13, 1
        %s1496 = smul.addr %s1495, 8
        %s1497 = scalar_lea.vmem %s1, %s1496
      $region36: #{transformer_forward.21} parent=31 // pred_fallthru
        _
    $region32: #{transformer_forward.21} parent=5 // pred_fallthru
      _
  $region6: #{transformer_forward.21} parent=0 // loop_footer
    %s11 = sadd.s32 1, %s7
  $region7: #{transformer_forward.21} parent=0 // loop_footer_branch
    %6 = sbr.rel target = $region3
  $region8: #{transformer_forward.21} parent=0 // loop_exit
    _

// kernel: transformer_forward.23
$region0: #{transformer_forward.23}
  #allocation0 [shape = 'u32[]', space=smem, size = 0x4, offset = 0x4, fixed_abs, tag = 'smem constant byte address 0x4 - core index']
  #allocation1 [shape = 'u32[144,128]{1,0:T(1,128)}', space=vmem, size = 0x12000, scoped, tag = 'internal scratch']
  %s0 = inlined_call_operand.vmem [shape: f32[16,128], index: 0, kind: input, shape index: {}]
  %s1 = inlined_call_operand.vmem [shape: f32[16,128], index: 1, kind: input, shape index: {}]
  %s2 = inlined_call_operand.vmem [shape: f32[1,128], index: 2, kind: input, shape index: {}]
  %s3 = inlined_call_operand.vmem [shape: f32[1,128], index: 3, kind: input, shape index: {}]
  %s4 = inlined_call_operand.vmem [shape: f32[16,128], index: 4, kind: output, shape index: {}]
  %s5 = sld [smem:[#allocation0]]
  $region26: #{transformer_forward.23} parent=0
    _
  %s7 = ssub.s32 1, %s5
  %s8 = scalar_select 0, %s7, %s5
  // Predicated region
  $region2: #{transformer_forward.23} parent=0 // pred_check
    _
  $region3: #{transformer_forward.23} parent=0 // pred_check_branch
    %10 = sbr.rel (0) target = $region5
  $region4: #{transformer_forward.23} parent=0 // pred_region
    _
  $region5: #{transformer_forward.23} parent=0 // pred_fallthru
    _
  // Predicated region
  $region6: #{transformer_forward.23} parent=0 // pred_check
    _
  $region7: #{transformer_forward.23} parent=0 // pred_check_branch
    %12 = sbr.rel (0) target = $region9
  $region8: #{transformer_forward.23} parent=0 // pred_region
    _
  $region9: #{transformer_forward.23} parent=0 // pred_fallthru
    _
  // Predicated region
  $region10: #{transformer_forward.23} parent=0 // pred_check
    _
  $region11: #{transformer_forward.23} parent=0 // pred_check_branch
    %14 = sbr.rel (0) target = $region13
  $region12: #{transformer_forward.23} parent=0 // pred_region
    _
  $region13: #{transformer_forward.23} parent=0 // pred_fallthru
    _
  // Predicated region
  $region14: #{transformer_forward.23} parent=0 // pred_check
    _
  $region15: #{transformer_forward.23} parent=0 // pred_check_branch
    %16 = sbr.rel (0) target = $region17
  $region16: #{transformer_forward.23} parent=0 // pred_region
    _
  $region17: #{transformer_forward.23} parent=0 // pred_fallthru
    _
  %v17 = vld [vmem:[%s0] sm:$0xff]
  %v18 = vld [vmem:[%s0 + $0x8] sm:$0xff]
  %v19 = vld [vmem:[%s1] sm:$0xff]
  %v20 = vld [vmem:[%s1 + $0x8] sm:$0xff]
  %v21 = vadd.f32 %v17, %v19
  %v22 = vadd.f32 %v18, %v20
  %23 = vadd.xlane.f32.xlu0 %v21
  %v24 = vpop.xlane.xlu0 %23
  %25 = vadd.xlane.f32.xlu0 %v22
  %v26 = vpop.xlane.xlu0 %25
  %v27 = vrcp.pop 128.0
  %v28 = vmul.f32 %v24, %v27
  %v29 = vmul.f32 %v26, %v27
  %v30 = vsub.f32 %v21, %v28
  %v31 = vsub.f32 %v22, %v29
  %v32 = vmul.f32 %v30, %v30
  %v33 = vmul.f32 %v31, %v31
  %34 = vadd.xlane.f32.xlu0 %v32
  %v35 = vpop.xlane.xlu0 %34
  %36 = vadd.xlane.f32.xlu0 %v33
  %v37 = vpop.xlane.xlu0 %36
  %v38 = vmul.f32 %v35, %v27
  %v39 = vmul.f32 %v37, %v27
  %v40 = vadd.f32 %v38, 1e-05
  %v41 = vadd.f32 %v39, 1e-05
  %v42 = vrsqrt.pop %v40
  %v43 = vrsqrt.pop %v41
  %v44 = vmul.f32 %v30, %v42
  %v45 = vmul.f32 %v31, %v43
  %v46 = vld [vmem:[%s2] sm:$0x1]
  %v48 = vlaneseq
  %v49 = vshrl.u32 %v48, 7
  %v50 = vsub.s32 0, %v49
  %v51 = vrot.slane %v46, %v50
  %v53 = vmul.f32 %v51, %v44
  %v54 = vmul.f32 %v51, %v45
  %v55 = vld [vmem:[%s3] sm:$0x1]
  %v57 = vlaneseq
  %v58 = vshrl.u32 %v57, 7
  %v59 = vsub.s32 0, %v58
  %v60 = vrot.slane %v55, %v59
  %v62 = vadd.f32 %v53, %v60
  %v63 = vadd.f32 %v54, %v60
  %64 = vst [vmem:[%s4] sm:$0xff] %v62
  %65 = vst [vmem:[%s4 + $0x8] sm:$0xff] %v63
  // Predicated region
  $region18: #{transformer_forward.23} parent=0 // pred_check
    _
  $region19: #{transformer_forward.23} parent=0 // pred_check_branch
    %67 = sbr.rel (0) target = $region21
  $region20: #{transformer_forward.23} parent=0 // pred_region
    _
  $region21: #{transformer_forward.23} parent=0 // pred_fallthru
    _
  // Predicated region
  $region22: #{transformer_forward.23} parent=0 // pred_check
    _
  $region23: #{transformer_forward.23} parent=0 // pred_check_branch
    %69 = sbr.rel (0) target = $region25
  $region24: #{transformer_forward.23} parent=0 // pred_region
    _
  $region25: #{transformer_forward.23} parent=0 // pred_fallthru
    _

// kernel: transformer_forward.25
$region0: #{transformer_forward.25}
  #allocation0 [shape = 'u32[]', space=smem, size = 0x4, offset = 0x4, fixed_abs, tag = 'smem constant byte address 0x4 - core index']
  #allocation1 [shape = 'u32[144,128]{1,0:T(1,128)}', space=vmem, size = 0x12000, scoped, tag = 'internal scratch']
  #allocation2 [shape = 'f32[16,128]{1,0:T(8,128)}', space=vmem, size = 0x2000, scoped, tag = 'scratch operand']
  %s0 = inlined_call_operand.vmem [shape: f32[16,256], index: 0, kind: input, shape index: {}]
  %s1 = inlined_call_operand.vmem [shape: f32[256,128], index: 1, kind: input, shape index: {}]
  %s2 = inlined_call_operand.vmem [shape: f32[1,128], index: 2, kind: input, shape index: {}]
  %s3 = inlined_call_operand.vmem [shape: f32[16,128], index: 3, kind: output, shape index: {}]
  %s4 = sld [smem:[#allocation0]]
  $region30: #{transformer_forward.25} parent=0
    _
  %s6 = ssub.s32 1, %s4
  %s7 = scalar_select 0, %s6, %s4
  // Predicated region
  $region2: #{transformer_forward.25} parent=0 // pred_check
    _
  $region3: #{transformer_forward.25} parent=0 // pred_check_branch
    %9 = sbr.rel (0) target = $region5
  $region4: #{transformer_forward.25} parent=0 // pred_region
    _
  $region5: #{transformer_forward.25} parent=0 // pred_fallthru
    _
  // Predicated region
  $region6: #{transformer_forward.25} parent=0 // pred_check
    _
  $region7: #{transformer_forward.25} parent=0 // pred_check_branch
    %11 = sbr.rel (0) target = $region9
  $region8: #{transformer_forward.25} parent=0 // pred_region
    _
  $region9: #{transformer_forward.25} parent=0 // pred_fallthru
    _
  // Predicated region
  $region10: #{transformer_forward.25} parent=0 // pred_check
    _
  $region11: #{transformer_forward.25} parent=0 // pred_check_branch
    %13 = sbr.rel (0) target = $region13
  $region12: #{transformer_forward.25} parent=0 // pred_region
    _
  $region13: #{transformer_forward.25} parent=0 // pred_fallthru
    _
  %p14 = scmp.eq.s32.totalorder 0, 0
  // Predicated region
  $region14: #{transformer_forward.25} parent=0 // pred_check
    %p15 = pneg %p14
  $region15: #{transformer_forward.25} parent=0 // pred_check_branch
    %17 = sbr.rel (%p15) target = $region17
  $region16: #{transformer_forward.25} parent=0 // pred_region
    %18 = vst [vmem:[#allocation2] sm:$0xff] 0.0
    %19 = vst [vmem:[#allocation2 + $0x8] sm:$0xff] 0.0
  $region17: #{transformer_forward.25} parent=0 // pred_fallthru
    _
  %v20 = vld [vmem:[#allocation2] sm:$0xff]
  %v21 = vld [vmem:[#allocation2 + $0x8] sm:$0xff]
  %v22 = vld [vmem:[%s0] sm:$0xff]
  %v23 = vld [vmem:[%s0 + $0x8] sm:$0xff]
  %v24 = vld [vmem:[%s0 + $0x10] sm:$0xff]
  %v25 = vld [vmem:[%s0 + $0x18] sm:$0xff]
  %v26 = vld [vmem:[%s1] sm:$0xff]
  %v27 = vld [vmem:[%s1 + $0x8] sm:$0xff]
  %v28 = vld [vmem:[%s1 + $0x10] sm:$0xff]
  %v29 = vld [vmem:[%s1 + $0x18] sm:$0xff]
  %v30 = vld [vmem:[%s1 + $0x20] sm:$0xff]
  %v31 = vld [vmem:[%s1 + $0x28] sm:$0xff]
  %v32 = vld [vmem:[%s1 + $0x30] sm:$0xff]
  %v33 = vld [vmem:[%s1 + $0x38] sm:$0xff]
  %v34 = vld [vmem:[%s1 + $0x40] sm:$0xff]
  %v35 = vld [vmem:[%s1 + $0x48] sm:$0xff]
  %v36 = vld [vmem:[%s1 + $0x50] sm:$0xff]
  %v37 = vld [vmem:[%s1 + $0x58] sm:$0xff]
  %v38 = vld [vmem:[%s1 + $0x60] sm:$0xff]
  %v39 = vld [vmem:[%s1 + $0x68] sm:$0xff]
  %v40 = vld [vmem:[%s1 + $0x70] sm:$0xff]
  %v41 = vld [vmem:[%s1 + $0x78] sm:$0xff]
  %v42 = vld [vmem:[%s1 + $0x80] sm:$0xff]
  %v43 = vld [vmem:[%s1 + $0x88] sm:$0xff]
  %v44 = vld [vmem:[%s1 + $0x90] sm:$0xff]
  %v45 = vld [vmem:[%s1 + $0x98] sm:$0xff]
  %v46 = vld [vmem:[%s1 + $0xa0] sm:$0xff]
  %v47 = vld [vmem:[%s1 + $0xa8] sm:$0xff]
  %v48 = vld [vmem:[%s1 + $0xb0] sm:$0xff]
  %v49 = vld [vmem:[%s1 + $0xb8] sm:$0xff]
  %v50 = vld [vmem:[%s1 + $0xc0] sm:$0xff]
  %v51 = vld [vmem:[%s1 + $0xc8] sm:$0xff]
  %v52 = vld [vmem:[%s1 + $0xd0] sm:$0xff]
  %v53 = vld [vmem:[%s1 + $0xd8] sm:$0xff]
  %v54 = vld [vmem:[%s1 + $0xe0] sm:$0xff]
  %v55 = vld [vmem:[%s1 + $0xe8] sm:$0xff]
  %v56 = vld [vmem:[%s1 + $0xf0] sm:$0xff]
  %v57 = vld [vmem:[%s1 + $0xf8] sm:$0xff]
  %58 = vmatprep.subr.mxu0 0.0
  %59 = vmatpush1.msra.mxu0 %v26
  %60 = vmatprep.subr.mxu0 0.0
  %61 = vmatpush1.msra.mxu0 %v27
  %62 = vmatprep.subr.mxu0 0.0
  %63 = vmatpush1.msra.mxu0 %v28
  %64 = vmatprep.subr.mxu0 0.0
  %65 = vmatpush1.msra.mxu0 %v29
  %66 = vmatprep.subr.mxu0 0.0
  %67 = vmatpush1.msra.mxu0 %v30
  %68 = vmatprep.subr.mxu0 0.0
  %69 = vmatpush1.msra.mxu0 %v31
  %70 = vmatprep.subr.mxu0 0.0
  %71 = vmatpush1.msra.mxu0 %v32
  %72 = vmatprep.subr.mxu0 0.0
  %73 = vmatpush1.msra.mxu0 %v33
  %74 = vmatprep.subr.mxu0 0.0
  %75 = vmatpush1.msra.mxu0 %v34
  %76 = vmatprep.subr.mxu0 0.0
  %77 = vmatpush1.msra.mxu0 %v35
  %78 = vmatprep.subr.mxu0 0.0
  %79 = vmatpush1.msra.mxu0 %v36
  %80 = vmatprep.subr.mxu0 0.0
  %81 = vmatpush1.msra.mxu0 %v37
  %82 = vmatprep.subr.mxu0 0.0
  %83 = vmatpush1.msra.mxu0 %v38
  %84 = vmatprep.subr.mxu0 0.0
  %85 = vmatpush1.msra.mxu0 %v39
  %86 = vmatprep.subr.mxu0 0.0
  %87 = vmatpush1.msra.mxu0 %v40
  %88 = vmatprep.subr.mxu0 0.0
  %89 = vmatpush1.msra.mxu0 %v41
  %90 = vmatprep.subr.mxu0 0.0
  %91 = vmatpush1.msra.mxu0 %v42
  %92 = vmatprep.subr.mxu0 0.0
  %93 = vmatpush1.msra.mxu0 %v43
  %94 = vmatprep.subr.mxu0 0.0
  %95 = vmatpush1.msra.mxu0 %v44
  %96 = vmatprep.subr.mxu0 0.0
  %97 = vmatpush1.msra.mxu0 %v45
  %98 = vmatprep.subr.mxu0 0.0
  %99 = vmatpush1.msra.mxu0 %v46
  %100 = vmatprep.subr.mxu0 0.0
  %101 = vmatpush1.msra.mxu0 %v47
  %102 = vmatprep.subr.mxu0 0.0
  %103 = vmatpush1.msra.mxu0 %v48
  %104 = vmatprep.subr.mxu0 0.0
  %105 = vmatpush1.msra.mxu0 %v49
  %106 = vmatprep.subr.mxu0 0.0
  %107 = vmatpush1.msra.mxu0 %v50
  %108 = vmatprep.subr.mxu0 0.0
  %109 = vmatpush1.msra.mxu0 %v51
  %110 = vmatprep.subr.mxu0 0.0
  %111 = vmatpush1.msra.mxu0 %v52
  %112 = vmatprep.subr.mxu0 0.0
  %113 = vmatpush1.msra.mxu0 %v53
  %114 = vmatprep.subr.mxu0 0.0
  %115 = vmatpush1.msra.mxu0 %v54
  %116 = vmatprep.subr.mxu0 0.0
  %117 = vmatpush1.msra.mxu0 %v55
  %118 = vmatprep.subr.mxu0 0.0
  %119 = vmatpush1.msra.mxu0 %v56
  %120 = vmatprep.subr.mxu0 0.0
  %121 = vmatpush1.msra.mxu0 %v57
  %122 = vmatprep.mubr.f32.mxu0 %v23
  %123 = vmatmul.mubr.f32.gmra.mrb[0].mxu0 %v22
  %v124 = vpop.f32.mrb[0].mxu0
  %v125 = vadd.f32 0.0, %v124
  %v126 = vpop.f32.mrb[0].mxu0
  %127 = vmatprep.mubr.f32.mxu0 %v25
  %128 = vmatmul.mubr.f32.gmra.mrb[0].mxu0 %v24
  %v129 = vpop.f32.mrb[0].mxu0
  %v130 = vadd.f32 0.0, %v129
  %v131 = vpop.f32.mrb[0].mxu0
  %132 = vdwg.mxu0
  %v133 = vadd.f32 %v20, %v125
  %v134 = vadd.f32 %v21, %v130
  %135 = vst [vmem:[#allocation2] sm:$0xff] %v133
  %136 = vst [vmem:[#allocation2 + $0x8] sm:$0xff] %v134
  // Predicated region
  $region18: #{transformer_forward.25} parent=0 // pred_check
    %p137 = pneg %p14
  $region19: #{transformer_forward.25} parent=0 // pred_check_branch
    %139 = sbr.rel (%p137) target = $region21
  $region20: #{transformer_forward.25} parent=0 // pred_region
    %v140 = vld [vmem:[#allocation2] sm:$0xff]
    %v141 = vld [vmem:[#allocation2 + $0x8] sm:$0xff]
    %v142 = vld [vmem:[%s2] sm:$0x1]
    %v144 = vlaneseq
    %v145 = vshrl.u32 %v144, 7
    %v146 = vsub.s32 0, %v145
    %v147 = vrot.slane %v142, %v146
    %v149 = vadd.f32 %v140, %v147
    %v150 = vadd.f32 %v141, %v147
    %151 = vst [vmem:[%s3] sm:$0xff] %v149
    %152 = vst [vmem:[%s3 + $0x8] sm:$0xff] %v150
  $region21: #{transformer_forward.25} parent=0 // pred_fallthru
    _
  // Predicated region
  $region22: #{transformer_forward.25} parent=0 // pred_check
    _
  $region23: #{transformer_forward.25} parent=0 // pred_check_branch
    %154 = sbr.rel (0) target = $region25
  $region24: #{transformer_forward.25} parent=0 // pred_region
    _
  $region25: #{transformer_forward.25} parent=0 // pred_fallthru
    _
  // Predicated region
  $region26: #{transformer_forward.25} parent=0 // pred_check
    _
  $region27: #{transformer_forward.25} parent=0 // pred_check_branch
    %156 = sbr.rel (0) target = $region29
  $region28: #{transformer_forward.25} parent=0 // pred_region
    _
  $region29: #{transformer_forward.25} parent=0 // pred_fallthru
    _

// kernel: transformer_forward.24
$region0: #{transformer_forward.24}
  #allocation0 [shape = 'u32[]', space=smem, size = 0x4, offset = 0x4, fixed_abs, tag = 'smem constant byte address 0x4 - core index']
  #allocation1 [shape = 'u32[144,128]{1,0:T(1,128)}', space=vmem, size = 0x12000, scoped, tag = 'internal scratch']
  #allocation2 [shape = 'f32[16,256]{1,0:T(8,128)}', space=vmem, size = 0x4000, scoped, tag = 'scratch operand']
  %s0 = inlined_call_operand.vmem [shape: f32[16,128], index: 0, kind: input, shape index: {}]
  %s1 = inlined_call_operand.vmem [shape: f32[128,256], index: 1, kind: input, shape index: {}]
  %s2 = inlined_call_operand.vmem [shape: f32[1,256], index: 2, kind: input, shape index: {}]
  %s3 = inlined_call_operand.vmem [shape: f32[16,256], index: 3, kind: output, shape index: {}]
  %s4 = sld [smem:[#allocation0]]
  $region30: #{transformer_forward.24} parent=0
    _
  %s6 = ssub.s32 1, %s4
  %s7 = scalar_select 0, %s6, %s4
  // Predicated region
  $region2: #{transformer_forward.24} parent=0 // pred_check
    _
  $region3: #{transformer_forward.24} parent=0 // pred_check_branch
    %9 = sbr.rel (0) target = $region5
  $region4: #{transformer_forward.24} parent=0 // pred_region
    _
  $region5: #{transformer_forward.24} parent=0 // pred_fallthru
    _
  // Predicated region
  $region6: #{transformer_forward.24} parent=0 // pred_check
    _
  $region7: #{transformer_forward.24} parent=0 // pred_check_branch
    %11 = sbr.rel (0) target = $region9
  $region8: #{transformer_forward.24} parent=0 // pred_region
    _
  $region9: #{transformer_forward.24} parent=0 // pred_fallthru
    _
  // Predicated region
  $region10: #{transformer_forward.24} parent=0 // pred_check
    _
  $region11: #{transformer_forward.24} parent=0 // pred_check_branch
    %13 = sbr.rel (0) target = $region13
  $region12: #{transformer_forward.24} parent=0 // pred_region
    _
  $region13: #{transformer_forward.24} parent=0 // pred_fallthru
    _
  %p14 = scmp.eq.s32.totalorder 0, 0
  // Predicated region
  $region14: #{transformer_forward.24} parent=0 // pred_check
    %p15 = pneg %p14
  $region15: #{transformer_forward.24} parent=0 // pred_check_branch
    %17 = sbr.rel (%p15) target = $region17
  $region16: #{transformer_forward.24} parent=0 // pred_region
    %18 = vst [vmem:[#allocation2] sm:$0xff] 0.0
    %19 = vst [vmem:[#allocation2 + $0x8] sm:$0xff] 0.0
    %20 = vst [vmem:[#allocation2 + $0x10] sm:$0xff] 0.0
    %21 = vst [vmem:[#allocation2 + $0x18] sm:$0xff] 0.0
  $region17: #{transformer_forward.24} parent=0 // pred_fallthru
    _
  %v22 = vld [vmem:[#allocation2] sm:$0xff]
  %v23 = vld [vmem:[#allocation2 + $0x8] sm:$0xff]
  %v24 = vld [vmem:[#allocation2 + $0x10] sm:$0xff]
  %v25 = vld [vmem:[#allocation2 + $0x18] sm:$0xff]
  %v26 = vld [vmem:[%s0] sm:$0xff]
  %v27 = vld [vmem:[%s0 + $0x8] sm:$0xff]
  %v28 = vld [vmem:[%s1] sm:$0xff]
  %v29 = vld [vmem:[%s1 + $0x8] sm:$0xff]
  %v30 = vld [vmem:[%s1 + $0x10] sm:$0xff]
  %v31 = vld [vmem:[%s1 + $0x18] sm:$0xff]
  %v32 = vld [vmem:[%s1 + $0x20] sm:$0xff]
  %v33 = vld [vmem:[%s1 + $0x28] sm:$0xff]
  %v34 = vld [vmem:[%s1 + $0x30] sm:$0xff]
  %v35 = vld [vmem:[%s1 + $0x38] sm:$0xff]
  %v36 = vld [vmem:[%s1 + $0x40] sm:$0xff]
  %v37 = vld [vmem:[%s1 + $0x48] sm:$0xff]
  %v38 = vld [vmem:[%s1 + $0x50] sm:$0xff]
  %v39 = vld [vmem:[%s1 + $0x58] sm:$0xff]
  %v40 = vld [vmem:[%s1 + $0x60] sm:$0xff]
  %v41 = vld [vmem:[%s1 + $0x68] sm:$0xff]
  %v42 = vld [vmem:[%s1 + $0x70] sm:$0xff]
  %v43 = vld [vmem:[%s1 + $0x78] sm:$0xff]
  %v44 = vld [vmem:[%s1 + $0x80] sm:$0xff]
  %v45 = vld [vmem:[%s1 + $0x88] sm:$0xff]
  %v46 = vld [vmem:[%s1 + $0x90] sm:$0xff]
  %v47 = vld [vmem:[%s1 + $0x98] sm:$0xff]
  %v48 = vld [vmem:[%s1 + $0xa0] sm:$0xff]
  %v49 = vld [vmem:[%s1 + $0xa8] sm:$0xff]
  %v50 = vld [vmem:[%s1 + $0xb0] sm:$0xff]
  %v51 = vld [vmem:[%s1 + $0xb8] sm:$0xff]
  %v52 = vld [vmem:[%s1 + $0xc0] sm:$0xff]
  %v53 = vld [vmem:[%s1 + $0xc8] sm:$0xff]
  %v54 = vld [vmem:[%s1 + $0xd0] sm:$0xff]
  %v55 = vld [vmem:[%s1 + $0xd8] sm:$0xff]
  %v56 = vld [vmem:[%s1 + $0xe0] sm:$0xff]
  %v57 = vld [vmem:[%s1 + $0xe8] sm:$0xff]
  %v58 = vld [vmem:[%s1 + $0xf0] sm:$0xff]
  %v59 = vld [vmem:[%s1 + $0xf8] sm:$0xff]
  %60 = vmatprep.subr.mxu0 %v29
  %61 = vmatpush1.msra.mxu0 %v28
  %62 = vmatprep.subr.mxu0 %v31
  %63 = vmatpush1.msra.mxu0 %v30
  %64 = vmatprep.subr.mxu0 %v33
  %65 = vmatpush1.msra.mxu0 %v32
  %66 = vmatprep.subr.mxu0 %v35
  %67 = vmatpush1.msra.mxu0 %v34
  %68 = vmatprep.subr.mxu0 %v37
  %69 = vmatpush1.msra.mxu0 %v36
  %70 = vmatprep.subr.mxu0 %v39
  %71 = vmatpush1.msra.mxu0 %v38
  %72 = vmatprep.subr.mxu0 %v41
  %73 = vmatpush1.msra.mxu0 %v40
  %74 = vmatprep.subr.mxu0 %v43
  %75 = vmatpush1.msra.mxu0 %v42
  %76 = vmatprep.subr.mxu0 %v45
  %77 = vmatpush1.msra.mxu0 %v44
  %78 = vmatprep.subr.mxu0 %v47
  %79 = vmatpush1.msra.mxu0 %v46
  %80 = vmatprep.subr.mxu0 %v49
  %81 = vmatpush1.msra.mxu0 %v48
  %82 = vmatprep.subr.mxu0 %v51
  %83 = vmatpush1.msra.mxu0 %v50
  %84 = vmatprep.subr.mxu0 %v53
  %85 = vmatpush1.msra.mxu0 %v52
  %86 = vmatprep.subr.mxu0 %v55
  %87 = vmatpush1.msra.mxu0 %v54
  %88 = vmatprep.subr.mxu0 %v57
  %89 = vmatpush1.msra.mxu0 %v56
  %90 = vmatprep.subr.mxu0 %v59
  %91 = vmatpush1.msra.mxu0 %v58
  %92 = vmatprep.subr.mxu0 0.0
  %93 = vmatpush1.msra.mxu0 0.0
  %94 = vmatprep.subr.mxu0 0.0
  %95 = vmatpush1.msra.mxu0 0.0
  %96 = vmatprep.subr.mxu0 0.0
  %97 = vmatpush1.msra.mxu0 0.0
  %98 = vmatprep.subr.mxu0 0.0
  %99 = vmatpush1.msra.mxu0 0.0
  %100 = vmatprep.subr.mxu0 0.0
  %101 = vmatpush1.msra.mxu0 0.0
  %102 = vmatprep.subr.mxu0 0.0
  %103 = vmatpush1.msra.mxu0 0.0
  %104 = vmatprep.subr.mxu0 0.0
  %105 = vmatpush1.msra.mxu0 0.0
  %106 = vmatprep.subr.mxu0 0.0
  %107 = vmatpush1.msra.mxu0 0.0
  %108 = vmatprep.subr.mxu0 0.0
  %109 = vmatpush1.msra.mxu0 0.0
  %110 = vmatprep.subr.mxu0 0.0
  %111 = vmatpush1.msra.mxu0 0.0
  %112 = vmatprep.subr.mxu0 0.0
  %113 = vmatpush1.msra.mxu0 0.0
  %114 = vmatprep.subr.mxu0 0.0
  %115 = vmatpush1.msra.mxu0 0.0
  %116 = vmatprep.subr.mxu0 0.0
  %117 = vmatpush1.msra.mxu0 0.0
  %118 = vmatprep.subr.mxu0 0.0
  %119 = vmatpush1.msra.mxu0 0.0
  %120 = vmatprep.subr.mxu0 0.0
  %121 = vmatpush1.msra.mxu0 0.0
  %122 = vmatprep.subr.mxu0 0.0
  %123 = vmatpush1.msra.mxu0 0.0
  %124 = vmatprep.mubr.f32.mxu0 0.0
  %125 = vmatmul.mubr.f32.gmra.mrb[0].mxu0 %v26
  %v126 = vpop.f32.mrb[0].mxu0
  %v127 = vadd.f32 0.0, %v126
  %v128 = vpop.f32.mrb[0].mxu0
  %v129 = vadd.f32 0.0, %v128
  %130 = vmatprep.mubr.f32.mxu0 0.0
  %131 = vmatmul.mubr.f32.gmra.mrb[0].mxu0 %v27
  %v132 = vpop.f32.mrb[0].mxu0
  %v133 = vadd.f32 0.0, %v132
  %v134 = vpop.f32.mrb[0].mxu0
  %v135 = vadd.f32 0.0, %v134
  %136 = vdwg.mxu0
  %v137 = vadd.f32 %v22, %v127
  %v138 = vadd.f32 %v23, %v129
  %v139 = vadd.f32 %v24, %v133
  %v140 = vadd.f32 %v25, %v135
  %141 = vst [vmem:[#allocation2] sm:$0xff] %v137
  %142 = vst [vmem:[#allocation2 + $0x8] sm:$0xff] %v138
  %143 = vst [vmem:[#allocation2 + $0x10] sm:$0xff] %v139
  %144 = vst [vmem:[#allocation2 + $0x18] sm:$0xff] %v140
  // Predicated region
  $region18: #{transformer_forward.24} parent=0 // pred_check
    %p145 = pneg %p14
  $region19: #{transformer_forward.24} parent=0 // pred_check_branch
    %147 = sbr.rel (%p145) target = $region21
  $region20: #{transformer_forward.24} parent=0 // pred_region
    %v148 = vld [vmem:[#allocation2] sm:$0xff]
    %v149 = vld [vmem:[#allocation2 + $0x8] sm:$0xff]
    %v150 = vld [vmem:[#allocation2 + $0x10] sm:$0xff]
    %v151 = vld [vmem:[#allocation2 + $0x18] sm:$0xff]
    %v152 = vld [vmem:[%s2] sm:$0x3]
    %v154 = vlaneseq
    %v155 = vshrl.u32 %v154, 7
    %v156 = vsub.s32 0, %v155
    %v157 = vrot.slane %v152, %v156
    %v158 = vlaneseq
    %v159 = vshrl.u32 %v158, 7
    %v160 = vsub.s32 1, %v159
    %v161 = vrot.slane %v152, %v160
    %v164 = vadd.f32 %v148, %v157
    %v165 = vadd.f32 %v149, %v161
    %v166 = vadd.f32 %v150, %v157
    %v167 = vadd.f32 %v151, %v161
    %v168 = vmax.f32 %v164, 0.0
    %v169 = vmax.f32 %v165, 0.0
    %v170 = vmax.f32 %v166, 0.0
    %v171 = vmax.f32 %v167, 0.0
    %172 = vst [vmem:[%s3] sm:$0xff] %v168
    %173 = vst [vmem:[%s3 + $0x8] sm:$0xff] %v169
    %174 = vst [vmem:[%s3 + $0x10] sm:$0xff] %v170
    %175 = vst [vmem:[%s3 + $0x18] sm:$0xff] %v171
  $region21: #{transformer_forward.24} parent=0 // pred_fallthru
    _
  // Predicated region
  $region22: #{transformer_forward.24} parent=0 // pred_check
    _
  $region23: #{transformer_forward.24} parent=0 // pred_check_branch
    %177 = sbr.rel (0) target = $region25
  $region24: #{transformer_forward.24} parent=0 // pred_region
    _
  $region25: #{transformer_forward.24} parent=0 // pred_fallthru
    _
  // Predicated region
  $region26: #{transformer_forward.24} parent=0 // pred_check
    _
  $region27: #{transformer_forward.24} parent=0 // pred_check_branch
    %179 = sbr.rel (0) target = $region29
  $region28: #{transformer_forward.24} parent=0 // pred_region
    _
  $region29: #{transformer_forward.24} parent=0 // pred_fallthru
    _

// kernel: transformer_forward.39
$region0: #{transformer_forward.39}
  #allocation0 [shape = 'u32[]', space=smem, size = 0x4, offset = 0x4, fixed_abs, tag = 'smem constant byte address 0x4 - core index']
  #allocation1 [shape = 'u32[144,128]{1,0:T(1,128)}', space=vmem, size = 0x12000, scoped, tag = 'internal scratch']
  #allocation2 [shape = 'f32[16,128]{1,0:T(8,128)}', space=vmem, size = 0x2000, scoped, tag = 'scratch operand']
  %s0 = inlined_call_operand.vmem [shape: f32[16,128], index: 0, kind: input, shape index: {}]
  %s1 = inlined_call_operand.vmem [shape: f32[128,128], index: 1, kind: input, shape index: {}]
  %s2 = inlined_call_operand.vmem [shape: f32[1,128], index: 2, kind: input, shape index: {}]
  %s3 = inlined_call_operand.hbm [shape: f32[16,128], index: 3, kind: output, shape index: {}]
  %s4 = sld [smem:[#allocation0]]
  $region30: #{transformer_forward.39} parent=0
    _
  %s6 = ssub.s32 1, %s4
  %s7 = scalar_select 0, %s6, %s4
  $region1: #{transformer_forward.39} parent=0
    #allocation3 [shape = 'u8[8192]{0}', space=vmem, size = 0x2000, scoped, tag = 'output window, operand 0, single buffered']
    #allocation4 [shape = 's32[1]{0}', space=sflag, size = 0x4, scoped, tag = 'scoped memory for transformer_forward.39']
    %8 = vsyncpa [#allocation4], 0
    // Predicated region
    $region2: #{transformer_forward.39} parent=1 // pred_check
      _
    $region3: #{transformer_forward.39} parent=1 // pred_check_branch
      %10 = sbr.rel (0) target = $region5
    $region4: #{transformer_forward.39} parent=1 // pred_region
      _
    $region5: #{transformer_forward.39} parent=1 // pred_fallthru
      _
    // Predicated region
    $region6: #{transformer_forward.39} parent=1 // pred_check
      _
    $region7: #{transformer_forward.39} parent=1 // pred_check_branch
      %12 = sbr.rel (0) target = $region9
    $region8: #{transformer_forward.39} parent=1 // pred_region
      _
    $region9: #{transformer_forward.39} parent=1 // pred_fallthru
      _
    // Predicated region
    $region10: #{transformer_forward.39} parent=1 // pred_check
      _
    $region11: #{transformer_forward.39} parent=1 // pred_check_branch
      %14 = sbr.rel (0) target = $region13
    $region12: #{transformer_forward.39} parent=1 // pred_region
      _
    $region13: #{transformer_forward.39} parent=1 // pred_fallthru
      _
    %p15 = scmp.eq.s32.totalorder 0, 0
    // Predicated region
    $region14: #{transformer_forward.39} parent=1 // pred_check
      %p16 = pneg %p15
    $region15: #{transformer_forward.39} parent=1 // pred_check_branch
      %18 = sbr.rel (%p16) target = $region17
    $region16: #{transformer_forward.39} parent=1 // pred_region
      %19 = vst [vmem:[#allocation2] sm:$0xff] 0.0
      %20 = vst [vmem:[#allocation2 + $0x8] sm:$0xff] 0.0
    $region17: #{transformer_forward.39} parent=1 // pred_fallthru
      _
    %v21 = vld [vmem:[#allocation2] sm:$0xff]
    %v22 = vld [vmem:[#allocation2 + $0x8] sm:$0xff]
    %v23 = vld [vmem:[%s0] sm:$0xff]
    %v24 = vld [vmem:[%s0 + $0x8] sm:$0xff]
    %v25 = vld [vmem:[%s1] sm:$0xff]
    %v26 = vld [vmem:[%s1 + $0x8] sm:$0xff]
    %v27 = vld [vmem:[%s1 + $0x10] sm:$0xff]
    %v28 = vld [vmem:[%s1 + $0x18] sm:$0xff]
    %v29 = vld [vmem:[%s1 + $0x20] sm:$0xff]
    %v30 = vld [vmem:[%s1 + $0x28] sm:$0xff]
    %v31 = vld [vmem:[%s1 + $0x30] sm:$0xff]
    %v32 = vld [vmem:[%s1 + $0x38] sm:$0xff]
    %v33 = vld [vmem:[%s1 + $0x40] sm:$0xff]
    %v34 = vld [vmem:[%s1 + $0x48] sm:$0xff]
    %v35 = vld [vmem:[%s1 + $0x50] sm:$0xff]
    %v36 = vld [vmem:[%s1 + $0x58] sm:$0xff]
    %v37 = vld [vmem:[%s1 + $0x60] sm:$0xff]
    %v38 = vld [vmem:[%s1 + $0x68] sm:$0xff]
    %v39 = vld [vmem:[%s1 + $0x70] sm:$0xff]
    %v40 = vld [vmem:[%s1 + $0x78] sm:$0xff]
    %41 = vmatprep.subr.mxu0 0.0
    %42 = vmatpush1.msra.mxu0 %v25
    %43 = vmatprep.subr.mxu0 0.0
    %44 = vmatpush1.msra.mxu0 %v26
    %45 = vmatprep.subr.mxu0 0.0
    %46 = vmatpush1.msra.mxu0 %v27
    %47 = vmatprep.subr.mxu0 0.0
    %48 = vmatpush1.msra.mxu0 %v28
    %49 = vmatprep.subr.mxu0 0.0
    %50 = vmatpush1.msra.mxu0 %v29
    %51 = vmatprep.subr.mxu0 0.0
    %52 = vmatpush1.msra.mxu0 %v30
    %53 = vmatprep.subr.mxu0 0.0
    %54 = vmatpush1.msra.mxu0 %v31
    %55 = vmatprep.subr.mxu0 0.0
    %56 = vmatpush1.msra.mxu0 %v32
    %57 = vmatprep.subr.mxu0 0.0
    %58 = vmatpush1.msra.mxu0 %v33
    %59 = vmatprep.subr.mxu0 0.0
    %60 = vmatpush1.msra.mxu0 %v34
    %61 = vmatprep.subr.mxu0 0.0
    %62 = vmatpush1.msra.mxu0 %v35
    %63 = vmatprep.subr.mxu0 0.0
    %64 = vmatpush1.msra.mxu0 %v36
    %65 = vmatprep.subr.mxu0 0.0
    %66 = vmatpush1.msra.mxu0 %v37
    %67 = vmatprep.subr.mxu0 0.0
    %68 = vmatpush1.msra.mxu0 %v38
    %69 = vmatprep.subr.mxu0 0.0
    %70 = vmatpush1.msra.mxu0 %v39
    %71 = vmatprep.subr.mxu0 0.0
    %72 = vmatpush1.msra.mxu0 %v40
    %73 = vmatprep.subr.mxu0 0.0
    %74 = vmatpush1.msra.mxu0 0.0
    %75 = vmatprep.subr.mxu0 0.0
    %76 = vmatpush1.msra.mxu0 0.0
    %77 = vmatprep.subr.mxu0 0.0
    %78 = vmatpush1.msra.mxu0 0.0
    %79 = vmatprep.subr.mxu0 0.0
    %80 = vmatpush1.msra.mxu0 0.0
    %81 = vmatprep.subr.mxu0 0.0
    %82 = vmatpush1.msra.mxu0 0.0
    %83 = vmatprep.subr.mxu0 0.0
    %84 = vmatpush1.msra.mxu0 0.0
    %85 = vmatprep.subr.mxu0 0.0
    %86 = vmatpush1.msra.mxu0 0.0
    %87 = vmatprep.subr.mxu0 0.0
    %88 = vmatpush1.msra.mxu0 0.0
    %89 = vmatprep.subr.mxu0 0.0
    %90 = vmatpush1.msra.mxu0 0.0
    %91 = vmatprep.subr.mxu0 0.0
    %92 = vmatpush1.msra.mxu0 0.0
    %93 = vmatprep.subr.mxu0 0.0
    %94 = vmatpush1.msra.mxu0 0.0
    %95 = vmatprep.subr.mxu0 0.0
    %96 = vmatpush1.msra.mxu0 0.0
    %97 = vmatprep.subr.mxu0 0.0
    %98 = vmatpush1.msra.mxu0 0.0
    %99 = vmatprep.subr.mxu0 0.0
    %100 = vmatpush1.msra.mxu0 0.0
    %101 = vmatprep.subr.mxu0 0.0
    %102 = vmatpush1.msra.mxu0 0.0
    %103 = vmatprep.subr.mxu0 0.0
    %104 = vmatpush1.msra.mxu0 0.0
    %105 = vmatprep.mubr.f32.mxu0 0.0
    %106 = vmatmul.mubr.f32.gmra.mrb[0].mxu0 %v23
    %v107 = vpop.f32.mrb[0].mxu0
    %v108 = vadd.f32 0.0, %v107
    %v109 = vpop.f32.mrb[0].mxu0
    %110 = vmatprep.mubr.f32.mxu0 0.0
    %111 = vmatmul.mubr.f32.gmra.mrb[0].mxu0 %v24
    %v112 = vpop.f32.mrb[0].mxu0
    %v113 = vadd.f32 0.0, %v112
    %v114 = vpop.f32.mrb[0].mxu0
    %115 = vdwg.mxu0
    %v116 = vadd.f32 %v21, %v108
    %v117 = vadd.f32 %v22, %v113
    %118 = vst [vmem:[#allocation2] sm:$0xff] %v116
    %119 = vst [vmem:[#allocation2 + $0x8] sm:$0xff] %v117
    // Predicated region
    $region18: #{transformer_forward.39} parent=1 // pred_check
      %p120 = pneg %p15
    $region19: #{transformer_forward.39} parent=1 // pred_check_branch
      %122 = sbr.rel (%p120) target = $region21
    $region20: #{transformer_forward.39} parent=1 // pred_region
      %v123 = vld [vmem:[#allocation2] sm:$0xff]
      %v124 = vld [vmem:[#allocation2 + $0x8] sm:$0xff]
      %v125 = vld [vmem:[%s2] sm:$0x1]
      %v127 = vlaneseq
      %v128 = vshrl.u32 %v127, 7
      %v129 = vsub.s32 0, %v128
      %v130 = vrot.slane %v125, %v129
      %v132 = vadd.f32 %v123, %v130
      %v133 = vadd.f32 %v124, %v130
      %134 = vst [vmem:[#allocation3] sm:$0xff] %v132
      %135 = vst [vmem:[#allocation3 + $0x8] sm:$0xff] %v133
    $region21: #{transformer_forward.39} parent=1 // pred_fallthru
      _
    // Predicated region
    $region22: #{transformer_forward.39} parent=1 // pred_check
      _
    $region23: #{transformer_forward.39} parent=1 // pred_check_branch
      %137 = sbr.rel (0) target = $region25
    $region24: #{transformer_forward.39} parent=1 // pred_region
      %s139 = ssub.s32 256, 256
      %140 = vsyncadd [#allocation4], %s139
      %s141 = sshll.u32 [#allocation3], 4
      %s142 = int_to_ptr.vmem [resolvable:$true] %s141
      %147 = dma.vmem_to_hbm [thread:$0]  %s142, 256, %s3, [#allocation4], 128, 128, 8
    $region25: #{transformer_forward.39} parent=1 // pred_fallthru
      _
    // Predicated region
    $region26: #{transformer_forward.39} parent=1 // pred_check
      _
    $region27: #{transformer_forward.39} parent=1 // pred_check_branch
      %149 = sbr.rel (0) target = $region29
    $region28: #{transformer_forward.39} parent=1 // pred_region
      %150 = dma.done [#allocation4], 256
    $region29: #{transformer_forward.39} parent=1 // pred_fallthru
      _
    %151 = vsyncpa [#allocation4], 1

// kernel: transformer_forward.31
$region0: #{transformer_forward.31}
  #allocation0 [shape = 'u32[]', space=smem, size = 0x4, offset = 0x4, fixed_abs, tag = 'smem constant byte address 0x4 - core index']
  #allocation1 [shape = 'u32[144,128]{1,0:T(1,128)}', space=vmem, size = 0x12000, scoped, tag = 'internal scratch']
  #allocation2 [shape = 'f32[16,256]{1,0:T(8,128)}', space=vmem, size = 0x4000, scoped, tag = 'scratch operand']
  %s0 = inlined_call_operand.vmem [shape: f32[16,128], index: 0, kind: input, shape index: {}]
  %s1 = inlined_call_operand.vmem [shape: f32[128,256], index: 1, kind: input, shape index: {}]
  %s2 = inlined_call_operand.vmem [shape: f32[1,256], index: 2, kind: input, shape index: {}]
  %s3 = inlined_call_operand.vmem [shape: f32[16,256], index: 3, kind: output, shape index: {}]
  %s4 = sld [smem:[#allocation0]]
  $region30: #{transformer_forward.31} parent=0
    _
  %s6 = ssub.s32 1, %s4
  %s7 = scalar_select 0, %s6, %s4
  // Predicated region
  $region2: #{transformer_forward.31} parent=0 // pred_check
    _
  $region3: #{transformer_forward.31} parent=0 // pred_check_branch
    %9 = sbr.rel (0) target = $region5
  $region4: #{transformer_forward.31} parent=0 // pred_region
    _
  $region5: #{transformer_forward.31} parent=0 // pred_fallthru
    _
  // Predicated region
  $region6: #{transformer_forward.31} parent=0 // pred_check
    _
  $region7: #{transformer_forward.31} parent=0 // pred_check_branch
    %11 = sbr.rel (0) target = $region9
  $region8: #{transformer_forward.31} parent=0 // pred_region
    _
  $region9: #{transformer_forward.31} parent=0 // pred_fallthru
    _
  // Predicated region
  $region10: #{transformer_forward.31} parent=0 // pred_check
    _
  $region11: #{transformer_forward.31} parent=0 // pred_check_branch
    %13 = sbr.rel (0) target = $region13
  $region12: #{transformer_forward.31} parent=0 // pred_region
    _
  $region13: #{transformer_forward.31} parent=0 // pred_fallthru
    _
  %p14 = scmp.eq.s32.totalorder 0, 0
  // Predicated region
  $region14: #{transformer_forward.31} parent=0 // pred_check
    %p15 = pneg %p14
  $region15: #{transformer_forward.31} parent=0 // pred_check_branch
    %17 = sbr.rel (%p15) target = $region17
  $region16: #{transformer_forward.31} parent=0 // pred_region
    %18 = vst [vmem:[#allocation2] sm:$0xff] 0.0
    %19 = vst [vmem:[#allocation2 + $0x8] sm:$0xff] 0.0
    %20 = vst [vmem:[#allocation2 + $0x10] sm:$0xff] 0.0
    %21 = vst [vmem:[#allocation2 + $0x18] sm:$0xff] 0.0
  $region17: #{transformer_forward.31} parent=0 // pred_fallthru
    _
  %v22 = vld [vmem:[#allocation2] sm:$0xff]
  %v23 = vld [vmem:[#allocation2 + $0x8] sm:$0xff]
  %v24 = vld [vmem:[#allocation2 + $0x10] sm:$0xff]
  %v25 = vld [vmem:[#allocation2 + $0x18] sm:$0xff]
  %v26 = vld [vmem:[%s0] sm:$0xff]
  %v27 = vld [vmem:[%s0 + $0x8] sm:$0xff]
  %v28 = vld [vmem:[%s1] sm:$0xff]
  %v29 = vld [vmem:[%s1 + $0x8] sm:$0xff]
  %v30 = vld [vmem:[%s1 + $0x10] sm:$0xff]
  %v31 = vld [vmem:[%s1 + $0x18] sm:$0xff]
  %v32 = vld [vmem:[%s1 + $0x20] sm:$0xff]
  %v33 = vld [vmem:[%s1 + $0x28] sm:$0xff]
  %v34 = vld [vmem:[%s1 + $0x30] sm:$0xff]
  %v35 = vld [vmem:[%s1 + $0x38] sm:$0xff]
  %v36 = vld [vmem:[%s1 + $0x40] sm:$0xff]
  %v37 = vld [vmem:[%s1 + $0x48] sm:$0xff]
  %v38 = vld [vmem:[%s1 + $0x50] sm:$0xff]
  %v39 = vld [vmem:[%s1 + $0x58] sm:$0xff]
  %v40 = vld [vmem:[%s1 + $0x60] sm:$0xff]
  %v41 = vld [vmem:[%s1 + $0x68] sm:$0xff]
  %v42 = vld [vmem:[%s1 + $0x70] sm:$0xff]
  %v43 = vld [vmem:[%s1 + $0x78] sm:$0xff]
  %v44 = vld [vmem:[%s1 + $0x80] sm:$0xff]
  %v45 = vld [vmem:[%s1 + $0x88] sm:$0xff]
  %v46 = vld [vmem:[%s1 + $0x90] sm:$0xff]
  %v47 = vld [vmem:[%s1 + $0x98] sm:$0xff]
  %v48 = vld [vmem:[%s1 + $0xa0] sm:$0xff]
  %v49 = vld [vmem:[%s1 + $0xa8] sm:$0xff]
  %v50 = vld [vmem:[%s1 + $0xb0] sm:$0xff]
  %v51 = vld [vmem:[%s1 + $0xb8] sm:$0xff]
  %v52 = vld [vmem:[%s1 + $0xc0] sm:$0xff]
  %v53 = vld [vmem:[%s1 + $0xc8] sm:$0xff]
  %v54 = vld [vmem:[%s1 + $0xd0] sm:$0xff]
  %v55 = vld [vmem:[%s1 + $0xd8] sm:$0xff]
  %v56 = vld [vmem:[%s1 + $0xe0] sm:$0xff]
  %v57 = vld [vmem:[%s1 + $0xe8] sm:$0xff]
  %v58 = vld [vmem:[%s1 + $0xf0] sm:$0xff]
  %v59 = vld [vmem:[%s1 + $0xf8] sm:$0xff]
  %60 = vmatprep.subr.mxu0 %v29
  %61 = vmatpush1.msra.mxu0 %v28
  %62 = vmatprep.subr.mxu0 %v31
  %63 = vmatpush1.msra.mxu0 %v30
  %64 = vmatprep.subr.mxu0 %v33
  %65 = vmatpush1.msra.mxu0 %v32
  %66 = vmatprep.subr.mxu0 %v35
  %67 = vmatpush1.msra.mxu0 %v34
  %68 = vmatprep.subr.mxu0 %v37
  %69 = vmatpush1.msra.mxu0 %v36
  %70 = vmatprep.subr.mxu0 %v39
  %71 = vmatpush1.msra.mxu0 %v38
  %72 = vmatprep.subr.mxu0 %v41
  %73 = vmatpush1.msra.mxu0 %v40
  %74 = vmatprep.subr.mxu0 %v43
  %75 = vmatpush1.msra.mxu0 %v42
  %76 = vmatprep.subr.mxu0 %v45
  %77 = vmatpush1.msra.mxu0 %v44
  %78 = vmatprep.subr.mxu0 %v47
  %79 = vmatpush1.msra.mxu0 %v46
  %80 = vmatprep.subr.mxu0 %v49
  %81 = vmatpush1.msra.mxu0 %v48
  %82 = vmatprep.subr.mxu0 %v51
  %83 = vmatpush1.msra.mxu0 %v50
  %84 = vmatprep.subr.mxu0 %v53
  %85 = vmatpush1.msra.mxu0 %v52
  %86 = vmatprep.subr.mxu0 %v55
  %87 = vmatpush1.msra.mxu0 %v54
  %88 = vmatprep.subr.mxu0 %v57
  %89 = vmatpush1.msra.mxu0 %v56
  %90 = vmatprep.subr.mxu0 %v59
  %91 = vmatpush1.msra.mxu0 %v58
  %92 = vmatprep.subr.mxu0 0.0
  %93 = vmatpush1.msra.mxu0 0.0
  %94 = vmatprep.subr.mxu0 0.0
  %95 = vmatpush1.msra.mxu0 0.0
  %96 = vmatprep.subr.mxu0 0.0
  %97 = vmatpush1.msra.mxu0 0.0
  %98 = vmatprep.subr.mxu0 0.0
  %99 = vmatpush1.msra.mxu0 0.0
  %100 = vmatprep.subr.mxu0 0.0
  %101 = vmatpush1.msra.mxu0 0.0
  %102 = vmatprep.subr.mxu0 0.0
  %103 = vmatpush1.msra.mxu0 0.0
  %104 = vmatprep.subr.mxu0 0.0
  %105 = vmatpush1.msra.mxu0 0.0
  %106 = vmatprep.subr.mxu0 0.0
  %107 = vmatpush1.msra.mxu0 0.0
  %108 = vmatprep.subr.mxu0 0.0
  %109 = vmatpush1.msra.mxu0 0.0
  %110 = vmatprep.subr.mxu0 0.0
  %111 = vmatpush1.msra.mxu0 0.0
  %112 = vmatprep.subr.mxu0 0.0
  %113 = vmatpush1.msra.mxu0 0.0
  %114 = vmatprep.subr.mxu0 0.0
  %115 = vmatpush1.msra.mxu0 0.0
  %116 = vmatprep.subr.mxu0 0.0
  %117 = vmatpush1.msra.mxu0 0.0
  %118 = vmatprep.subr.mxu0 0.0
  %119 = vmatpush1.msra.mxu0 0.0
  %120 = vmatprep.subr.mxu0 0.0
  %121 = vmatpush1.msra.mxu0 0.0
  %122 = vmatprep.subr.mxu0 0.0
  %123 = vmatpush1.msra.mxu0 0.0
  %124 = vmatprep.mubr.f32.mxu0 0.0
  %125 = vmatmul.mubr.f32.gmra.mrb[0].mxu0 %v26
  %v126 = vpop.f32.mrb[0].mxu0
  %v127 = vadd.f32 0.0, %v126
  %v128 = vpop.f32.mrb[0].mxu0
  %v129 = vadd.f32 0.0, %v128
  %130 = vmatprep.mubr.f32.mxu0 0.0
  %131 = vmatmul.mubr.f32.gmra.mrb[0].mxu0 %v27
  %v132 = vpop.f32.mrb[0].mxu0
  %v133 = vadd.f32 0.0, %v132
  %v134 = vpop.f32.mrb[0].mxu0
  %v135 = vadd.f32 0.0, %v134
  %136 = vdwg.mxu0
  %v137 = vadd.f32 %v22, %v127
  %v138 = vadd.f32 %v23, %v129
  %v139 = vadd.f32 %v24, %v133
  %v140 = vadd.f32 %v25, %v135
  %141 = vst [vmem:[#allocation2] sm:$0xff] %v137
  %142 = vst [vmem:[#allocation2 + $0x8] sm:$0xff] %v138
  %143 = vst [vmem:[#allocation2 + $0x10] sm:$0xff] %v139
  %144 = vst [vmem:[#allocation2 + $0x18] sm:$0xff] %v140
  // Predicated region
  $region18: #{transformer_forward.31} parent=0 // pred_check
    %p145 = pneg %p14
  $region19: #{transformer_forward.31} parent=0 // pred_check_branch
    %147 = sbr.rel (%p145) target = $region21
  $region20: #{transformer_forward.31} parent=0 // pred_region
    %v148 = vld [vmem:[#allocation2] sm:$0xff]
    %v149 = vld [vmem:[#allocation2 + $0x8] sm:$0xff]
    %v150 = vld [vmem:[#allocation2 + $0x10] sm:$0xff]
    %v151 = vld [vmem:[#allocation2 + $0x18] sm:$0xff]
    %v152 = vld [vmem:[%s2] sm:$0x3]
    %v154 = vlaneseq
    %v155 = vshrl.u32 %v154, 7
    %v156 = vsub.s32 0, %v155
    %v157 = vrot.slane %v152, %v156
    %v158 = vlaneseq
    %v159 = vshrl.u32 %v158, 7
    %v160 = vsub.s32 1, %v159
    %v161 = vrot.slane %v152, %v160
    %v164 = vadd.f32 %v148, %v157
    %v165 = vadd.f32 %v149, %v161
    %v166 = vadd.f32 %v150, %v157
    %v167 = vadd.f32 %v151, %v161
    %168 = vst [vmem:[%s3] sm:$0xff] %v164
    %169 = vst [vmem:[%s3 + $0x8] sm:$0xff] %v165
    %170 = vst [vmem:[%s3 + $0x10] sm:$0xff] %v166
    %171 = vst [vmem:[%s3 + $0x18] sm:$0xff] %v167
  $region21: #{transformer_forward.31} parent=0 // pred_fallthru
    _
  // Predicated region
  $region22: #{transformer_forward.31} parent=0 // pred_check
    _
  $region23: #{transformer_forward.31} parent=0 // pred_check_branch
    %173 = sbr.rel (0) target = $region25
  $region24: #{transformer_forward.31} parent=0 // pred_region
    _
  $region25: #{transformer_forward.31} parent=0 // pred_fallthru
    _
  // Predicated region
  $region26: #{transformer_forward.31} parent=0 // pred_check
    _
  $region27: #{transformer_forward.31} parent=0 // pred_check_branch
    %175 = sbr.rel (0) target = $region29
  $region28: #{transformer_forward.31} parent=0 // pred_region
    _
  $region29: #{transformer_forward.31} parent=0 // pred_fallthru
    _

// kernel: transformer_forward.33
$region0: #{transformer_forward.33}
  #allocation0 [shape = 'u32[]', space=smem, size = 0x4, offset = 0x4, fixed_abs, tag = 'smem constant byte address 0x4 - core index']
  #allocation1 [shape = 'u32[144,128]{1,0:T(1,128)}', space=vmem, size = 0x12000, scoped, tag = 'internal scratch']
  %s0 = inlined_call_operand.vmem [shape: f32[2,8,128], index: 0, kind: input, shape index: {}]
  %s1 = inlined_call_operand.vmem [shape: f32[2,8,256], index: 1, kind: input, shape index: {}]
  %s2 = inlined_call_operand.vmem [shape: f32[2,8,128], index: 2, kind: output, shape index: {}]
  %s3 = sld [smem:[#allocation0]]
  $region41: #{transformer_forward.33} parent=0
    _
  %s5 = ssub.s32 1, %s3
  %s6 = scalar_select 0, %s5, %s3
  loop: start=0, step=1, limit=4
  $region2: #{transformer_forward.33} parent=0 // loop_pre_header
    _
  $region3: #{transformer_forward.33} parent=0 // loop_header
    %s8 = sphi 0, %s12
    %p9 = scmp.ge.s32.totalorder %s8, 4
    %s18 = sphi 0, %s20
    %s21 = sphi 0, %s18
    %s22 = sphi 0, %s21
    %s38 = sphi 0, %s22
    %s44 = sphi 0, %s46
    %s47 = sphi 0, %s44
    %s48 = sphi 0, %s47
    %s64 = sphi 0, %s48
    %s70 = sphi 0, %s72
    %s73 = sphi 0, %s70
    %s74 = sphi 0, %s73
    %s90 = sphi 0, %s74
  $region4: #{transformer_forward.33} parent=0 // loop_header_branch
    %11 = sbr.rel (%p9) target = $region8
  $region5: #{transformer_forward.33} parent=0 // loop_body
    %s13 = ssub.s32 %s8, 1
    %s14 = ssub.s32 %s8, 2
    %s15 = sadd.s32 %s8, 1
    %s16 = ssub.s32 %s8, %s15
    %p17 = scmp.eq.s32.totalorder %s16, 0
    %s19 = sadd.s32 %s18, 1
    %s20 = scalar_select %p17, %s18, %s19
    %p23 = pneg %p17
    %p24 = scmp.eq.s32.totalorder %s8, 1
    %p25 = por %p23, %p24
    %p26 = scmp.ne.s32.totalorder %s18, %s21
    %p27 = scmp.eq.s32.totalorder %s8, 0
    %p28 = por %p26, %p27
    %p29 = scmp.ne.s32.totalorder %s18, %s21
    %p30 = scmp.eq.s32.totalorder %s13, 1
    %p31 = por %p29, %p30
    %p32 = scmp.ne.s32.totalorder %s21, %s22
    %p33 = scmp.eq.s32.totalorder %s13, 0
    %p34 = por %p32, %p33
    %p35 = scmp.ne.s32.totalorder %s21, %s22
    %p36 = scmp.eq.s32.totalorder %s14, 1
    %p37 = por %p35, %p36
    %p39 = scmp.ne.s32.totalorder %s22, %s38
    %p40 = scmp.eq.s32.totalorder %s14, 0
    %p41 = por %p39, %p40
    %s42 = ssub.s32 %s8, %s15
    %p43 = scmp.eq.s32.totalorder %s42, 0
    %s45 = sadd.s32 %s44, 1
    %s46 = scalar_select %p43, %s44, %s45
    %p49 = pneg %p43
    %p50 = scmp.eq.s32.totalorder %s8, 1
    %p51 = por %p49, %p50
    %p52 = scmp.ne.s32.totalorder %s44, %s47
    %p53 = scmp.eq.s32.totalorder %s8, 0
    %p54 = por %p52, %p53
    %p55 = scmp.ne.s32.totalorder %s44, %s47
    %p56 = scmp.eq.s32.totalorder %s13, 1
    %p57 = por %p55, %p56
    %p58 = scmp.ne.s32.totalorder %s47, %s48
    %p59 = scmp.eq.s32.totalorder %s13, 0
    %p60 = por %p58, %p59
    %p61 = scmp.ne.s32.totalorder %s47, %s48
    %p62 = scmp.eq.s32.totalorder %s14, 1
    %p63 = por %p61, %p62
    %p65 = scmp.ne.s32.totalorder %s48, %s64
    %p66 = scmp.eq.s32.totalorder %s14, 0
    %p67 = por %p65, %p66
    %s68 = ssub.s32 %s8, %s15
    %p69 = scmp.eq.s32.totalorder %s68, 0
    %s71 = sadd.s32 %s70, 1
    %s72 = scalar_select %p69, %s70, %s71
    %p75 = pneg %p69
    %p76 = scmp.eq.s32.totalorder %s8, 1
    %p77 = por %p75, %p76
    %p78 = scmp.ne.s32.totalorder %s70, %s73
    %p79 = scmp.eq.s32.totalorder %s8, 0
    %p80 = por %p78, %p79
    %p81 = scmp.ne.s32.totalorder %s70, %s73
    %p82 = scmp.eq.s32.totalorder %s13, 1
    %p83 = por %p81, %p82
    %p84 = scmp.ne.s32.totalorder %s73, %s74
    %p85 = scmp.eq.s32.totalorder %s13, 0
    %p86 = por %p84, %p85
    %p87 = scmp.ne.s32.totalorder %s73, %s74
    %p88 = scmp.eq.s32.totalorder %s14, 1
    %p89 = por %p87, %p88
    %p91 = scmp.ne.s32.totalorder %s74, %s90
    %p92 = scmp.eq.s32.totalorder %s14, 0
    %p93 = por %p91, %p92
    %p94 = scmp.le.s32.totalorder 1, %s8
    %p95 = scmp.lt.s32.totalorder %s8, 3
    %p96 = pnand %p94, %p95
    %p97 = pneg %p96
    // Predicated region
    $region9: #{transformer_forward.33} parent=5 // pred_check
      _
    $region10: #{transformer_forward.33} parent=5 // pred_check_branch
      %99 = sbr.rel (%p96) target = $region12
    $region11: #{transformer_forward.33} parent=5 // pred_region
      %s100 = ssub.s32 %s8, 1
    $region12: #{transformer_forward.33} parent=5 // pred_fallthru
      _
    %p101 = scmp.lt.s32.totalorder %s8, 2
    // Predicated region
    $region13: #{transformer_forward.33} parent=5 // pred_check
      %p102 = pneg %p101
    $region14: #{transformer_forward.33} parent=5 // pred_check_branch
      %104 = sbr.rel (%p102) target = $region16
    $region15: #{transformer_forward.33} parent=5 // pred_region
      // Predicated region
      $region17: #{transformer_forward.33} parent=15 // pred_check
        %p105 = pneg %p28
      $region18: #{transformer_forward.33} parent=15 // pred_check_branch
        %107 = sbr.rel (%p105) target = $region20
      $region19: #{transformer_forward.33} parent=15 // pred_region
        %p108 = scmp.lt.s32.totalorder %s8, 1
        %s109 = scalar_select %p108, %s8, 1
        %s110 = smul.addr %s109, 8
        %s111 = scalar_lea.vmem %s0, %s110
      $region20: #{transformer_forward.33} parent=15 // pred_fallthru
        _
      // Predicated region
      $region21: #{transformer_forward.33} parent=15 // pred_check
        %p112 = pneg %p54
      $region22: #{transformer_forward.33} parent=15 // pred_check_branch
        %114 = sbr.rel (%p112) target = $region24
      $region23: #{transformer_forward.33} parent=15 // pred_region
        %p115 = scmp.lt.s32.totalorder %s8, 1
        %s116 = scalar_select %p115, %s8, 1
        %s117 = smul.addr %s116, 2
        %s118 = smul.addr %s117, 8
        %s119 = scalar_lea.vmem %s1, %s118
      $region24: #{transformer_forward.33} parent=15 // pred_fallthru
        _
    $region16: #{transformer_forward.33} parent=5 // pred_fallthru
      _
    %p120 = scmp.le.s32.totalorder 1, %s8
    %p121 = scmp.lt.s32.totalorder %s8, 3
    %p122 = pnand %p120, %p121
    %p123 = pneg %p122
    // Predicated region
    $region25: #{transformer_forward.33} parent=5 // pred_check
      _
    $region26: #{transformer_forward.33} parent=5 // pred_check_branch
      %125 = sbr.rel (%p122) target = $region28
    $region27: #{transformer_forward.33} parent=5 // pred_region
      %s126 = ssub.s32 %s8, 1
      %p127 = scmp.lt.s32.totalorder %s13, 1
      %s128 = scalar_select %p127, %s13, 1
      %s129 = smul.addr %s128, 8
      %s130 = scalar_lea.vmem %s0, %s129
      %p131 = pneg %p34
      %p132 = pneg %p31
      %p133 = scmp.lt.s32.totalorder %s13, 1
      %s134 = scalar_select %p133, %s13, 1
      %s135 = smul.addr %s134, 2
      %s136 = smul.addr %s135, 8
      %s137 = scalar_lea.vmem %s1, %s136
      %p138 = pneg %p60
      %p139 = pneg %p57
      %p140 = pneg %p86
      %p141 = pneg %p83
      %p142 = scmp.lt.s32.totalorder %s13, 1
      %s143 = scalar_select %p142, %s13, 1
      %s144 = smul.addr %s143, 8
      %s145 = scalar_lea.vmem %s2, %s144
      %p146 = scmp.lt.s32.totalorder %s13, 1
      %s147 = scalar_select %p146, %s13, 1
      %s148 = smul.addr %s147, 8
      %s149 = scalar_lea.vmem %s0, %s148
      %p150 = scmp.lt.s32.totalorder %s13, 1
      %s151 = scalar_select %p150, %s13, 1
      %s152 = smul.addr %s151, 2
      %s153 = smul.addr %s152, 8
      %s154 = scalar_lea.vmem %s1, %s153
      %p155 = scmp.lt.s32.totalorder %s13, 1
      %s156 = scalar_select %p155, %s13, 1
      %s157 = smul.addr %s156, 8
      %s158 = scalar_lea.vmem %s2, %s157
      %v159 = vld [vmem:[%s154] sm:$0xff]
      %v160 = vld [vmem:[%s154 + $0x8] sm:$0xff]
      %v161 = vld [vmem:[%s149] sm:$0xff]
      %v162 = vmul.f32 %v161, 0.25
      %vm163 = vcmask 130048
      %v165 = vsel %vm163, %v162, 0
      %v168 = vsel %vm163, %v159, 0
      %170 = vmatprep.subr.mxu0 0.0
      %171 = vmatpush1.xpose.msra.mxu0 %v168
      %172 = vmatprep.subr.mxu0 0.0
      %173 = vmatpush1.xpose.msra.mxu0 0.0
      %174 = vmatprep.subr.mxu0 0.0
      %175 = vmatpush1.xpose.msra.mxu0 0.0
      %176 = vmatprep.subr.mxu0 0.0
      %177 = vmatpush1.xpose.msra.mxu0 0.0
      %178 = vmatprep.subr.mxu0 0.0
      %179 = vmatpush1.xpose.msra.mxu0 0.0
      %180 = vmatprep.subr.mxu0 0.0
      %181 = vmatpush1.xpose.msra.mxu0 0.0
      %182 = vmatprep.subr.mxu0 0.0
      %183 = vmatpush1.xpose.msra.mxu0 0.0
      %184 = vmatprep.subr.mxu0 0.0
      %185 = vmatpush1.xpose.msra.mxu0 0.0
      %186 = vmatprep.subr.mxu0 0.0
      %187 = vmatpush1.xpose.msra.mxu0 0.0
      %188 = vmatprep.subr.mxu0 0.0
      %189 = vmatpush1.xpose.msra.mxu0 0.0
      %190 = vmatprep.subr.mxu0 0.0
      %191 = vmatpush1.xpose.msra.mxu0 0.0
      %192 = vmatprep.subr.mxu0 0.0
      %193 = vmatpush1.xpose.msra.mxu0 0.0
      %194 = vmatprep.subr.mxu0 0.0
      %195 = vmatpush1.xpose.msra.mxu0 0.0
      %196 = vmatprep.subr.mxu0 0.0
      %197 = vmatpush1.xpose.msra.mxu0 0.0
      %198 = vmatprep.subr.mxu0 0.0
      %199 = vmatpush1.xpose.msra.mxu0 0.0
      %200 = vmatprep.subr.mxu0 0.0
      %201 = vmatpush1.xpose.msra.mxu0 0.0
      %202 = vmatprep.subr.mxu0 0.0
      %203 = vmatpush1.xpose.msra.mxu0 0.0
      %204 = vmatprep.subr.mxu0 0.0
      %205 = vmatpush1.xpose.msra.mxu0 0.0
      %206 = vmatprep.subr.mxu0 0.0
      %207 = vmatpush1.xpose.msra.mxu0 0.0
      %208 = vmatprep.subr.mxu0 0.0
      %209 = vmatpush1.xpose.msra.mxu0 0.0
      %210 = vmatprep.subr.mxu0 0.0
      %211 = vmatpush1.xpose.msra.mxu0 0.0
      %212 = vmatprep.subr.mxu0 0.0
      %213 = vmatpush1.xpose.msra.mxu0 0.0
      %214 = vmatprep.subr.mxu0 0.0
      %215 = vmatpush1.xpose.msra.mxu0 0.0
      %216 = vmatprep.subr.mxu0 0.0
      %217 = vmatpush1.xpose.msra.mxu0 0.0
      %218 = vmatprep.subr.mxu0 0.0
      %219 = vmatpush1.xpose.msra.mxu0 0.0
      %220 = vmatprep.subr.mxu0 0.0
      %221 = vmatpush1.xpose.msra.mxu0 0.0
      %222 = vmatprep.subr.mxu0 0.0
      %223 = vmatpush1.xpose.msra.mxu0 0.0
      %224 = vmatprep.subr.mxu0 0.0
      %225 = vmatpush1.xpose.msra.mxu0 0.0
      %226 = vmatprep.subr.mxu0 0.0
      %227 = vmatpush1.xpose.msra.mxu0 0.0
      %228 = vmatprep.subr.mxu0 0.0
      %229 = vmatpush1.xpose.msra.mxu0 0.0
      %230 = vmatprep.subr.mxu0 0.0
      %231 = vmatpush1.xpose.msra.mxu0 0.0
      %232 = vmatprep.subr.mxu0 0.0
      %233 = vmatpush1.xpose.msra.mxu0 0.0
      %234 = vmatprep.mubr.f32.mxu0 0.0
      %235 = vmatmul.mubr.f32.gmra.mrb[0].mxu0 %v165
      %v236 = vpop.f32.mrb[0].mxu0
      %v237 = vadd.f32 0.0, %v236
      %v238 = vpop.f32.mrb[0].mxu0
      %239 = vdwg.mxu0
      %vm240 = vcmask 64512
      %v241 = vsel %vm240, %v237, -inf
      %242 = vmax.xlane.f32.xlu0 %v241
      %v243 = vpop.xlane.xlu0 %242
      %v244 = vsub.f32 %v237, %v243
      %v245 = vmul.f32 %v244, 1.442695
      %v246 = vpow.pop %v245
      %v247 = vsel %vm240, %v246, 0.0
      %248 = vadd.xlane.f32.xlu0 %v247
      %v249 = vpop.xlane.xlu0 %248
      %v251 = vsel %vm240, %v246, 0
      %253 = vmatprep.subr.mxu0 0.0
      %254 = vmatpush1.msra.mxu0 %v160
      %255 = vmatprep.subr.mxu0 0.0
      %256 = vmatpush1.msra.mxu0 0.0
      %257 = vmatprep.subr.mxu0 0.0
      %258 = vmatpush1.msra.mxu0 0.0
      %259 = vmatprep.subr.mxu0 0.0
      %260 = vmatpush1.msra.mxu0 0.0
      %261 = vmatprep.subr.mxu0 0.0
      %262 = vmatpush1.msra.mxu0 0.0
      %263 = vmatprep.subr.mxu0 0.0
      %264 = vmatpush1.msra.mxu0 0.0
      %265 = vmatprep.subr.mxu0 0.0
      %266 = vmatpush1.msra.mxu0 0.0
      %267 = vmatprep.subr.mxu0 0.0
      %268 = vmatpush1.msra.mxu0 0.0
      %269 = vmatprep.subr.mxu0 0.0
      %270 = vmatpush1.msra.mxu0 0.0
      %271 = vmatprep.subr.mxu0 0.0
      %272 = vmatpush1.msra.mxu0 0.0
      %273 = vmatprep.subr.mxu0 0.0
      %274 = vmatpush1.msra.mxu0 0.0
      %275 = vmatprep.subr.mxu0 0.0
      %276 = vmatpush1.msra.mxu0 0.0
      %277 = vmatprep.subr.mxu0 0.0
      %278 = vmatpush1.msra.mxu0 0.0
      %279 = vmatprep.subr.mxu0 0.0
      %280 = vmatpush1.msra.mxu0 0.0
      %281 = vmatprep.subr.mxu0 0.0
      %282 = vmatpush1.msra.mxu0 0.0
      %283 = vmatprep.subr.mxu0 0.0
      %284 = vmatpush1.msra.mxu0 0.0
      %285 = vmatprep.subr.mxu0 0.0
      %286 = vmatpush1.msra.mxu0 0.0
      %287 = vmatprep.subr.mxu0 0.0
      %288 = vmatpush1.msra.mxu0 0.0
      %289 = vmatprep.subr.mxu0 0.0
      %290 = vmatpush1.msra.mxu0 0.0
      %291 = vmatprep.subr.mxu0 0.0
      %292 = vmatpush1.msra.mxu0 0.0
      %293 = vmatprep.subr.mxu0 0.0
      %294 = vmatpush1.msra.mxu0 0.0
      %295 = vmatprep.subr.mxu0 0.0
      %296 = vmatpush1.msra.mxu0 0.0
      %297 = vmatprep.subr.mxu0 0.0
      %298 = vmatpush1.msra.mxu0 0.0
      %299 = vmatprep.subr.mxu0 0.0
      %300 = vmatpush1.msra.mxu0 0.0
      %301 = vmatprep.subr.mxu0 0.0
      %302 = vmatpush1.msra.mxu0 0.0
      %303 = vmatprep.subr.mxu0 0.0
      %304 = vmatpush1.msra.mxu0 0.0
      %305 = vmatprep.subr.mxu0 0.0
      %306 = vmatpush1.msra.mxu0 0.0
      %307 = vmatprep.subr.mxu0 0.0
      %308 = vmatpush1.msra.mxu0 0.0
      %309 = vmatprep.subr.mxu0 0.0
      %310 = vmatpush1.msra.mxu0 0.0
      %311 = vmatprep.subr.mxu0 0.0
      %312 = vmatpush1.msra.mxu0 0.0
      %313 = vmatprep.subr.mxu0 0.0
      %314 = vmatpush1.msra.mxu0 0.0
      %315 = vmatprep.subr.mxu0 0.0
      %316 = vmatpush1.msra.mxu0 0.0
      %317 = vmatprep.mubr.f32.mxu0 0.0
      %318 = vmatmul.mubr.f32.gmra.mrb[0].mxu0 %v251
      %v319 = vpop.f32.mrb[0].mxu0
      %v320 = vadd.f32 0.0, %v319
      %v321 = vpop.f32.mrb[0].mxu0
      %322 = vdwg.mxu0
      %v323 = vrcp.pop %v249
      %v324 = vmul.f32 %v320, %v323
      %325 = vrot.lane.b32.xlu0 %v162, 112
      %v326 = vpop.permute.xlu0 %325
      %327 = vrot.lane.b32.xlu0 %v159, 112
      %v328 = vpop.permute.xlu0 %327
      %v329 = vsel %vm163, %v326, 0
      %v331 = vsel %vm163, %v328, 0
      %333 = vmatprep.subr.mxu0 0.0
      %334 = vmatpush1.xpose.msra.mxu0 %v331
      %335 = vmatprep.subr.mxu0 0.0
      %336 = vmatpush1.xpose.msra.mxu0 0.0
      %337 = vmatprep.subr.mxu0 0.0
      %338 = vmatpush1.xpose.msra.mxu0 0.0
      %339 = vmatprep.subr.mxu0 0.0
      %340 = vmatpush1.xpose.msra.mxu0 0.0
      %341 = vmatprep.subr.mxu0 0.0
      %342 = vmatpush1.xpose.msra.mxu0 0.0
      %343 = vmatprep.subr.mxu0 0.0
      %344 = vmatpush1.xpose.msra.mxu0 0.0
      %345 = vmatprep.subr.mxu0 0.0
      %346 = vmatpush1.xpose.msra.mxu0 0.0
      %347 = vmatprep.subr.mxu0 0.0
      %348 = vmatpush1.xpose.msra.mxu0 0.0
      %349 = vmatprep.subr.mxu0 0.0
      %350 = vmatpush1.xpose.msra.mxu0 0.0
      %351 = vmatprep.subr.mxu0 0.0
      %352 = vmatpush1.xpose.msra.mxu0 0.0
      %353 = vmatprep.subr.mxu0 0.0
      %354 = vmatpush1.xpose.msra.mxu0 0.0
      %355 = vmatprep.subr.mxu0 0.0
      %356 = vmatpush1.xpose.msra.mxu0 0.0
      %357 = vmatprep.subr.mxu0 0.0
      %358 = vmatpush1.xpose.msra.mxu0 0.0
      %359 = vmatprep.subr.mxu0 0.0
      %360 = vmatpush1.xpose.msra.mxu0 0.0
      %361 = vmatprep.subr.mxu0 0.0
      %362 = vmatpush1.xpose.msra.mxu0 0.0
      %363 = vmatprep.subr.mxu0 0.0
      %364 = vmatpush1.xpose.msra.mxu0 0.0
      %365 = vmatprep.subr.mxu0 0.0
      %366 = vmatpush1.xpose.msra.mxu0 0.0
      %367 = vmatprep.subr.mxu0 0.0
      %368 = vmatpush1.xpose.msra.mxu0 0.0
      %369 = vmatprep.subr.mxu0 0.0
      %370 = vmatpush1.xpose.msra.mxu0 0.0
      %371 = vmatprep.subr.mxu0 0.0
      %372 = vmatpush1.xpose.msra.mxu0 0.0
      %373 = vmatprep.subr.mxu0 0.0
      %374 = vmatpush1.xpose.msra.mxu0 0.0
      %375 = vmatprep.subr.mxu0 0.0
      %376 = vmatpush1.xpose.msra.mxu0 0.0
      %377 = vmatprep.subr.mxu0 0.0
      %378 = vmatpush1.xpose.msra.mxu0 0.0
      %379 = vmatprep.subr.mxu0 0.0
      %380 = vmatpush1.xpose.msra.mxu0 0.0
      %381 = vmatprep.subr.mxu0 0.0
      %382 = vmatpush1.xpose.msra.mxu0 0.0
      %383 = vmatprep.subr.mxu0 0.0
      %384 = vmatpush1.xpose.msra.mxu0 0.0
      %385 = vmatprep.subr.mxu0 0.0
      %386 = vmatpush1.xpose.msra.mxu0 0.0
      %387 = vmatprep.subr.mxu0 0.0
      %388 = vmatpush1.xpose.msra.mxu0 0.0
      %389 = vmatprep.subr.mxu0 0.0
      %390 = vmatpush1.xpose.msra.mxu0 0.0
      %391 = vmatprep.subr.mxu0 0.0
      %392 = vmatpush1.xpose.msra.mxu0 0.0
      %393 = vmatprep.subr.mxu0 0.0
      %394 = vmatpush1.xpose.msra.mxu0 0.0
      %395 = vmatprep.subr.mxu0 0.0
      %396 = vmatpush1.xpose.msra.mxu0 0.0
      %397 = vmatprep.mubr.f32.mxu0 0.0
      %398 = vmatmul.mubr.f32.gmra.mrb[0].mxu0 %v329
      %v399 = vpop.f32.mrb[0].mxu0
      %v400 = vadd.f32 0.0, %v399
      %v401 = vpop.f32.mrb[0].mxu0
      %402 = vdwg.mxu0
      %v403 = vsel %vm240, %v400, -inf
      %404 = vmax.xlane.f32.xlu0 %v403
      %v405 = vpop.xlane.xlu0 %404
      %v406 = vsub.f32 %v400, %v405
      %v407 = vmul.f32 %v406, 1.442695
      %v408 = vpow.pop %v407
      %v409 = vsel %vm240, %v408, 0.0
      %410 = vadd.xlane.f32.xlu0 %v409
      %v411 = vpop.xlane.xlu0 %410
      %413 = vrot.lane.b32.xlu0 %v160, 112
      %v414 = vpop.permute.xlu0 %413
      %v417 = vsel %vm240, %v408, 0
      %419 = vmatprep.subr.mxu0 0.0
      %420 = vmatpush1.msra.mxu0 %v414
      %421 = vmatprep.subr.mxu0 0.0
      %422 = vmatpush1.msra.mxu0 0.0
      %423 = vmatprep.subr.mxu0 0.0
      %424 = vmatpush1.msra.mxu0 0.0
      %425 = vmatprep.subr.mxu0 0.0
      %426 = vmatpush1.msra.mxu0 0.0
      %427 = vmatprep.subr.mxu0 0.0
      %428 = vmatpush1.msra.mxu0 0.0
      %429 = vmatprep.subr.mxu0 0.0
      %430 = vmatpush1.msra.mxu0 0.0
      %431 = vmatprep.subr.mxu0 0.0
      %432 = vmatpush1.msra.mxu0 0.0
      %433 = vmatprep.subr.mxu0 0.0
      %434 = vmatpush1.msra.mxu0 0.0
      %435 = vmatprep.subr.mxu0 0.0
      %436 = vmatpush1.msra.mxu0 0.0
      %437 = vmatprep.subr.mxu0 0.0
      %438 = vmatpush1.msra.mxu0 0.0
      %439 = vmatprep.subr.mxu0 0.0
      %440 = vmatpush1.msra.mxu0 0.0
      %441 = vmatprep.subr.mxu0 0.0
      %442 = vmatpush1.msra.mxu0 0.0
      %443 = vmatprep.subr.mxu0 0.0
      %444 = vmatpush1.msra.mxu0 0.0
      %445 = vmatprep.subr.mxu0 0.0
      %446 = vmatpush1.msra.mxu0 0.0
      %447 = vmatprep.subr.mxu0 0.0
      %448 = vmatpush1.msra.mxu0 0.0
      %449 = vmatprep.subr.mxu0 0.0
      %450 = vmatpush1.msra.mxu0 0.0
      %451 = vmatprep.subr.mxu0 0.0
      %452 = vmatpush1.msra.mxu0 0.0
      %453 = vmatprep.subr.mxu0 0.0
      %454 = vmatpush1.msra.mxu0 0.0
      %455 = vmatprep.subr.mxu0 0.0
      %456 = vmatpush1.msra.mxu0 0.0
      %457 = vmatprep.subr.mxu0 0.0
      %458 = vmatpush1.msra.mxu0 0.0
      %459 = vmatprep.subr.mxu0 0.0
      %460 = vmatpush1.msra.mxu0 0.0
      %461 = vmatprep.subr.mxu0 0.0
      %462 = vmatpush1.msra.mxu0 0.0
      %463 = vmatprep.subr.mxu0 0.0
      %464 = vmatpush1.msra.mxu0 0.0
      %465 = vmatprep.subr.mxu0 0.0
      %466 = vmatpush1.msra.mxu0 0.0
      %467 = vmatprep.subr.mxu0 0.0
      %468 = vmatpush1.msra.mxu0 0.0
      %469 = vmatprep.subr.mxu0 0.0
      %470 = vmatpush1.msra.mxu0 0.0
      %471 = vmatprep.subr.mxu0 0.0
      %472 = vmatpush1.msra.mxu0 0.0
      %473 = vmatprep.subr.mxu0 0.0
      %474 = vmatpush1.msra.mxu0 0.0
      %475 = vmatprep.subr.mxu0 0.0
      %476 = vmatpush1.msra.mxu0 0.0
      %477 = vmatprep.subr.mxu0 0.0
      %478 = vmatpush1.msra.mxu0 0.0
      %479 = vmatprep.subr.mxu0 0.0
      %480 = vmatpush1.msra.mxu0 0.0
      %481 = vmatprep.subr.mxu0 0.0
      %482 = vmatpush1.msra.mxu0 0.0
      %483 = vmatprep.mubr.f32.mxu0 0.0
      %484 = vmatmul.mubr.f32.gmra.mrb[0].mxu0 %v417
      %v485 = vpop.f32.mrb[0].mxu0
      %v486 = vadd.f32 0.0, %v485
      %v487 = vpop.f32.mrb[0].mxu0
      %488 = vdwg.mxu0
      %v489 = vrcp.pop %v411
      %v490 = vmul.f32 %v486, %v489
      %491 = vrot.lane.b32.xlu0 %v162, 96
      %v492 = vpop.permute.xlu0 %491
      %493 = vrot.lane.b32.xlu0 %v159, 96
      %v494 = vpop.permute.xlu0 %493
      %v495 = vsel %vm163, %v492, 0
      %v497 = vsel %vm163, %v494, 0
      %499 = vmatprep.subr.mxu0 0.0
      %500 = vmatpush1.xpose.msra.mxu0 %v497
      %501 = vmatprep.subr.mxu0 0.0
      %502 = vmatpush1.xpose.msra.mxu0 0.0
      %503 = vmatprep.subr.mxu0 0.0
      %504 = vmatpush1.xpose.msra.mxu0 0.0
      %505 = vmatprep.subr.mxu0 0.0
      %506 = vmatpush1.xpose.msra.mxu0 0.0
      %507 = vmatprep.subr.mxu0 0.0
      %508 = vmatpush1.xpose.msra.mxu0 0.0
      %509 = vmatprep.subr.mxu0 0.0
      %510 = vmatpush1.xpose.msra.mxu0 0.0
      %511 = vmatprep.subr.mxu0 0.0
      %512 = vmatpush1.xpose.msra.mxu0 0.0
      %513 = vmatprep.subr.mxu0 0.0
      %514 = vmatpush1.xpose.msra.mxu0 0.0
      %515 = vmatprep.subr.mxu0 0.0
      %516 = vmatpush1.xpose.msra.mxu0 0.0
      %517 = vmatprep.subr.mxu0 0.0
      %518 = vmatpush1.xpose.msra.mxu0 0.0
      %519 = vmatprep.subr.mxu0 0.0
      %520 = vmatpush1.xpose.msra.mxu0 0.0
      %521 = vmatprep.subr.mxu0 0.0
      %522 = vmatpush1.xpose.msra.mxu0 0.0
      %523 = vmatprep.subr.mxu0 0.0
      %524 = vmatpush1.xpose.msra.mxu0 0.0
      %525 = vmatprep.subr.mxu0 0.0
      %526 = vmatpush1.xpose.msra.mxu0 0.0
      %527 = vmatprep.subr.mxu0 0.0
      %528 = vmatpush1.xpose.msra.mxu0 0.0
      %529 = vmatprep.subr.mxu0 0.0
      %530 = vmatpush1.xpose.msra.mxu0 0.0
      %531 = vmatprep.subr.mxu0 0.0
      %532 = vmatpush1.xpose.msra.mxu0 0.0
      %533 = vmatprep.subr.mxu0 0.0
      %534 = vmatpush1.xpose.msra.mxu0 0.0
      %535 = vmatprep.subr.mxu0 0.0
      %536 = vmatpush1.xpose.msra.mxu0 0.0
      %537 = vmatprep.subr.mxu0 0.0
      %538 = vmatpush1.xpose.msra.mxu0 0.0
      %539 = vmatprep.subr.mxu0 0.0
      %540 = vmatpush1.xpose.msra.mxu0 0.0
      %541 = vmatprep.subr.mxu0 0.0
      %542 = vmatpush1.xpose.msra.mxu0 0.0
      %543 = vmatprep.subr.mxu0 0.0
      %544 = vmatpush1.xpose.msra.mxu0 0.0
      %545 = vmatprep.subr.mxu0 0.0
      %546 = vmatpush1.xpose.msra.mxu0 0.0
      %547 = vmatprep.subr.mxu0 0.0
      %548 = vmatpush1.xpose.msra.mxu0 0.0
      %549 = vmatprep.subr.mxu0 0.0
      %550 = vmatpush1.xpose.msra.mxu0 0.0
      %551 = vmatprep.subr.mxu0 0.0
      %552 = vmatpush1.xpose.msra.mxu0 0.0
      %553 = vmatprep.subr.mxu0 0.0
      %554 = vmatpush1.xpose.msra.mxu0 0.0
      %555 = vmatprep.subr.mxu0 0.0
      %556 = vmatpush1.xpose.msra.mxu0 0.0
      %557 = vmatprep.subr.mxu0 0.0
      %558 = vmatpush1.xpose.msra.mxu0 0.0
      %559 = vmatprep.subr.mxu0 0.0
      %560 = vmatpush1.xpose.msra.mxu0 0.0
      %561 = vmatprep.subr.mxu0 0.0
      %562 = vmatpush1.xpose.msra.mxu0 0.0
      %563 = vmatprep.mubr.f32.mxu0 0.0
      %564 = vmatmul.mubr.f32.gmra.mrb[0].mxu0 %v495
      %v565 = vpop.f32.mrb[0].mxu0
      %v566 = vadd.f32 0.0, %v565
      %v567 = vpop.f32.mrb[0].mxu0
      %568 = vdwg.mxu0
      %v569 = vsel %vm240, %v566, -inf
      %570 = vmax.xlane.f32.xlu0 %v569
      %v571 = vpop.xlane.xlu0 %570
      %v572 = vsub.f32 %v566, %v571
      %v573 = vmul.f32 %v572, 1.442695
      %v574 = vpow.pop %v573
      %v575 = vsel %vm240, %v574, 0.0
      %576 = vadd.xlane.f32.xlu0 %v575
      %v577 = vpop.xlane.xlu0 %576
      %578 = vrot.lane.b32.xlu0 %v160, 96
      %v579 = vpop.permute.xlu0 %578
      %v582 = vsel %vm240, %v574, 0
      %584 = vmatprep.subr.mxu0 0.0
      %585 = vmatpush1.msra.mxu0 %v579
      %586 = vmatprep.subr.mxu0 0.0
      %587 = vmatpush1.msra.mxu0 0.0
      %588 = vmatprep.subr.mxu0 0.0
      %589 = vmatpush1.msra.mxu0 0.0
      %590 = vmatprep.subr.mxu0 0.0
      %591 = vmatpush1.msra.mxu0 0.0
      %592 = vmatprep.subr.mxu0 0.0
      %593 = vmatpush1.msra.mxu0 0.0
      %594 = vmatprep.subr.mxu0 0.0
      %595 = vmatpush1.msra.mxu0 0.0
      %596 = vmatprep.subr.mxu0 0.0
      %597 = vmatpush1.msra.mxu0 0.0
      %598 = vmatprep.subr.mxu0 0.0
      %599 = vmatpush1.msra.mxu0 0.0
      %600 = vmatprep.subr.mxu0 0.0
      %601 = vmatpush1.msra.mxu0 0.0
      %602 = vmatprep.subr.mxu0 0.0
      %603 = vmatpush1.msra.mxu0 0.0
      %604 = vmatprep.subr.mxu0 0.0
      %605 = vmatpush1.msra.mxu0 0.0
      %606 = vmatprep.subr.mxu0 0.0
      %607 = vmatpush1.msra.mxu0 0.0
      %608 = vmatprep.subr.mxu0 0.0
      %609 = vmatpush1.msra.mxu0 0.0
      %610 = vmatprep.subr.mxu0 0.0
      %611 = vmatpush1.msra.mxu0 0.0
      %612 = vmatprep.subr.mxu0 0.0
      %613 = vmatpush1.msra.mxu0 0.0
      %614 = vmatprep.subr.mxu0 0.0
      %615 = vmatpush1.msra.mxu0 0.0
      %616 = vmatprep.subr.mxu0 0.0
      %617 = vmatpush1.msra.mxu0 0.0
      %618 = vmatprep.subr.mxu0 0.0
      %619 = vmatpush1.msra.mxu0 0.0
      %620 = vmatprep.subr.mxu0 0.0
      %621 = vmatpush1.msra.mxu0 0.0
      %622 = vmatprep.subr.mxu0 0.0
      %623 = vmatpush1.msra.mxu0 0.0
      %624 = vmatprep.subr.mxu0 0.0
      %625 = vmatpush1.msra.mxu0 0.0
      %626 = vmatprep.subr.mxu0 0.0
      %627 = vmatpush1.msra.mxu0 0.0
      %628 = vmatprep.subr.mxu0 0.0
      %629 = vmatpush1.msra.mxu0 0.0
      %630 = vmatprep.subr.mxu0 0.0
      %631 = vmatpush1.msra.mxu0 0.0
      %632 = vmatprep.subr.mxu0 0.0
      %633 = vmatpush1.msra.mxu0 0.0
      %634 = vmatprep.subr.mxu0 0.0
      %635 = vmatpush1.msra.mxu0 0.0
      %636 = vmatprep.subr.mxu0 0.0
      %637 = vmatpush1.msra.mxu0 0.0
      %638 = vmatprep.subr.mxu0 0.0
      %639 = vmatpush1.msra.mxu0 0.0
      %640 = vmatprep.subr.mxu0 0.0
      %641 = vmatpush1.msra.mxu0 0.0
      %642 = vmatprep.subr.mxu0 0.0
      %643 = vmatpush1.msra.mxu0 0.0
      %644 = vmatprep.subr.mxu0 0.0
      %645 = vmatpush1.msra.mxu0 0.0
      %646 = vmatprep.subr.mxu0 0.0
      %647 = vmatpush1.msra.mxu0 0.0
      %648 = vmatprep.mubr.f32.mxu0 0.0
      %649 = vmatmul.mubr.f32.gmra.mrb[0].mxu0 %v582
      %v650 = vpop.f32.mrb[0].mxu0
      %v651 = vadd.f32 0.0, %v650
      %v652 = vpop.f32.mrb[0].mxu0
      %653 = vdwg.mxu0
      %v654 = vrcp.pop %v577
      %v655 = vmul.f32 %v651, %v654
      %656 = vrot.lane.b32.xlu0 %v162, 80
      %v657 = vpop.permute.xlu0 %656
      %658 = vrot.lane.b32.xlu0 %v159, 80
      %v659 = vpop.permute.xlu0 %658
      %v660 = vsel %vm163, %v657, 0
      %v662 = vsel %vm163, %v659, 0
      %664 = vmatprep.subr.mxu0 0.0
      %665 = vmatpush1.xpose.msra.mxu0 %v662
      %666 = vmatprep.subr.mxu0 0.0
      %667 = vmatpush1.xpose.msra.mxu0 0.0
      %668 = vmatprep.subr.mxu0 0.0
      %669 = vmatpush1.xpose.msra.mxu0 0.0
      %670 = vmatprep.subr.mxu0 0.0
      %671 = vmatpush1.xpose.msra.mxu0 0.0
      %672 = vmatprep.subr.mxu0 0.0
      %673 = vmatpush1.xpose.msra.mxu0 0.0
      %674 = vmatprep.subr.mxu0 0.0
      %675 = vmatpush1.xpose.msra.mxu0 0.0
      %676 = vmatprep.subr.mxu0 0.0
      %677 = vmatpush1.xpose.msra.mxu0 0.0
      %678 = vmatprep.subr.mxu0 0.0
      %679 = vmatpush1.xpose.msra.mxu0 0.0
      %680 = vmatprep.subr.mxu0 0.0
      %681 = vmatpush1.xpose.msra.mxu0 0.0
      %682 = vmatprep.subr.mxu0 0.0
      %683 = vmatpush1.xpose.msra.mxu0 0.0
      %684 = vmatprep.subr.mxu0 0.0
      %685 = vmatpush1.xpose.msra.mxu0 0.0
      %686 = vmatprep.subr.mxu0 0.0
      %687 = vmatpush1.xpose.msra.mxu0 0.0
      %688 = vmatprep.subr.mxu0 0.0
      %689 = vmatpush1.xpose.msra.mxu0 0.0
      %690 = vmatprep.subr.mxu0 0.0
      %691 = vmatpush1.xpose.msra.mxu0 0.0
      %692 = vmatprep.subr.mxu0 0.0
      %693 = vmatpush1.xpose.msra.mxu0 0.0
      %694 = vmatprep.subr.mxu0 0.0
      %695 = vmatpush1.xpose.msra.mxu0 0.0
      %696 = vmatprep.subr.mxu0 0.0
      %697 = vmatpush1.xpose.msra.mxu0 0.0
      %698 = vmatprep.subr.mxu0 0.0
      %699 = vmatpush1.xpose.msra.mxu0 0.0
      %700 = vmatprep.subr.mxu0 0.0
      %701 = vmatpush1.xpose.msra.mxu0 0.0
      %702 = vmatprep.subr.mxu0 0.0
      %703 = vmatpush1.xpose.msra.mxu0 0.0
      %704 = vmatprep.subr.mxu0 0.0
      %705 = vmatpush1.xpose.msra.mxu0 0.0
      %706 = vmatprep.subr.mxu0 0.0
      %707 = vmatpush1.xpose.msra.mxu0 0.0
      %708 = vmatprep.subr.mxu0 0.0
      %709 = vmatpush1.xpose.msra.mxu0 0.0
      %710 = vmatprep.subr.mxu0 0.0
      %711 = vmatpush1.xpose.msra.mxu0 0.0
      %712 = vmatprep.subr.mxu0 0.0
      %713 = vmatpush1.xpose.msra.mxu0 0.0
      %714 = vmatprep.subr.mxu0 0.0
      %715 = vmatpush1.xpose.msra.mxu0 0.0
      %716 = vmatprep.subr.mxu0 0.0
      %717 = vmatpush1.xpose.msra.mxu0 0.0
      %718 = vmatprep.subr.mxu0 0.0
      %719 = vmatpush1.xpose.msra.mxu0 0.0
      %720 = vmatprep.subr.mxu0 0.0
      %721 = vmatpush1.xpose.msra.mxu0 0.0
      %722 = vmatprep.subr.mxu0 0.0
      %723 = vmatpush1.xpose.msra.mxu0 0.0
      %724 = vmatprep.subr.mxu0 0.0
      %725 = vmatpush1.xpose.msra.mxu0 0.0
      %726 = vmatprep.subr.mxu0 0.0
      %727 = vmatpush1.xpose.msra.mxu0 0.0
      %728 = vmatprep.mubr.f32.mxu0 0.0
      %729 = vmatmul.mubr.f32.gmra.mrb[0].mxu0 %v660
      %v730 = vpop.f32.mrb[0].mxu0
      %v731 = vadd.f32 0.0, %v730
      %v732 = vpop.f32.mrb[0].mxu0
      %733 = vdwg.mxu0
      %v734 = vsel %vm240, %v731, -inf
      %735 = vmax.xlane.f32.xlu0 %v734
      %v736 = vpop.xlane.xlu0 %735
      %v737 = vsub.f32 %v731, %v736
      %v738 = vmul.f32 %v737, 1.442695
      %v739 = vpow.pop %v738
      %v740 = vsel %vm240, %v739, 0.0
      %741 = vadd.xlane.f32.xlu0 %v740
      %v742 = vpop.xlane.xlu0 %741
      %743 = vrot.lane.b32.xlu0 %v160, 80
      %v744 = vpop.permute.xlu0 %743
      %v747 = vsel %vm240, %v739, 0
      %749 = vmatprep.subr.mxu0 0.0
      %750 = vmatpush1.msra.mxu0 %v744
      %751 = vmatprep.subr.mxu0 0.0
      %752 = vmatpush1.msra.mxu0 0.0
      %753 = vmatprep.subr.mxu0 0.0
      %754 = vmatpush1.msra.mxu0 0.0
      %755 = vmatprep.subr.mxu0 0.0
      %756 = vmatpush1.msra.mxu0 0.0
      %757 = vmatprep.subr.mxu0 0.0
      %758 = vmatpush1.msra.mxu0 0.0
      %759 = vmatprep.subr.mxu0 0.0
      %760 = vmatpush1.msra.mxu0 0.0
      %761 = vmatprep.subr.mxu0 0.0
      %762 = vmatpush1.msra.mxu0 0.0
      %763 = vmatprep.subr.mxu0 0.0
      %764 = vmatpush1.msra.mxu0 0.0
      %765 = vmatprep.subr.mxu0 0.0
      %766 = vmatpush1.msra.mxu0 0.0
      %767 = vmatprep.subr.mxu0 0.0
      %768 = vmatpush1.msra.mxu0 0.0
      %769 = vmatprep.subr.mxu0 0.0
      %770 = vmatpush1.msra.mxu0 0.0
      %771 = vmatprep.subr.mxu0 0.0
      %772 = vmatpush1.msra.mxu0 0.0
      %773 = vmatprep.subr.mxu0 0.0
      %774 = vmatpush1.msra.mxu0 0.0
      %775 = vmatprep.subr.mxu0 0.0
      %776 = vmatpush1.msra.mxu0 0.0
      %777 = vmatprep.subr.mxu0 0.0
      %778 = vmatpush1.msra.mxu0 0.0
      %779 = vmatprep.subr.mxu0 0.0
      %780 = vmatpush1.msra.mxu0 0.0
      %781 = vmatprep.subr.mxu0 0.0
      %782 = vmatpush1.msra.mxu0 0.0
      %783 = vmatprep.subr.mxu0 0.0
      %784 = vmatpush1.msra.mxu0 0.0
      %785 = vmatprep.subr.mxu0 0.0
      %786 = vmatpush1.msra.mxu0 0.0
      %787 = vmatprep.subr.mxu0 0.0
      %788 = vmatpush1.msra.mxu0 0.0
      %789 = vmatprep.subr.mxu0 0.0
      %790 = vmatpush1.msra.mxu0 0.0
      %791 = vmatprep.subr.mxu0 0.0
      %792 = vmatpush1.msra.mxu0 0.0
      %793 = vmatprep.subr.mxu0 0.0
      %794 = vmatpush1.msra.mxu0 0.0
      %795 = vmatprep.subr.mxu0 0.0
      %796 = vmatpush1.msra.mxu0 0.0
      %797 = vmatprep.subr.mxu0 0.0
      %798 = vmatpush1.msra.mxu0 0.0
      %799 = vmatprep.subr.mxu0 0.0
      %800 = vmatpush1.msra.mxu0 0.0
      %801 = vmatprep.subr.mxu0 0.0
      %802 = vmatpush1.msra.mxu0 0.0
      %803 = vmatprep.subr.mxu0 0.0
      %804 = vmatpush1.msra.mxu0 0.0
      %805 = vmatprep.subr.mxu0 0.0
      %806 = vmatpush1.msra.mxu0 0.0
      %807 = vmatprep.subr.mxu0 0.0
      %808 = vmatpush1.msra.mxu0 0.0
      %809 = vmatprep.subr.mxu0 0.0
      %810 = vmatpush1.msra.mxu0 0.0
      %811 = vmatprep.subr.mxu0 0.0
      %812 = vmatpush1.msra.mxu0 0.0
      %813 = vmatprep.mubr.f32.mxu0 0.0
      %814 = vmatmul.mubr.f32.gmra.mrb[0].mxu0 %v747
      %v815 = vpop.f32.mrb[0].mxu0
      %v816 = vadd.f32 0.0, %v815
      %v817 = vpop.f32.mrb[0].mxu0
      %818 = vdwg.mxu0
      %v819 = vrcp.pop %v742
      %v820 = vmul.f32 %v816, %v819
      %821 = vrot.lane.b32.xlu0 %v162, 64
      %v822 = vpop.permute.xlu0 %821
      %823 = vrot.lane.b32.xlu0 %v159, 64
      %v824 = vpop.permute.xlu0 %823
      %v825 = vsel %vm163, %v822, 0
      %v827 = vsel %vm163, %v824, 0
      %829 = vmatprep.subr.mxu0 0.0
      %830 = vmatpush1.xpose.msra.mxu0 %v827
      %831 = vmatprep.subr.mxu0 0.0
      %832 = vmatpush1.xpose.msra.mxu0 0.0
      %833 = vmatprep.subr.mxu0 0.0
      %834 = vmatpush1.xpose.msra.mxu0 0.0
      %835 = vmatprep.subr.mxu0 0.0
      %836 = vmatpush1.xpose.msra.mxu0 0.0
      %837 = vmatprep.subr.mxu0 0.0
      %838 = vmatpush1.xpose.msra.mxu0 0.0
      %839 = vmatprep.subr.mxu0 0.0
      %840 = vmatpush1.xpose.msra.mxu0 0.0
      %841 = vmatprep.subr.mxu0 0.0
      %842 = vmatpush1.xpose.msra.mxu0 0.0
      %843 = vmatprep.subr.mxu0 0.0
      %844 = vmatpush1.xpose.msra.mxu0 0.0
      %845 = vmatprep.subr.mxu0 0.0
      %846 = vmatpush1.xpose.msra.mxu0 0.0
      %847 = vmatprep.subr.mxu0 0.0
      %848 = vmatpush1.xpose.msra.mxu0 0.0
      %849 = vmatprep.subr.mxu0 0.0
      %850 = vmatpush1.xpose.msra.mxu0 0.0
      %851 = vmatprep.subr.mxu0 0.0
      %852 = vmatpush1.xpose.msra.mxu0 0.0
      %853 = vmatprep.subr.mxu0 0.0
      %854 = vmatpush1.xpose.msra.mxu0 0.0
      %855 = vmatprep.subr.mxu0 0.0
      %856 = vmatpush1.xpose.msra.mxu0 0.0
      %857 = vmatprep.subr.mxu0 0.0
      %858 = vmatpush1.xpose.msra.mxu0 0.0
      %859 = vmatprep.subr.mxu0 0.0
      %860 = vmatpush1.xpose.msra.mxu0 0.0
      %861 = vmatprep.subr.mxu0 0.0
      %862 = vmatpush1.xpose.msra.mxu0 0.0
      %863 = vmatprep.subr.mxu0 0.0
      %864 = vmatpush1.xpose.msra.mxu0 0.0
      %865 = vmatprep.subr.mxu0 0.0
      %866 = vmatpush1.xpose.msra.mxu0 0.0
      %867 = vmatprep.subr.mxu0 0.0
      %868 = vmatpush1.xpose.msra.mxu0 0.0
      %869 = vmatprep.subr.mxu0 0.0
      %870 = vmatpush1.xpose.msra.mxu0 0.0
      %871 = vmatprep.subr.mxu0 0.0
      %872 = vmatpush1.xpose.msra.mxu0 0.0
      %873 = vmatprep.subr.mxu0 0.0
      %874 = vmatpush1.xpose.msra.mxu0 0.0
      %875 = vmatprep.subr.mxu0 0.0
      %876 = vmatpush1.xpose.msra.mxu0 0.0
      %877 = vmatprep.subr.mxu0 0.0
      %878 = vmatpush1.xpose.msra.mxu0 0.0
      %879 = vmatprep.subr.mxu0 0.0
      %880 = vmatpush1.xpose.msra.mxu0 0.0
      %881 = vmatprep.subr.mxu0 0.0
      %882 = vmatpush1.xpose.msra.mxu0 0.0
      %883 = vmatprep.subr.mxu0 0.0
      %884 = vmatpush1.xpose.msra.mxu0 0.0
      %885 = vmatprep.subr.mxu0 0.0
      %886 = vmatpush1.xpose.msra.mxu0 0.0
      %887 = vmatprep.subr.mxu0 0.0
      %888 = vmatpush1.xpose.msra.mxu0 0.0
      %889 = vmatprep.subr.mxu0 0.0
      %890 = vmatpush1.xpose.msra.mxu0 0.0
      %891 = vmatprep.subr.mxu0 0.0
      %892 = vmatpush1.xpose.msra.mxu0 0.0
      %893 = vmatprep.mubr.f32.mxu0 0.0
      %894 = vmatmul.mubr.f32.gmra.mrb[0].mxu0 %v825
      %v895 = vpop.f32.mrb[0].mxu0
      %v896 = vadd.f32 0.0, %v895
      %v897 = vpop.f32.mrb[0].mxu0
      %898 = vdwg.mxu0
      %v899 = vsel %vm240, %v896, -inf
      %900 = vmax.xlane.f32.xlu0 %v899
      %v901 = vpop.xlane.xlu0 %900
      %v902 = vsub.f32 %v896, %v901
      %v903 = vmul.f32 %v902, 1.442695
      %v904 = vpow.pop %v903
      %v905 = vsel %vm240, %v904, 0.0
      %906 = vadd.xlane.f32.xlu0 %v905
      %v907 = vpop.xlane.xlu0 %906
      %908 = vrot.lane.b32.xlu0 %v160, 64
      %v909 = vpop.permute.xlu0 %908
      %v912 = vsel %vm240, %v904, 0
      %914 = vmatprep.subr.mxu0 0.0
      %915 = vmatpush1.msra.mxu0 %v909
      %916 = vmatprep.subr.mxu0 0.0
      %917 = vmatpush1.msra.mxu0 0.0
      %918 = vmatprep.subr.mxu0 0.0
      %919 = vmatpush1.msra.mxu0 0.0
      %920 = vmatprep.subr.mxu0 0.0
      %921 = vmatpush1.msra.mxu0 0.0
      %922 = vmatprep.subr.mxu0 0.0
      %923 = vmatpush1.msra.mxu0 0.0
      %924 = vmatprep.subr.mxu0 0.0
      %925 = vmatpush1.msra.mxu0 0.0
      %926 = vmatprep.subr.mxu0 0.0
      %927 = vmatpush1.msra.mxu0 0.0
      %928 = vmatprep.subr.mxu0 0.0
      %929 = vmatpush1.msra.mxu0 0.0
      %930 = vmatprep.subr.mxu0 0.0
      %931 = vmatpush1.msra.mxu0 0.0
      %932 = vmatprep.subr.mxu0 0.0
      %933 = vmatpush1.msra.mxu0 0.0
      %934 = vmatprep.subr.mxu0 0.0
      %935 = vmatpush1.msra.mxu0 0.0
      %936 = vmatprep.subr.mxu0 0.0
      %937 = vmatpush1.msra.mxu0 0.0
      %938 = vmatprep.subr.mxu0 0.0
      %939 = vmatpush1.msra.mxu0 0.0
      %940 = vmatprep.subr.mxu0 0.0
      %941 = vmatpush1.msra.mxu0 0.0
      %942 = vmatprep.subr.mxu0 0.0
      %943 = vmatpush1.msra.mxu0 0.0
      %944 = vmatprep.subr.mxu0 0.0
      %945 = vmatpush1.msra.mxu0 0.0
      %946 = vmatprep.subr.mxu0 0.0
      %947 = vmatpush1.msra.mxu0 0.0
      %948 = vmatprep.subr.mxu0 0.0
      %949 = vmatpush1.msra.mxu0 0.0
      %950 = vmatprep.subr.mxu0 0.0
      %951 = vmatpush1.msra.mxu0 0.0
      %952 = vmatprep.subr.mxu0 0.0
      %953 = vmatpush1.msra.mxu0 0.0
      %954 = vmatprep.subr.mxu0 0.0
      %955 = vmatpush1.msra.mxu0 0.0
      %956 = vmatprep.subr.mxu0 0.0
      %957 = vmatpush1.msra.mxu0 0.0
      %958 = vmatprep.subr.mxu0 0.0
      %959 = vmatpush1.msra.mxu0 0.0
      %960 = vmatprep.subr.mxu0 0.0
      %961 = vmatpush1.msra.mxu0 0.0
      %962 = vmatprep.subr.mxu0 0.0
      %963 = vmatpush1.msra.mxu0 0.0
      %964 = vmatprep.subr.mxu0 0.0
      %965 = vmatpush1.msra.mxu0 0.0
      %966 = vmatprep.subr.mxu0 0.0
      %967 = vmatpush1.msra.mxu0 0.0
      %968 = vmatprep.subr.mxu0 0.0
      %969 = vmatpush1.msra.mxu0 0.0
      %970 = vmatprep.subr.mxu0 0.0
      %971 = vmatpush1.msra.mxu0 0.0
      %972 = vmatprep.subr.mxu0 0.0
      %973 = vmatpush1.msra.mxu0 0.0
      %974 = vmatprep.subr.mxu0 0.0
      %975 = vmatpush1.msra.mxu0 0.0
      %976 = vmatprep.subr.mxu0 0.0
      %977 = vmatpush1.msra.mxu0 0.0
      %978 = vmatprep.mubr.f32.mxu0 0.0
      %979 = vmatmul.mubr.f32.gmra.mrb[0].mxu0 %v912
      %v980 = vpop.f32.mrb[0].mxu0
      %v981 = vadd.f32 0.0, %v980
      %v982 = vpop.f32.mrb[0].mxu0
      %983 = vdwg.mxu0
      %v984 = vrcp.pop %v907
      %v985 = vmul.f32 %v981, %v984
      %986 = vrot.lane.b32.xlu0 %v162, 48
      %v987 = vpop.permute.xlu0 %986
      %988 = vrot.lane.b32.xlu0 %v159, 48
      %v989 = vpop.permute.xlu0 %988
      %v990 = vsel %vm163, %v987, 0
      %v992 = vsel %vm163, %v989, 0
      %994 = vmatprep.subr.mxu0 0.0
      %995 = vmatpush1.xpose.msra.mxu0 %v992
      %996 = vmatprep.subr.mxu0 0.0
      %997 = vmatpush1.xpose.msra.mxu0 0.0
      %998 = vmatprep.subr.mxu0 0.0
      %999 = vmatpush1.xpose.msra.mxu0 0.0
      %1000 = vmatprep.subr.mxu0 0.0
      %1001 = vmatpush1.xpose.msra.mxu0 0.0
      %1002 = vmatprep.subr.mxu0 0.0
      %1003 = vmatpush1.xpose.msra.mxu0 0.0
      %1004 = vmatprep.subr.mxu0 0.0
      %1005 = vmatpush1.xpose.msra.mxu0 0.0
      %1006 = vmatprep.subr.mxu0 0.0
      %1007 = vmatpush1.xpose.msra.mxu0 0.0
      %1008 = vmatprep.subr.mxu0 0.0
      %1009 = vmatpush1.xpose.msra.mxu0 0.0
      %1010 = vmatprep.subr.mxu0 0.0
      %1011 = vmatpush1.xpose.msra.mxu0 0.0
      %1012 = vmatprep.subr.mxu0 0.0
      %1013 = vmatpush1.xpose.msra.mxu0 0.0
      %1014 = vmatprep.subr.mxu0 0.0
      %1015 = vmatpush1.xpose.msra.mxu0 0.0
      %1016 = vmatprep.subr.mxu0 0.0
      %1017 = vmatpush1.xpose.msra.mxu0 0.0
      %1018 = vmatprep.subr.mxu0 0.0
      %1019 = vmatpush1.xpose.msra.mxu0 0.0
      %1020 = vmatprep.subr.mxu0 0.0
      %1021 = vmatpush1.xpose.msra.mxu0 0.0
      %1022 = vmatprep.subr.mxu0 0.0
      %1023 = vmatpush1.xpose.msra.mxu0 0.0
      %1024 = vmatprep.subr.mxu0 0.0
      %1025 = vmatpush1.xpose.msra.mxu0 0.0
      %1026 = vmatprep.subr.mxu0 0.0
      %1027 = vmatpush1.xpose.msra.mxu0 0.0
      %1028 = vmatprep.subr.mxu0 0.0
      %1029 = vmatpush1.xpose.msra.mxu0 0.0
      %1030 = vmatprep.subr.mxu0 0.0
      %1031 = vmatpush1.xpose.msra.mxu0 0.0
      %1032 = vmatprep.subr.mxu0 0.0
      %1033 = vmatpush1.xpose.msra.mxu0 0.0
      %1034 = vmatprep.subr.mxu0 0.0
      %1035 = vmatpush1.xpose.msra.mxu0 0.0
      %1036 = vmatprep.subr.mxu0 0.0
      %1037 = vmatpush1.xpose.msra.mxu0 0.0
      %1038 = vmatprep.subr.mxu0 0.0
      %1039 = vmatpush1.xpose.msra.mxu0 0.0
      %1040 = vmatprep.subr.mxu0 0.0
      %1041 = vmatpush1.xpose.msra.mxu0 0.0
      %1042 = vmatprep.subr.mxu0 0.0
      %1043 = vmatpush1.xpose.msra.mxu0 0.0
      %1044 = vmatprep.subr.mxu0 0.0
      %1045 = vmatpush1.xpose.msra.mxu0 0.0
      %1046 = vmatprep.subr.mxu0 0.0
      %1047 = vmatpush1.xpose.msra.mxu0 0.0
      %1048 = vmatprep.subr.mxu0 0.0
      %1049 = vmatpush1.xpose.msra.mxu0 0.0
      %1050 = vmatprep.subr.mxu0 0.0
      %1051 = vmatpush1.xpose.msra.mxu0 0.0
      %1052 = vmatprep.subr.mxu0 0.0
      %1053 = vmatpush1.xpose.msra.mxu0 0.0
      %1054 = vmatprep.subr.mxu0 0.0
      %1055 = vmatpush1.xpose.msra.mxu0 0.0
      %1056 = vmatprep.subr.mxu0 0.0
      %1057 = vmatpush1.xpose.msra.mxu0 0.0
      %1058 = vmatprep.mubr.f32.mxu0 0.0
      %1059 = vmatmul.mubr.f32.gmra.mrb[0].mxu0 %v990
      %v1060 = vpop.f32.mrb[0].mxu0
      %v1061 = vadd.f32 0.0, %v1060
      %v1062 = vpop.f32.mrb[0].mxu0
      %1063 = vdwg.mxu0
      %v1064 = vsel %vm240, %v1061, -inf
      %1065 = vmax.xlane.f32.xlu0 %v1064
      %v1066 = vpop.xlane.xlu0 %1065
      %v1067 = vsub.f32 %v1061, %v1066
      %v1068 = vmul.f32 %v1067, 1.442695
      %v1069 = vpow.pop %v1068
      %v1070 = vsel %vm240, %v1069, 0.0
      %1071 = vadd.xlane.f32.xlu0 %v1070
      %v1072 = vpop.xlane.xlu0 %1071
      %1073 = vrot.lane.b32.xlu0 %v160, 48
      %v1074 = vpop.permute.xlu0 %1073
      %v1077 = vsel %vm240, %v1069, 0
      %1079 = vmatprep.subr.mxu0 0.0
      %1080 = vmatpush1.msra.mxu0 %v1074
      %1081 = vmatprep.subr.mxu0 0.0
      %1082 = vmatpush1.msra.mxu0 0.0
      %1083 = vmatprep.subr.mxu0 0.0
      %1084 = vmatpush1.msra.mxu0 0.0
      %1085 = vmatprep.subr.mxu0 0.0
      %1086 = vmatpush1.msra.mxu0 0.0
      %1087 = vmatprep.subr.mxu0 0.0
      %1088 = vmatpush1.msra.mxu0 0.0
      %1089 = vmatprep.subr.mxu0 0.0
      %1090 = vmatpush1.msra.mxu0 0.0
      %1091 = vmatprep.subr.mxu0 0.0
      %1092 = vmatpush1.msra.mxu0 0.0
      %1093 = vmatprep.subr.mxu0 0.0
      %1094 = vmatpush1.msra.mxu0 0.0
      %1095 = vmatprep.subr.mxu0 0.0
      %1096 = vmatpush1.msra.mxu0 0.0
      %1097 = vmatprep.subr.mxu0 0.0
      %1098 = vmatpush1.msra.mxu0 0.0
      %1099 = vmatprep.subr.mxu0 0.0
      %1100 = vmatpush1.msra.mxu0 0.0
      %1101 = vmatprep.subr.mxu0 0.0
      %1102 = vmatpush1.msra.mxu0 0.0
      %1103 = vmatprep.subr.mxu0 0.0
      %1104 = vmatpush1.msra.mxu0 0.0
      %1105 = vmatprep.subr.mxu0 0.0
      %1106 = vmatpush1.msra.mxu0 0.0
      %1107 = vmatprep.subr.mxu0 0.0
      %1108 = vmatpush1.msra.mxu0 0.0
      %1109 = vmatprep.subr.mxu0 0.0
      %1110 = vmatpush1.msra.mxu0 0.0
      %1111 = vmatprep.subr.mxu0 0.0
      %1112 = vmatpush1.msra.mxu0 0.0
      %1113 = vmatprep.subr.mxu0 0.0
      %1114 = vmatpush1.msra.mxu0 0.0
      %1115 = vmatprep.subr.mxu0 0.0
      %1116 = vmatpush1.msra.mxu0 0.0
      %1117 = vmatprep.subr.mxu0 0.0
      %1118 = vmatpush1.msra.mxu0 0.0
      %1119 = vmatprep.subr.mxu0 0.0
      %1120 = vmatpush1.msra.mxu0 0.0
      %1121 = vmatprep.subr.mxu0 0.0
      %1122 = vmatpush1.msra.mxu0 0.0
      %1123 = vmatprep.subr.mxu0 0.0
      %1124 = vmatpush1.msra.mxu0 0.0
      %1125 = vmatprep.subr.mxu0 0.0
      %1126 = vmatpush1.msra.mxu0 0.0
      %1127 = vmatprep.subr.mxu0 0.0
      %1128 = vmatpush1.msra.mxu0 0.0
      %1129 = vmatprep.subr.mxu0 0.0
      %1130 = vmatpush1.msra.mxu0 0.0
      %1131 = vmatprep.subr.mxu0 0.0
      %1132 = vmatpush1.msra.mxu0 0.0
      %1133 = vmatprep.subr.mxu0 0.0
      %1134 = vmatpush1.msra.mxu0 0.0
      %1135 = vmatprep.subr.mxu0 0.0
      %1136 = vmatpush1.msra.mxu0 0.0
      %1137 = vmatprep.subr.mxu0 0.0
      %1138 = vmatpush1.msra.mxu0 0.0
      %1139 = vmatprep.subr.mxu0 0.0
      %1140 = vmatpush1.msra.mxu0 0.0
      %1141 = vmatprep.subr.mxu0 0.0
      %1142 = vmatpush1.msra.mxu0 0.0
      %1143 = vmatprep.mubr.f32.mxu0 0.0
      %1144 = vmatmul.mubr.f32.gmra.mrb[0].mxu0 %v1077
      %v1145 = vpop.f32.mrb[0].mxu0
      %v1146 = vadd.f32 0.0, %v1145
      %v1147 = vpop.f32.mrb[0].mxu0
      %1148 = vdwg.mxu0
      %v1149 = vrcp.pop %v1072
      %v1150 = vmul.f32 %v1146, %v1149
      %1151 = vrot.lane.b32.xlu0 %v162, 32
      %v1152 = vpop.permute.xlu0 %1151
      %1153 = vrot.lane.b32.xlu0 %v159, 32
      %v1154 = vpop.permute.xlu0 %1153
      %v1155 = vsel %vm163, %v1152, 0
      %v1157 = vsel %vm163, %v1154, 0
      %1159 = vmatprep.subr.mxu0 0.0
      %1160 = vmatpush1.xpose.msra.mxu0 %v1157
      %1161 = vmatprep.subr.mxu0 0.0
      %1162 = vmatpush1.xpose.msra.mxu0 0.0
      %1163 = vmatprep.subr.mxu0 0.0
      %1164 = vmatpush1.xpose.msra.mxu0 0.0
      %1165 = vmatprep.subr.mxu0 0.0
      %1166 = vmatpush1.xpose.msra.mxu0 0.0
      %1167 = vmatprep.subr.mxu0 0.0
      %1168 = vmatpush1.xpose.msra.mxu0 0.0
      %1169 = vmatprep.subr.mxu0 0.0
      %1170 = vmatpush1.xpose.msra.mxu0 0.0
      %1171 = vmatprep.subr.mxu0 0.0
      %1172 = vmatpush1.xpose.msra.mxu0 0.0
      %1173 = vmatprep.subr.mxu0 0.0
      %1174 = vmatpush1.xpose.msra.mxu0 0.0
      %1175 = vmatprep.subr.mxu0 0.0
      %1176 = vmatpush1.xpose.msra.mxu0 0.0
      %1177 = vmatprep.subr.mxu0 0.0
      %1178 = vmatpush1.xpose.msra.mxu0 0.0
      %1179 = vmatprep.subr.mxu0 0.0
      %1180 = vmatpush1.xpose.msra.mxu0 0.0
      %1181 = vmatprep.subr.mxu0 0.0
      %1182 = vmatpush1.xpose.msra.mxu0 0.0
      %1183 = vmatprep.subr.mxu0 0.0
      %1184 = vmatpush1.xpose.msra.mxu0 0.0
      %1185 = vmatprep.subr.mxu0 0.0
      %1186 = vmatpush1.xpose.msra.mxu0 0.0
      %1187 = vmatprep.subr.mxu0 0.0
      %1188 = vmatpush1.xpose.msra.mxu0 0.0
      %1189 = vmatprep.subr.mxu0 0.0
      %1190 = vmatpush1.xpose.msra.mxu0 0.0
      %1191 = vmatprep.subr.mxu0 0.0
      %1192 = vmatpush1.xpose.msra.mxu0 0.0
      %1193 = vmatprep.subr.mxu0 0.0
      %1194 = vmatpush1.xpose.msra.mxu0 0.0
      %1195 = vmatprep.subr.mxu0 0.0
      %1196 = vmatpush1.xpose.msra.mxu0 0.0
      %1197 = vmatprep.subr.mxu0 0.0
      %1198 = vmatpush1.xpose.msra.mxu0 0.0
      %1199 = vmatprep.subr.mxu0 0.0
      %1200 = vmatpush1.xpose.msra.mxu0 0.0
      %1201 = vmatprep.subr.mxu0 0.0
      %1202 = vmatpush1.xpose.msra.mxu0 0.0
      %1203 = vmatprep.subr.mxu0 0.0
      %1204 = vmatpush1.xpose.msra.mxu0 0.0
      %1205 = vmatprep.subr.mxu0 0.0
      %1206 = vmatpush1.xpose.msra.mxu0 0.0
      %1207 = vmatprep.subr.mxu0 0.0
      %1208 = vmatpush1.xpose.msra.mxu0 0.0
      %1209 = vmatprep.subr.mxu0 0.0
      %1210 = vmatpush1.xpose.msra.mxu0 0.0
      %1211 = vmatprep.subr.mxu0 0.0
      %1212 = vmatpush1.xpose.msra.mxu0 0.0
      %1213 = vmatprep.subr.mxu0 0.0
      %1214 = vmatpush1.xpose.msra.mxu0 0.0
      %1215 = vmatprep.subr.mxu0 0.0
      %1216 = vmatpush1.xpose.msra.mxu0 0.0
      %1217 = vmatprep.subr.mxu0 0.0
      %1218 = vmatpush1.xpose.msra.mxu0 0.0
      %1219 = vmatprep.subr.mxu0 0.0
      %1220 = vmatpush1.xpose.msra.mxu0 0.0
      %1221 = vmatprep.subr.mxu0 0.0
      %1222 = vmatpush1.xpose.msra.mxu0 0.0
      %1223 = vmatprep.mubr.f32.mxu0 0.0
      %1224 = vmatmul.mubr.f32.gmra.mrb[0].mxu0 %v1155
      %v1225 = vpop.f32.mrb[0].mxu0
      %v1226 = vadd.f32 0.0, %v1225
      %v1227 = vpop.f32.mrb[0].mxu0
      %1228 = vdwg.mxu0
      %v1229 = vsel %vm240, %v1226, -inf
      %1230 = vmax.xlane.f32.xlu0 %v1229
      %v1231 = vpop.xlane.xlu0 %1230
      %v1232 = vsub.f32 %v1226, %v1231
      %v1233 = vmul.f32 %v1232, 1.442695
      %v1234 = vpow.pop %v1233
      %v1235 = vsel %vm240, %v1234, 0.0
      %1236 = vadd.xlane.f32.xlu0 %v1235
      %v1237 = vpop.xlane.xlu0 %1236
      %1238 = vrot.lane.b32.xlu0 %v160, 32
      %v1239 = vpop.permute.xlu0 %1238
      %v1242 = vsel %vm240, %v1234, 0
      %1244 = vmatprep.subr.mxu0 0.0
      %1245 = vmatpush1.msra.mxu0 %v1239
      %1246 = vmatprep.subr.mxu0 0.0
      %1247 = vmatpush1.msra.mxu0 0.0
      %1248 = vmatprep.subr.mxu0 0.0
      %1249 = vmatpush1.msra.mxu0 0.0
      %1250 = vmatprep.subr.mxu0 0.0
      %1251 = vmatpush1.msra.mxu0 0.0
      %1252 = vmatprep.subr.mxu0 0.0
      %1253 = vmatpush1.msra.mxu0 0.0
      %1254 = vmatprep.subr.mxu0 0.0
      %1255 = vmatpush1.msra.mxu0 0.0
      %1256 = vmatprep.subr.mxu0 0.0
      %1257 = vmatpush1.msra.mxu0 0.0
      %1258 = vmatprep.subr.mxu0 0.0
      %1259 = vmatpush1.msra.mxu0 0.0
      %1260 = vmatprep.subr.mxu0 0.0
      %1261 = vmatpush1.msra.mxu0 0.0
      %1262 = vmatprep.subr.mxu0 0.0
      %1263 = vmatpush1.msra.mxu0 0.0
      %1264 = vmatprep.subr.mxu0 0.0
      %1265 = vmatpush1.msra.mxu0 0.0
      %1266 = vmatprep.subr.mxu0 0.0
      %1267 = vmatpush1.msra.mxu0 0.0
      %1268 = vmatprep.subr.mxu0 0.0
      %1269 = vmatpush1.msra.mxu0 0.0
      %1270 = vmatprep.subr.mxu0 0.0
      %1271 = vmatpush1.msra.mxu0 0.0
      %1272 = vmatprep.subr.mxu0 0.0
      %1273 = vmatpush1.msra.mxu0 0.0
      %1274 = vmatprep.subr.mxu0 0.0
      %1275 = vmatpush1.msra.mxu0 0.0
      %1276 = vmatprep.subr.mxu0 0.0
      %1277 = vmatpush1.msra.mxu0 0.0
      %1278 = vmatprep.subr.mxu0 0.0
      %1279 = vmatpush1.msra.mxu0 0.0
      %1280 = vmatprep.subr.mxu0 0.0
      %1281 = vmatpush1.msra.mxu0 0.0
      %1282 = vmatprep.subr.mxu0 0.0
      %1283 = vmatpush1.msra.mxu0 0.0
      %1284 = vmatprep.subr.mxu0 0.0
      %1285 = vmatpush1.msra.mxu0 0.0
      %1286 = vmatprep.subr.mxu0 0.0
      %1287 = vmatpush1.msra.mxu0 0.0
      %1288 = vmatprep.subr.mxu0 0.0
      %1289 = vmatpush1.msra.mxu0 0.0
      %1290 = vmatprep.subr.mxu0 0.0
      %1291 = vmatpush1.msra.mxu0 0.0
      %1292 = vmatprep.subr.mxu0 0.0
      %1293 = vmatpush1.msra.mxu0 0.0
      %1294 = vmatprep.subr.mxu0 0.0
      %1295 = vmatpush1.msra.mxu0 0.0
      %1296 = vmatprep.subr.mxu0 0.0
      %1297 = vmatpush1.msra.mxu0 0.0
      %1298 = vmatprep.subr.mxu0 0.0
      %1299 = vmatpush1.msra.mxu0 0.0
      %1300 = vmatprep.subr.mxu0 0.0
      %1301 = vmatpush1.msra.mxu0 0.0
      %1302 = vmatprep.subr.mxu0 0.0
      %1303 = vmatpush1.msra.mxu0 0.0
      %1304 = vmatprep.subr.mxu0 0.0
      %1305 = vmatpush1.msra.mxu0 0.0
      %1306 = vmatprep.subr.mxu0 0.0
      %1307 = vmatpush1.msra.mxu0 0.0
      %1308 = vmatprep.mubr.f32.mxu0 0.0
      %1309 = vmatmul.mubr.f32.gmra.mrb[0].mxu0 %v1242
      %v1310 = vpop.f32.mrb[0].mxu0
      %v1311 = vadd.f32 0.0, %v1310
      %v1312 = vpop.f32.mrb[0].mxu0
      %1313 = vdwg.mxu0
      %v1314 = vrcp.pop %v1237
      %v1315 = vmul.f32 %v1311, %v1314
      %1316 = vrot.lane.b32.xlu0 %v162, 16
      %v1317 = vpop.permute.xlu0 %1316
      %1318 = vrot.lane.b32.xlu0 %v159, 16
      %v1319 = vpop.permute.xlu0 %1318
      %v1320 = vsel %vm163, %v1317, 0
      %v1322 = vsel %vm163, %v1319, 0
      %1324 = vmatprep.subr.mxu0 0.0
      %1325 = vmatpush1.xpose.msra.mxu0 %v1322
      %1326 = vmatprep.subr.mxu0 0.0
      %1327 = vmatpush1.xpose.msra.mxu0 0.0
      %1328 = vmatprep.subr.mxu0 0.0
      %1329 = vmatpush1.xpose.msra.mxu0 0.0
      %1330 = vmatprep.subr.mxu0 0.0
      %1331 = vmatpush1.xpose.msra.mxu0 0.0
      %1332 = vmatprep.subr.mxu0 0.0
      %1333 = vmatpush1.xpose.msra.mxu0 0.0
      %1334 = vmatprep.subr.mxu0 0.0
      %1335 = vmatpush1.xpose.msra.mxu0 0.0
      %1336 = vmatprep.subr.mxu0 0.0
      %1337 = vmatpush1.xpose.msra.mxu0 0.0
      %1338 = vmatprep.subr.mxu0 0.0
      %1339 = vmatpush1.xpose.msra.mxu0 0.0
      %1340 = vmatprep.subr.mxu0 0.0
      %1341 = vmatpush1.xpose.msra.mxu0 0.0
      %1342 = vmatprep.subr.mxu0 0.0
      %1343 = vmatpush1.xpose.msra.mxu0 0.0
      %1344 = vmatprep.subr.mxu0 0.0
      %1345 = vmatpush1.xpose.msra.mxu0 0.0
      %1346 = vmatprep.subr.mxu0 0.0
      %1347 = vmatpush1.xpose.msra.mxu0 0.0
      %1348 = vmatprep.subr.mxu0 0.0
      %1349 = vmatpush1.xpose.msra.mxu0 0.0
      %1350 = vmatprep.subr.mxu0 0.0
      %1351 = vmatpush1.xpose.msra.mxu0 0.0
      %1352 = vmatprep.subr.mxu0 0.0
      %1353 = vmatpush1.xpose.msra.mxu0 0.0
      %1354 = vmatprep.subr.mxu0 0.0
      %1355 = vmatpush1.xpose.msra.mxu0 0.0
      %1356 = vmatprep.subr.mxu0 0.0
      %1357 = vmatpush1.xpose.msra.mxu0 0.0
      %1358 = vmatprep.subr.mxu0 0.0
      %1359 = vmatpush1.xpose.msra.mxu0 0.0
      %1360 = vmatprep.subr.mxu0 0.0
      %1361 = vmatpush1.xpose.msra.mxu0 0.0
      %1362 = vmatprep.subr.mxu0 0.0
      %1363 = vmatpush1.xpose.msra.mxu0 0.0
      %1364 = vmatprep.subr.mxu0 0.0
      %1365 = vmatpush1.xpose.msra.mxu0 0.0
      %1366 = vmatprep.subr.mxu0 0.0
      %1367 = vmatpush1.xpose.msra.mxu0 0.0
      %1368 = vmatprep.subr.mxu0 0.0
      %1369 = vmatpush1.xpose.msra.mxu0 0.0
      %1370 = vmatprep.subr.mxu0 0.0
      %1371 = vmatpush1.xpose.msra.mxu0 0.0
      %1372 = vmatprep.subr.mxu0 0.0
      %1373 = vmatpush1.xpose.msra.mxu0 0.0
      %1374 = vmatprep.subr.mxu0 0.0
      %1375 = vmatpush1.xpose.msra.mxu0 0.0
      %1376 = vmatprep.subr.mxu0 0.0
      %1377 = vmatpush1.xpose.msra.mxu0 0.0
      %1378 = vmatprep.subr.mxu0 0.0
      %1379 = vmatpush1.xpose.msra.mxu0 0.0
      %1380 = vmatprep.subr.mxu0 0.0
      %1381 = vmatpush1.xpose.msra.mxu0 0.0
      %1382 = vmatprep.subr.mxu0 0.0
      %1383 = vmatpush1.xpose.msra.mxu0 0.0
      %1384 = vmatprep.subr.mxu0 0.0
      %1385 = vmatpush1.xpose.msra.mxu0 0.0
      %1386 = vmatprep.subr.mxu0 0.0
      %1387 = vmatpush1.xpose.msra.mxu0 0.0
      %1388 = vmatprep.mubr.f32.mxu0 0.0
      %1389 = vmatmul.mubr.f32.gmra.mrb[0].mxu0 %v1320
      %v1390 = vpop.f32.mrb[0].mxu0
      %v1391 = vadd.f32 0.0, %v1390
      %v1392 = vpop.f32.mrb[0].mxu0
      %1393 = vdwg.mxu0
      %v1394 = vsel %vm240, %v1391, -inf
      %1395 = vmax.xlane.f32.xlu0 %v1394
      %v1396 = vpop.xlane.xlu0 %1395
      %v1397 = vsub.f32 %v1391, %v1396
      %v1398 = vmul.f32 %v1397, 1.442695
      %v1399 = vpow.pop %v1398
      %v1400 = vsel %vm240, %v1399, 0.0
      %1401 = vadd.xlane.f32.xlu0 %v1400
      %v1402 = vpop.xlane.xlu0 %1401
      %1403 = vrot.lane.b32.xlu0 %v160, 16
      %v1404 = vpop.permute.xlu0 %1403
      %v1407 = vsel %vm240, %v1399, 0
      %1409 = vmatprep.subr.mxu0 0.0
      %1410 = vmatpush1.msra.mxu0 %v1404
      %1411 = vmatprep.subr.mxu0 0.0
      %1412 = vmatpush1.msra.mxu0 0.0
      %1413 = vmatprep.subr.mxu0 0.0
      %1414 = vmatpush1.msra.mxu0 0.0
      %1415 = vmatprep.subr.mxu0 0.0
      %1416 = vmatpush1.msra.mxu0 0.0
      %1417 = vmatprep.subr.mxu0 0.0
      %1418 = vmatpush1.msra.mxu0 0.0
      %1419 = vmatprep.subr.mxu0 0.0
      %1420 = vmatpush1.msra.mxu0 0.0
      %1421 = vmatprep.subr.mxu0 0.0
      %1422 = vmatpush1.msra.mxu0 0.0
      %1423 = vmatprep.subr.mxu0 0.0
      %1424 = vmatpush1.msra.mxu0 0.0
      %1425 = vmatprep.subr.mxu0 0.0
      %1426 = vmatpush1.msra.mxu0 0.0
      %1427 = vmatprep.subr.mxu0 0.0
      %1428 = vmatpush1.msra.mxu0 0.0
      %1429 = vmatprep.subr.mxu0 0.0
      %1430 = vmatpush1.msra.mxu0 0.0
      %1431 = vmatprep.subr.mxu0 0.0
      %1432 = vmatpush1.msra.mxu0 0.0
      %1433 = vmatprep.subr.mxu0 0.0
      %1434 = vmatpush1.msra.mxu0 0.0
      %1435 = vmatprep.subr.mxu0 0.0
      %1436 = vmatpush1.msra.mxu0 0.0
      %1437 = vmatprep.subr.mxu0 0.0
      %1438 = vmatpush1.msra.mxu0 0.0
      %1439 = vmatprep.subr.mxu0 0.0
      %1440 = vmatpush1.msra.mxu0 0.0
      %1441 = vmatprep.subr.mxu0 0.0
      %1442 = vmatpush1.msra.mxu0 0.0
      %1443 = vmatprep.subr.mxu0 0.0
      %1444 = vmatpush1.msra.mxu0 0.0
      %1445 = vmatprep.subr.mxu0 0.0
      %1446 = vmatpush1.msra.mxu0 0.0
      %1447 = vmatprep.subr.mxu0 0.0
      %1448 = vmatpush1.msra.mxu0 0.0
      %1449 = vmatprep.subr.mxu0 0.0
      %1450 = vmatpush1.msra.mxu0 0.0
      %1451 = vmatprep.subr.mxu0 0.0
      %1452 = vmatpush1.msra.mxu0 0.0
      %1453 = vmatprep.subr.mxu0 0.0
      %1454 = vmatpush1.msra.mxu0 0.0
      %1455 = vmatprep.subr.mxu0 0.0
      %1456 = vmatpush1.msra.mxu0 0.0
      %1457 = vmatprep.subr.mxu0 0.0
      %1458 = vmatpush1.msra.mxu0 0.0
      %1459 = vmatprep.subr.mxu0 0.0
      %1460 = vmatpush1.msra.mxu0 0.0
      %1461 = vmatprep.subr.mxu0 0.0
      %1462 = vmatpush1.msra.mxu0 0.0
      %1463 = vmatprep.subr.mxu0 0.0
      %1464 = vmatpush1.msra.mxu0 0.0
      %1465 = vmatprep.subr.mxu0 0.0
      %1466 = vmatpush1.msra.mxu0 0.0
      %1467 = vmatprep.subr.mxu0 0.0
      %1468 = vmatpush1.msra.mxu0 0.0
      %1469 = vmatprep.subr.mxu0 0.0
      %1470 = vmatpush1.msra.mxu0 0.0
      %1471 = vmatprep.subr.mxu0 0.0
      %1472 = vmatpush1.msra.mxu0 0.0
      %1473 = vmatprep.mubr.f32.mxu0 0.0
      %1474 = vmatmul.mubr.f32.gmra.mrb[0].mxu0 %v1407
      %v1475 = vpop.f32.mrb[0].mxu0
      %v1476 = vadd.f32 0.0, %v1475
      %v1477 = vpop.f32.mrb[0].mxu0
      %1478 = vdwg.mxu0
      %v1479 = vrcp.pop %v1402
      %v1480 = vmul.f32 %v1476, %v1479
      %1482 = vrot.lane.b32.xlu0 %v490, 16
      %v1483 = vpop.permute.xlu0 %1482
      %1486 = vrot.lane.b32.xlu0 %v655, 32
      %v1487 = vpop.permute.xlu0 %1486
      %1490 = vrot.lane.b32.xlu0 %v820, 48
      %v1491 = vpop.permute.xlu0 %1490
      %1494 = vrot.lane.b32.xlu0 %v985, 64
      %v1495 = vpop.permute.xlu0 %1494
      %1498 = vrot.lane.b32.xlu0 %v1150, 80
      %v1499 = vpop.permute.xlu0 %1498
      %1502 = vrot.lane.b32.xlu0 %v1315, 96
      %v1503 = vpop.permute.xlu0 %1502
      %1506 = vrot.lane.b32.xlu0 %v1480, 112
      %v1507 = vpop.permute.xlu0 %1506
      %v1509 = vsel %vm163, %v324, %v1483
      %vm1510 = vcmask 261120
      %v1511 = vsel %vm1510, %v1509, %v1487
      %vm1512 = vcmask 392192
      %v1513 = vsel %vm1512, %v1511, %v1491
      %vm1514 = vcmask 523264
      %v1515 = vsel %vm1514, %v1513, %v1495
      %vm1516 = vcmask 654336
      %v1517 = vsel %vm1516, %v1515, %v1499
      %vm1518 = vcmask 785408
      %v1519 = vsel %vm1518, %v1517, %v1503
      %vm1520 = vcmask 916480
      %v1521 = vsel %vm1520, %v1519, %v1507
      %1522 = vst [vmem:[%s158] sm:$0xff] %v1521
      %p1523 = scmp.lt.s32.totalorder %s13, 1
      %s1524 = scalar_select %p1523, %s13, 1
      %s1525 = smul.addr %s1524, 8
      %s1526 = scalar_lea.vmem %s2, %s1525
      // Predicated region
      $region29: #{transformer_forward.33} parent=27 // pred_check
        %p1527 = pneg %p83
      $region30: #{transformer_forward.33} parent=27 // pred_check_branch
        %1529 = sbr.rel (%p1527) target = $region32
      $region31: #{transformer_forward.33} parent=27 // pred_region
        _
      $region32: #{transformer_forward.33} parent=27 // pred_fallthru
        _
    $region28: #{transformer_forward.33} parent=5 // pred_fallthru
      _
    %p1530 = scmp.le.s32.totalorder 2, %s8
    // Predicated region
    $region33: #{transformer_forward.33} parent=5 // pred_check
      %p1531 = pneg %p1530
    $region34: #{transformer_forward.33} parent=5 // pred_check_branch
      %1533 = sbr.rel (%p1531) target = $region36
    $region35: #{transformer_forward.33} parent=5 // pred_region
      %s1534 = ssub.s32 %s8, 2
      // Predicated region
      $region37: #{transformer_forward.33} parent=35 // pred_check
        %p1535 = pneg %p89
      $region38: #{transformer_forward.33} parent=35 // pred_check_branch
        %1537 = sbr.rel (%p1535) target = $region40
      $region39: #{transformer_forward.33} parent=35 // pred_region
        %p1538 = scmp.lt.s32.totalorder %s14, 1
        %s1539 = scalar_select %p1538, %s14, 1
        %s1540 = smul.addr %s1539, 8
        %s1541 = scalar_lea.vmem %s2, %s1540
      $region40: #{transformer_forward.33} parent=35 // pred_fallthru
        _
    $region36: #{transformer_forward.33} parent=5 // pred_fallthru
      _
  $region6: #{transformer_forward.33} parent=0 // loop_footer
    %s12 = sadd.s32 1, %s8
  $region7: #{transformer_forward.33} parent=0 // loop_footer_branch
    %7 = sbr.rel target = $region3
  $region8: #{transformer_forward.33} parent=0 // loop_exit
    _

</llo_original>
